<compile_context>
chip_gen: v7x
topology: tpu7x:2x2x1
jax: 0.10.0
libtpu: 0.0.40
codegen_flags: <defaults>
</compile_context>

<pallas_src>
import functools

import jax
import jax.numpy as jnp
from jax.experimental import pallas as pl
from jax.experimental.pallas import tpu as pltpu

_LANE = 128
_MAX_TILE_DST = 512            # bigger dst tiles amortize the h stream
_MAX_TILE_SRC = 512
_MAX_TILE_ROWS = 512
_VMEM_LIMIT = 48 * 1024 * 1024      # fits v7x's 64 MiB VMEM with headroom
_H_RESIDENT_BYTES = 8 * 1024 * 1024  # keep h fully in VMEM below this size


def _round_up(x, m):
    return ((x + m - 1) // m) * m


def _pick_tile(n, max_tile):
    """Largest multiple of 128 that divides n and is <= max_tile."""
    t = max(min(max_tile, n) // _LANE * _LANE, _LANE)
    while n % t != 0:
        t -= _LANE
    return t


def _pad2(a, rows, cols):
    return jnp.pad(a, ((0, rows - a.shape[0]), (0, cols - a.shape[1])))


# --------------------------------------------------------------------------
# Kernel 1: node projection  h = x @ W ; a_src/a_dst = <h, att_{src,dst}>
# --------------------------------------------------------------------------
def _gat_project_kernel(x_ref, w_ref, att_src_ref, att_dst_ref,
                        h_ref, a_src_ref, a_dst_ref):
    # x / w arrive pre-cast to bf16; accumulate in f32 on the MXU.
    h = jnp.dot(x_ref[...], w_ref[...], preferred_element_type=jnp.float32)
    h_ref[...] = h.astype(h_ref.dtype)                           # bf16 out
    a_src_ref[...] = jnp.sum(h * att_src_ref[...], axis=-1, keepdims=True)
    a_dst_ref[...] = jnp.sum(h * att_dst_ref[...], axis=-1, keepdims=True)


def gat_project(x, w, att_src, att_dst, *, tile_rows):
    n, f_in = x.shape
    f_out = w.shape[1]
    return pl.pallas_call(
        _gat_project_kernel,
        out_shape=(
            jax.ShapeDtypeStruct((n, f_out), jnp.bfloat16),      # h (MXU operand)
            jax.ShapeDtypeStruct((n, 1), jnp.float32),           # a_src
            jax.ShapeDtypeStruct((n, 1), jnp.float32),           # a_dst
        ),
        grid_spec=pltpu.PrefetchScalarGridSpec(
            num_scalar_prefetch=0,
            grid=(n // tile_rows,),
            in_specs=[
                pl.BlockSpec((tile_rows, f_in), lambda i: (i, 0)),
                pl.BlockSpec((f_in, f_out), lambda i: (0, 0)),
                pl.BlockSpec((1, f_out), lambda i: (0, 0)),
                pl.BlockSpec((1, f_out), lambda i: (0, 0)),
            ],
            out_specs=(
                pl.BlockSpec((tile_rows, f_out), lambda i: (i, 0)),
                pl.BlockSpec((tile_rows, 1), lambda i: (i, 0)),
                pl.BlockSpec((tile_rows, 1), lambda i: (i, 0)),
            ),
        ),
        compiler_params=pltpu.CompilerParams(
            dimension_semantics=("parallel",),
            vmem_limit_bytes=_VMEM_LIMIT,
        ),
    )(x, w, att_src, att_dst)


# --------------------------------------------------------------------------
# Kernel 2: flash-style masked attention + aggregation (online softmax)
# --------------------------------------------------------------------------
def _gat_attention_kernel(ids_ref, cnt_ref,
                          a_dst_ref, a_src_ref, h_ref, adj_ref, bias_ref,
                          out_ref, m_sc, l_sc, acc_sc,
                          *, apply_elu, h_resident, tile_src, num_src_tiles):
    d = pl.program_id(0)
    s = pl.program_id(1)
    n_valid = cnt_ref[d]           # number of non-empty src tiles for this dst

    @pl.when(s == 0)
    def _():
        m_sc[...] = jnp.full(m_sc.shape, -1e30, jnp.float32)
        l_sc[...] = jnp.zeros(l_sc.shape, jnp.float32)
        acc_sc[...] = jnp.zeros(acc_sc.shape, jnp.float32)

    # Block-skip: steps >= n_valid are padding (index_maps repeat the last
    # valid tile id, so no DMA is issued either).
    @pl.when(s < n_valid)
    def _():
        # edge logits e[j,i] = LeakyReLU(a_dst[j] + a_src[i], 0.2)
        e = a_dst_ref[...] + a_src_ref[...]                      # [TD, TS]
        e = jnp.maximum(e, 0.2 * e)
        # Online softmax with the UNMASKED running max (shift-invariant);
        # non-edges are zeroed by a single post-exp multiply.
        m_prev = m_sc[...]
        m_new = jnp.maximum(m_prev, jnp.max(e, axis=-1, keepdims=True))
        alpha = jnp.exp(m_prev - m_new)
        p = jnp.exp(e - m_new) * adj_ref[...].astype(jnp.float32)
        l_sc[...] = alpha * l_sc[...] + jnp.sum(p, axis=-1, keepdims=True)
        if h_resident:
            # h is fully resident in VMEM; slice the current src tile.
            start = pl.multiple_of(
                ids_ref[d * num_src_tiles + s] * tile_src, tile_src)
            h_blk = h_ref[pl.ds(start, tile_src), :]
        else:
            h_blk = h_ref[...]
        acc_sc[...] = alpha * acc_sc[...] + jnp.dot(
            p.astype(jnp.bfloat16), h_blk, preferred_element_type=jnp.float32)
        m_sc[...] = m_new

    @pl.when(s == n_valid - 1)
    def _():
        inv_l = pl.reciprocal(l_sc[...], approx=True)            # EUP, not VALU
        out = acc_sc[...] * inv_l + bias_ref[...]
        if apply_elu:                                            # fused F.elu
            out = jnp.where(out > 0, out,
                            jnp.exp(jnp.minimum(out, 0.0)) - 1.0)
        out_ref[...] = out.astype(out_ref.dtype)


def gat_conv(x, w, att_src, att_dst, bias, adj, src_ids, src_cnt,
             *, apply_elu, out_dtype, tile_dst, tile_src):
    """One GATConv layer (heads=1) on padded inputs.

    x:[N_pad,F_in_pad] bf16, w:[F_in_pad,F_out_pad] bf16, att_*:[1,F_out_pad],
    bias:[1,F_out_pad], adj:[N_pad,N_pad] int8 (adj[dst,src], self-loops set),
    src_ids:[nd*ns] / src_cnt:[nd] int32 block-skip tables.
    """
    n_pad = x.shape[0]
    f_out = w.shape[1]
    tile_rows = _pick_tile(n_pad, _MAX_TILE_ROWS)

    h, a_src, a_dst = gat_project(x, w, att_src, att_dst, tile_rows=tile_rows)
    a_src_row = a_src.reshape(1, n_pad)   # lane-major; no in-kernel transpose

    num_dst_tiles = n_pad // tile_dst
    num_src_tiles = n_pad // tile_src
    # h resident in VMEM when it fits (eliminates the per-dst-tile h re-stream).
    h_resident = (n_pad * f_out * 2) <= _H_RESIDENT_BYTES

    if h_resident:
        h_spec = pl.BlockSpec((n_pad, f_out), lambda d, s, ids, cnt: (0, 0))
    else:
        h_spec = pl.BlockSpec(
            (tile_src, f_out),
            lambda d, s, ids, cnt: (ids[d * num_src_tiles + s], 0))

    kernel = functools.partial(
        _gat_attention_kernel, apply_elu=apply_elu, h_resident=h_resident,
        tile_src=tile_src, num_src_tiles=num_src_tiles)

    return pl.pallas_call(
        kernel,
        out_shape=jax.ShapeDtypeStruct((n_pad, f_out), out_dtype),
        grid_spec=pltpu.PrefetchScalarGridSpec(
            num_scalar_prefetch=2,
            grid=(num_dst_tiles, num_src_tiles),
            in_specs=[
                pl.BlockSpec((tile_dst, 1),
                             lambda d, s, ids, cnt: (d, 0)),              # a_dst
                pl.BlockSpec((1, tile_src),
                             lambda d, s, ids, cnt:
                             (0, ids[d * num_src_tiles + s])),            # a_src
                h_spec,                                                   # h
                pl.BlockSpec((tile_dst, tile_src),
                             lambda d, s, ids, cnt:
                             (d, ids[d * num_src_tiles + s])),            # adj
                pl.BlockSpec((1, f_out), lambda d, s, ids, cnt: (0, 0)),  # bias
            ],
            out_specs=pl.BlockSpec((tile_dst, f_out),
                                   lambda d, s, ids, cnt: (d, 0)),
            scratch_shapes=[
                pltpu.VMEM((tile_dst, 1), jnp.float32),      # running max
                pltpu.VMEM((tile_dst, 1), jnp.float32),      # running sum
                pltpu.VMEM((tile_dst, f_out), jnp.float32),  # accumulator
            ],
        ),
        compiler_params=pltpu.CompilerParams(
            dimension_semantics=("parallel", "arbitrary"),
            vmem_limit_bytes=_VMEM_LIMIT,
        ),
    )(src_ids, src_cnt, a_dst, a_src_row, h, adj, bias)


# --------------------------------------------------------------------------
# Model glue (padding, adjacency + block-skip tables, 2-layer forward)
# --------------------------------------------------------------------------
def init_gat_params(key, input_dim, hidden_dim, output_dim):
    ks = jax.random.split(key, 6)

    def glorot(k, shape):
        fan_in, fan_out = shape
        lim = (6.0 / (fan_in + fan_out)) ** 0.5
        return jax.random.uniform(k, shape, jnp.float32, -lim, lim)

    return {
        "w1": glorot(ks[0], (input_dim, hidden_dim)),
        "att_src1": glorot(ks[1], (1, hidden_dim)),
        "att_dst1": glorot(ks[2], (1, hidden_dim)),
        "b1": jnp.zeros((1, hidden_dim), jnp.float32),
        "w2": glorot(ks[3], (hidden_dim, output_dim)),
        "att_src2": glorot(ks[4], (1, output_dim)),
        "att_dst2": glorot(ks[5], (1, output_dim)),
        "b2": jnp.zeros((1, output_dim), jnp.float32),
    }


def _build_adj(edge_index, n_pad):
    # adj[dst, src] in {0,1}, int8, with self-loops on every (incl. padded) row
    adj = jnp.zeros((n_pad, n_pad), jnp.int8)
    adj = adj.at[edge_index[1], edge_index[0]].set(1)
    diag = jnp.arange(n_pad)
    adj = adj.at[diag, diag].set(1)
    return adj


def _build_src_tile_lists(adj, tile_dst, tile_src):
    """Per dst tile: compact list of non-empty src tiles + count.

    Lists are padded by repeating the last valid id so skipped grid steps
    keep the same block index (no DMA) and are gated off with pl.when.
    Every row has a self-loop, so counts >= 1.
    """
    n_pad = adj.shape[0]
    nd = n_pad // tile_dst
    ns = n_pad // tile_src
    blocks = adj.reshape(nd, tile_dst, ns, tile_src)
    nonempty = jnp.any(blocks != 0, axis=(1, 3))                   # [nd, ns]
    order = jnp.argsort(jnp.where(nonempty, 0, 1).astype(jnp.int32),
                        axis=1).astype(jnp.int32)                  # nonempty first
    counts = jnp.sum(nonempty, axis=1).astype(jnp.int32)           # [nd]
    step = jnp.arange(ns, dtype=jnp.int32)[None, :]
    last = jnp.take_along_axis(order, jnp.maximum(counts - 1, 0)[:, None], axis=1)
    ids = jnp.where(step < counts[:, None], order, last)
    return ids.reshape(-1).astype(jnp.int32), counts


@jax.jit
def gat_forward(params, x, edge_index):
    n, f_in = x.shape
    hid = params["w1"].shape[1]
    out_dim = params["w2"].shape[1]

    # pad N only to lane granularity; tiles are divisors of n_pad
    n_pad = _round_up(max(n, _LANE), _LANE)
    f_in_p = _round_up(f_in, _LANE)
    hid_p = _round_up(hid, _LANE)
    out_p = _round_up(out_dim, _LANE)

    # cap tile_dst at n_pad//2 so the v7x megacore gets >= 2 dst tiles
    tile_dst = _pick_tile(n_pad, min(_MAX_TILE_DST, max(n_pad // 2, _LANE)))
    tile_src = _pick_tile(n_pad, _MAX_TILE_SRC)

    x_p = _pad2(x, n_pad, f_in_p).astype(jnp.bfloat16)
    adj = _build_adj(edge_index, n_pad)
    src_ids, src_cnt = _build_src_tile_lists(adj, tile_dst, tile_src)

    w1 = _pad2(params["w1"], f_in_p, hid_p).astype(jnp.bfloat16)
    as1 = _pad2(params["att_src1"], 1, hid_p)
    ad1 = _pad2(params["att_dst1"], 1, hid_p)
    b1 = _pad2(params["b1"], 1, hid_p)
    w2 = _pad2(params["w2"], hid_p, out_p).astype(jnp.bfloat16)
    as2 = _pad2(params["att_src2"], 1, out_p)
    ad2 = _pad2(params["att_dst2"], 1, out_p)
    b2 = _pad2(params["b2"], 1, out_p)

    # x = F.elu(gat1(x, edge_index)); x = gat2(x, edge_index)
    h = gat_conv(x_p, w1, as1, ad1, b1, adj, src_ids, src_cnt,
                 apply_elu=True, out_dtype=jnp.bfloat16,      # bf16 inter-layer
                 tile_dst=tile_dst, tile_src=tile_src)
    out = gat_conv(h, w2, as2, ad2, b2, adj, src_ids, src_cnt,
                   apply_elu=False, out_dtype=jnp.float32,
                   tile_dst=tile_dst, tile_src=tile_src)
    return out[:n, :out_dim]


# --------------------------------------------------------------------------
# Pure-JAX reference (f32, unpadded) for a sanity check
# --------------------------------------------------------------------------
def _gat_conv_ref(x, w, att_src, att_dst, bias, adj_bool, apply_elu):
    h = x @ w
    a_s = jnp.sum(h * att_src, axis=-1)
    a_d = jnp.sum(h * att_dst, axis=-1)
    e = a_d[:, None] + a_s[None, :]
    e = jnp.where(e > 0, e, 0.2 * e)
    e = jnp.where(adj_bool, e, -jnp.inf)
    p = jax.nn.softmax(e, axis=-1)
    out = p @ h + bias
    if apply_elu:
        out = jnp.where(out > 0, out, jnp.exp(jnp.minimum(out, 0.0)) - 1.0)
    return out


def gat_reference(params, x, edge_index):
    n = x.shape[0]
    adj = jnp.zeros((n, n), bool)
    adj = adj.at[edge_index[1], edge_index[0]].set(True)
    adj = adj.at[jnp.arange(n), jnp.arange(n)].set(True)
    h = _gat_conv_ref(x, params["w1"], params["att_src1"], params["att_dst1"],
                      params["b1"], adj, True)
    return _gat_conv_ref(h, params["w2"], params["att_src2"], params["att_dst2"],
                         params["b2"], adj, False)


if __name__ == "__main__":
    # small synthetic graph: 8 nodes on a ring, bidirectional edges
    N = 8
    input_dim = 16
    hidden_dim = 64
    output_dim = 32

    key = jax.random.PRNGKey(0)
    k_x, k_p = jax.random.split(key)

    x = jax.random.normal(k_x, (N, input_dim), jnp.float32)

    src = jnp.arange(N)
    dst = (src + 1) % N
    edge_index = jnp.stack(
        [jnp.concatenate([src, dst]), jnp.concatenate([dst, src])], axis=0
    )  # [2, 2N], row 0 = source, row 1 = destination

    params = init_gat_params(k_p, input_dim, hidden_dim, output_dim)

    out = gat_forward(params, x, edge_index)
    jax.block_until_ready(out)
    assert out.shape == (N, output_dim)

    ref = gat_reference(params, x, edge_index)
    max_err = float(jnp.max(jnp.abs(out - ref)))
    assert max_err < 0.1, f"mismatch vs reference: max abs err {max_err}"

    print("KERNEL_OK")
</pallas_src>

<mosaic_0001>
module attributes {stable_mosaic.version = 11 : i64} {
  func.func @_gat_project_kernel(%arg0: i32, %arg1: memref<128x128xbf16, #tpu.memory_space<vmem>>, %arg2: memref<128x128xbf16, #tpu.memory_space<vmem>>, %arg3: memref<1x128xf32, #tpu.memory_space<vmem>>, %arg4: memref<1x128xf32, #tpu.memory_space<vmem>>, %arg5: memref<128x128xbf16, #tpu.memory_space<vmem>>, %arg6: memref<128x1xf32, #tpu.memory_space<vmem>>, %arg7: memref<128x1xf32, #tpu.memory_space<vmem>>) attributes {dimension_semantics = [#tpu.dimension_semantics<parallel>], iteration_bounds = array<i64: 1>, scalar_prefetch = 0 : i64, scratch_operands = 0 : i64, tpu.core_type = #tpu.core_type<tc>, window_params = [{transform_indices = @transform_0, window_bounds = array<i64: 128, 128>}, {pipeline_mode = #tpu.pipeline_mode<synchronous>, transform_indices = @transform_1, window_bounds = array<i64: 128, 128>}, {pipeline_mode = #tpu.pipeline_mode<synchronous>, transform_indices = @transform_2, window_bounds = array<i64: 1, 128>}, {pipeline_mode = #tpu.pipeline_mode<synchronous>, transform_indices = @transform_3, window_bounds = array<i64: 1, 128>}, {transform_indices = @transform_4, window_bounds = array<i64: 128, 128>}, {transform_indices = @transform_5, window_bounds = array<i64: 128, 1>}, {transform_indices = @transform_6, window_bounds = array<i64: 128, 1>}]} {
    %c0 = arith.constant 0 : index
    %c0_0 = arith.constant 0 : index
    %0 = vector.load %arg1[%c0, %c0_0] : memref<128x128xbf16, #tpu.memory_space<vmem>>, vector<128x128xbf16>
    %c0_1 = arith.constant 0 : index
    %c0_2 = arith.constant 0 : index
    %1 = vector.load %arg2[%c0_1, %c0_2] : memref<128x128xbf16, #tpu.memory_space<vmem>>, vector<128x128xbf16>
    %cst = arith.constant dense<0.000000e+00> : vector<128x128xf32>
    %2 = tpu.matmul %0, %1, %cst {dimension_numbers = #tpu.dot_dimension_numbers<[1], [0], [0], [1], [0, 0, 1, 1], [], []>} : vector<128x128xbf16>, vector<128x128xbf16>, vector<128x128xf32> -> vector<128x128xf32>
    %3 = arith.truncf %2 : vector<128x128xf32> to vector<128x128xbf16>
    %c0_3 = arith.constant 0 : index
    %c0_4 = arith.constant 0 : index
    %4 = vector.load %arg5[%c0_3, %c0_4] : memref<128x128xbf16, #tpu.memory_space<vmem>>, vector<128x128xbf16>
    tpu.vector_store %arg5[%c0_3, %c0_4], %3 {strides = array<i32>} : memref<128x128xbf16, #tpu.memory_space<vmem>>, vector<128x128xbf16>,
    %c0_5 = arith.constant 0 : index
    %c0_6 = arith.constant 0 : index
    %5 = vector.load %arg3[%c0_5, %c0_6] : memref<1x128xf32, #tpu.memory_space<vmem>>, vector<1x128xf32>
    %6 = vector.broadcast %5 : vector<1x128xf32> to vector<128x128xf32>
    %7 = arith.mulf %2, %6 : vector<128x128xf32>
    %cst_7 = arith.constant dense<0.000000e+00> : vector<128xf32>
    %8 = vector.multi_reduction <add>, %7, %cst_7 [1] : vector<128x128xf32> to vector<128xf32>
    %9 = vector.shape_cast %8 : vector<128xf32> to vector<128x1xf32>
    %c0_8 = arith.constant 0 : index
    %c0_9 = arith.constant 0 : index
    %10 = vector.load %arg6[%c0_8, %c0_9] : memref<128x1xf32, #tpu.memory_space<vmem>>, vector<128x1xf32>
    tpu.vector_store %arg6[%c0_8, %c0_9], %9 {strides = array<i32>} : memref<128x1xf32, #tpu.memory_space<vmem>>, vector<128x1xf32>,
    %c0_10 = arith.constant 0 : index
    %c0_11 = arith.constant 0 : index
    %11 = vector.load %arg4[%c0_10, %c0_11] : memref<1x128xf32, #tpu.memory_space<vmem>>, vector<1x128xf32>
    %12 = vector.broadcast %11 : vector<1x128xf32> to vector<128x128xf32>
    %13 = arith.mulf %2, %12 : vector<128x128xf32>
    %cst_12 = arith.constant dense<0.000000e+00> : vector<128xf32>
    %14 = vector.multi_reduction <add>, %13, %cst_12 [1] : vector<128x128xf32> to vector<128xf32>
    %15 = vector.shape_cast %14 : vector<128xf32> to vector<128x1xf32>
    %c0_13 = arith.constant 0 : index
    %c0_14 = arith.constant 0 : index
    %16 = vector.load %arg7[%c0_13, %c0_14] : memref<128x1xf32, #tpu.memory_space<vmem>>, vector<128x1xf32>
    tpu.vector_store %arg7[%c0_13, %c0_14], %15 {strides = array<i32>} : memref<128x1xf32, #tpu.memory_space<vmem>>, vector<128x1xf32>,
    return
  }
  func.func @transform_0(%arg0: i32) -> (i32, i32) {
    %c0_i32 = arith.constant 0 : i32
    %c0_i32_0 = arith.constant 0 : i32
    return %arg0, %c0_i32 : i32, i32
  }
  func.func @transform_1(%arg0: i32) -> (i32, i32) {
    %c0_i32 = arith.constant 0 : i32
    %c0_i32_0 = arith.constant 0 : i32
    %c0_i32_1 = arith.constant 0 : i32
    return %c0_i32, %c0_i32_0 : i32, i32
  }
  func.func @transform_2(%arg0: i32) -> (i32, i32) {
    %c0_i32 = arith.constant 0 : i32
    %c0_i32_0 = arith.constant 0 : i32
    %c0_i32_1 = arith.constant 0 : i32
    return %c0_i32, %c0_i32_0 : i32, i32
  }
  func.func @transform_3(%arg0: i32) -> (i32, i32) {
    %c0_i32 = arith.constant 0 : i32
    %c0_i32_0 = arith.constant 0 : i32
    %c0_i32_1 = arith.constant 0 : i32
    return %c0_i32, %c0_i32_0 : i32, i32
  }
  func.func @transform_4(%arg0: i32) -> (i32, i32) {
    %c0_i32 = arith.constant 0 : i32
    %c0_i32_0 = arith.constant 0 : i32
    return %arg0, %c0_i32 : i32, i32
  }
  func.func @transform_5(%arg0: i32) -> (i32, i32) {
    %c0_i32 = arith.constant 0 : i32
    %c0_i32_0 = arith.constant 0 : i32
    return %arg0, %c0_i32 : i32, i32
  }
  func.func @transform_6(%arg0: i32) -> (i32, i32) {
    %c0_i32 = arith.constant 0 : i32
    %c0_i32_0 = arith.constant 0 : i32
    return %arg0, %c0_i32 : i32, i32
  }
}

module attributes {stable_mosaic.version = 11 : i64} {
  func.func @_gat_attention_kernel(%arg0: i32, %arg1: i32, %arg2: memref<1xi32, #tpu.memory_space<smem>>, %arg3: memref<1xi32, #tpu.memory_space<smem>>, %arg4: memref<128x1xf32, #tpu.memory_space<vmem>>, %arg5: memref<1x128xf32, #tpu.memory_space<vmem>>, %arg6: memref<128x128xbf16, #tpu.memory_space<vmem>>, %arg7: memref<128x128xi8, #tpu.memory_space<vmem>>, %arg8: memref<1x128xf32, #tpu.memory_space<vmem>>, %arg9: memref<128x128xbf16, #tpu.memory_space<vmem>>, %arg10: memref<128x1xf32, #tpu.memory_space<vmem>>, %arg11: memref<128x1xf32, #tpu.memory_space<vmem>>, %arg12: memref<128x128xf32, #tpu.memory_space<vmem>>) attributes {dimension_semantics = [#tpu.dimension_semantics<parallel>, #tpu.dimension_semantics<arbitrary>], iteration_bounds = array<i64: 1, 1>, scalar_prefetch = 2 : i64, scratch_operands = 3 : i64, tpu.core_type = #tpu.core_type<tc>, window_params = [{transform_indices = @transform_0, window_bounds = array<i64: 128, 1>}, {transform_indices = @transform_1, window_bounds = array<i64: 1, 128>}, {pipeline_mode = #tpu.pipeline_mode<synchronous>, transform_indices = @transform_2, window_bounds = array<i64: 128, 128>}, {transform_indices = @transform_3, window_bounds = array<i64: 128, 128>}, {pipeline_mode = #tpu.pipeline_mode<synchronous>, transform_indices = @transform_4, window_bounds = array<i64: 1, 128>}, {transform_indices = @transform_5, window_bounds = array<i64: 128, 128>}]} {
    %0 = arith.index_cast %arg0 : i32 to index
    %1 = memref.load %arg3[%0] : memref<1xi32, #tpu.memory_space<smem>>
    %c0_i32 = arith.constant 0 : i32
    %2 = arith.cmpi eq, %arg1, %c0_i32 : i32
    %3 = arith.extui %2 : i1 to i32
    %c0_i32_0 = arith.constant 0 : i32
    %4 = arith.cmpi ne, %3, %c0_i32_0 : i32
    scf.if %4 {
      %cst = arith.constant -1.000000e+30 : f32
      %12 = vector.broadcast %cst : f32 to vector<128x1xf32>
      %c0 = arith.constant 0 : index
      %c0_3 = arith.constant 0 : index
      %13 = vector.load %arg10[%c0, %c0_3] : memref<128x1xf32, #tpu.memory_space<vmem>>, vector<128x1xf32>
      tpu.vector_store %arg10[%c0, %c0_3], %12 {strides = array<i32>} : memref<128x1xf32, #tpu.memory_space<vmem>>, vector<128x1xf32>,
      %cst_4 = arith.constant 0.000000e+00 : f32
      %14 = vector.broadcast %cst_4 : f32 to vector<128x1xf32>
      %c0_5 = arith.constant 0 : index
      %c0_6 = arith.constant 0 : index
      %15 = vector.load %arg11[%c0_5, %c0_6] : memref<128x1xf32, #tpu.memory_space<vmem>>, vector<128x1xf32>
      tpu.vector_store %arg11[%c0_5, %c0_6], %14 {strides = array<i32>} : memref<128x1xf32, #tpu.memory_space<vmem>>, vector<128x1xf32>,
      %cst_7 = arith.constant 0.000000e+00 : f32
      %16 = vector.broadcast %cst_7 : f32 to vector<128x128xf32>
      %c0_8 = arith.constant 0 : index
      %c0_9 = arith.constant 0 : index
      %17 = vector.load %arg12[%c0_8, %c0_9] : memref<128x128xf32, #tpu.memory_space<vmem>>, vector<128x128xf32>
      tpu.vector_store %arg12[%c0_8, %c0_9], %16 {strides = array<i32>} : memref<128x128xf32, #tpu.memory_space<vmem>>, vector<128x128xf32>,
    } else {
    }
    %5 = arith.cmpi slt, %arg1, %1 : i32
    %6 = arith.extui %5 : i1 to i32
    %c0_i32_1 = arith.constant 0 : i32
    %7 = arith.cmpi ne, %6, %c0_i32_1 : i32
    scf.if %7 {
      %c0 = arith.constant 0 : index
      %c0_3 = arith.constant 0 : index
      %12 = vector.load %arg4[%c0, %c0_3] : memref<128x1xf32, #tpu.memory_space<vmem>>, vector<128x1xf32>
      %c0_4 = arith.constant 0 : index
      %c0_5 = arith.constant 0 : index
      %13 = vector.load %arg5[%c0_4, %c0_5] : memref<1x128xf32, #tpu.memory_space<vmem>>, vector<1x128xf32>
      %14 = vector.broadcast %12 : vector<128x1xf32> to vector<128x128xf32>
      %15 = vector.broadcast %13 : vector<1x128xf32> to vector<128x128xf32>
      %16 = arith.addf %14, %15 : vector<128x128xf32>
      %cst = arith.constant 2.000000e-01 : f32
      %17 = vector.broadcast %cst : f32 to vector<128x128xf32>
      %18 = arith.mulf %17, %16 : vector<128x128xf32>
      %19 = arith.maximumf %16, %18 : vector<128x128xf32>
      %c0_6 = arith.constant 0 : index
      %c0_7 = arith.constant 0 : index
      %20 = vector.load %arg10[%c0_6, %c0_7] : memref<128x1xf32, #tpu.memory_space<vmem>>, vector<128x1xf32>
      %cst_8 = arith.constant dense<0xFF800000> : vector<128xf32>
      %21 = vector.multi_reduction <maximumf>, %19, %cst_8 [1] : vector<128x128xf32> to vector<128xf32>
      %22 = vector.shape_cast %21 : vector<128xf32> to vector<128x1xf32>
      %23 = arith.maximumf %20, %22 : vector<128x1xf32>
      %24 = arith.subf %20, %23 : vector<128x1xf32>
      %25 = math.exp %24 : vector<128x1xf32>
      %26 = vector.broadcast %23 : vector<128x1xf32> to vector<128x128xf32>
      %27 = arith.subf %19, %26 : vector<128x128xf32>
      %28 = math.exp %27 : vector<128x128xf32>
      %c0_9 = arith.constant 0 : index
      %c0_10 = arith.constant 0 : index
      %29 = vector.load %arg7[%c0_9, %c0_10] : memref<128x128xi8, #tpu.memory_space<vmem>>, vector<128x128xi8>
      %30 = arith.sitofp %29 : vector<128x128xi8> to vector<128x128xf32>
      %31 = arith.mulf %28, %30 : vector<128x128xf32>
      %c0_11 = arith.constant 0 : index
      %c0_12 = arith.constant 0 : index
      %32 = vector.load %arg11[%c0_11, %c0_12] : memref<128x1xf32, #tpu.memory_space<vmem>>, vector<128x1xf32>
      %33 = arith.mulf %25, %32 : vector<128x1xf32>
      %cst_13 = arith.constant dense<0.000000e+00> : vector<128xf32>
      %34 = vector.multi_reduction <add>, %31, %cst_13 [1] : vector<128x128xf32> to vector<128xf32>
      %35 = vector.shape_cast %34 : vector<128xf32> to vector<128x1xf32>
      %36 = arith.addf %33, %35 : vector<128x1xf32>
      %c0_14 = arith.constant 0 : index
      %c0_15 = arith.constant 0 : index
      %37 = vector.load %arg11[%c0_14, %c0_15] : memref<128x1xf32, #tpu.memory_space<vmem>>, vector<128x1xf32>
      tpu.vector_store %arg11[%c0_14, %c0_15], %36 {strides = array<i32>} : memref<128x1xf32, #tpu.memory_space<vmem>>, vector<128x1xf32>,
      %c1_i32_16 = arith.constant 1 : i32
      %38 = arith.muli %arg0, %c1_i32_16 : i32
      %39 = arith.addi %38, %arg1 : i32
      %40 = arith.index_cast %39 : i32 to index
      %41 = memref.load %arg2[%40] : memref<1xi32, #tpu.memory_space<smem>>
      %c128_i32 = arith.constant 128 : i32
      %42 = arith.muli %41, %c128_i32 : i32
      %43 = tpu.assume_multiple %42, 128 : i32
      %44 = arith.index_cast %43 : i32 to index
      %c0_17 = arith.constant 0 : index
      %45 = vector.load %arg6[%44, %c0_17] : memref<128x128xbf16, #tpu.memory_space<vmem>>, vector<128x128xbf16>
      %c0_18 = arith.constant 0 : index
      %c0_19 = arith.constant 0 : index
      %46 = vector.load %arg12[%c0_18, %c0_19] : memref<128x128xf32, #tpu.memory_space<vmem>>, vector<128x128xf32>
      %47 = vector.broadcast %25 : vector<128x1xf32> to vector<128x128xf32>
      %48 = arith.mulf %47, %46 : vector<128x128xf32>
      %49 = arith.truncf %31 : vector<128x128xf32> to vector<128x128xbf16>
      %cst_20 = arith.constant dense<0.000000e+00> : vector<128x128xf32>
      %50 = tpu.matmul %49, %45, %cst_20 {dimension_numbers = #tpu.dot_dimension_numbers<[1], [0], [0], [1], [0, 0, 1, 1], [], []>} : vector<128x128xbf16>, vector<128x128xbf16>, vector<128x128xf32> -> vector<128x128xf32>
      %51 = arith.addf %48, %50 : vector<128x128xf32>
      %c0_21 = arith.constant 0 : index
      %c0_22 = arith.constant 0 : index
      %52 = vector.load %arg12[%c0_21, %c0_22] : memref<128x128xf32, #tpu.memory_space<vmem>>, vector<128x128xf32>
      tpu.vector_store %arg12[%c0_21, %c0_22], %51 {strides = array<i32>} : memref<128x128xf32, #tpu.memory_space<vmem>>, vector<128x128xf32>,
      %c0_23 = arith.constant 0 : index
      %c0_24 = arith.constant 0 : index
      %53 = vector.load %arg10[%c0_23, %c0_24] : memref<128x1xf32, #tpu.memory_space<vmem>>, vector<128x1xf32>
      tpu.vector_store %arg10[%c0_23, %c0_24], %23 {strides = array<i32>} : memref<128x1xf32, #tpu.memory_space<vmem>>, vector<128x1xf32>,
    } else {
    }
    %c1_i32 = arith.constant 1 : i32
    %8 = arith.subi %1, %c1_i32 : i32
    %9 = arith.cmpi eq, %arg1, %8 : i32
    %10 = arith.extui %9 : i1 to i32
    %c0_i32_2 = arith.constant 0 : i32
    %11 = arith.cmpi ne, %10, %c0_i32_2 : i32
    scf.if %11 {
      %c0 = arith.constant 0 : index
      %c0_3 = arith.constant 0 : index
      %12 = vector.load %arg11[%c0, %c0_3] : memref<128x1xf32, #tpu.memory_space<vmem>>, vector<128x1xf32>
      %13 = tpu.reciprocal %12 {approx = true} : vector<128x1xf32> -> vector<128x1xf32>
      %c0_4 = arith.constant 0 : index
      %c0_5 = arith.constant 0 : index
      %14 = vector.load %arg12[%c0_4, %c0_5] : memref<128x128xf32, #tpu.memory_space<vmem>>, vector<128x128xf32>
      %15 = vector.broadcast %13 : vector<128x1xf32> to vector<128x128xf32>
      %16 = arith.mulf %14, %15 : vector<128x128xf32>
      %c0_6 = arith.constant 0 : index
      %c0_7 = arith.constant 0 : index
      %17 = vector.load %arg8[%c0_6, %c0_7] : memref<1x128xf32, #tpu.memory_space<vmem>>, vector<1x128xf32>
      %18 = vector.broadcast %17 : vector<1x128xf32> to vector<128x128xf32>
      %19 = arith.addf %16, %18 : vector<128x128xf32>
      %cst = arith.constant 0.000000e+00 : f32
      %20 = vector.broadcast %cst : f32 to vector<128x128xf32>
      %21 = arith.cmpf ogt, %19, %20 : vector<128x128xf32>
      %cst_8 = arith.constant 0.000000e+00 : f32
      %22 = vector.broadcast %cst_8 : f32 to vector<128x128xf32>
      %23 = arith.minimumf %19, %22 : vector<128x128xf32>
      %24 = math.exp %23 : vector<128x128xf32>
      %cst_9 = arith.constant 1.000000e+00 : f32
      %25 = vector.broadcast %cst_9 : f32 to vector<128x128xf32>
      %26 = arith.subf %24, %25 : vector<128x128xf32>
      %27 = arith.select %21, %19, %26 : vector<128x128xi1>, vector<128x128xf32>
      %28 = arith.truncf %27 : vector<128x128xf32> to vector<128x128xbf16>
      %c0_10 = arith.constant 0 : index
      %c0_11 = arith.constant 0 : index
      %29 = vector.load %arg9[%c0_10, %c0_11] : memref<128x128xbf16, #tpu.memory_space<vmem>>, vector<128x128xbf16>
      tpu.vector_store %arg9[%c0_10, %c0_11], %28 {strides = array<i32>} : memref<128x128xbf16, #tpu.memory_space<vmem>>, vector<128x128xbf16>,
    } else {
    }
    return
  }
  func.func @transform_0(%arg0: i32, %arg1: i32, %arg2: memref<1xi32, #tpu.memory_space<smem>>, %arg3: memref<1xi32, #tpu.memory_space<smem>>) -> (i32, i32) {
    %c0_i32 = arith.constant 0 : i32
    %c0_i32_0 = arith.constant 0 : i32
    return %arg0, %c0_i32 : i32, i32
  }
  func.func @transform_1(%arg0: i32, %arg1: i32, %arg2: memref<1xi32, #tpu.memory_space<smem>>, %arg3: memref<1xi32, #tpu.memory_space<smem>>) -> (i32, i32) {
    %c1_i32 = arith.constant 1 : i32
    %0 = arith.muli %arg0, %c1_i32 : i32
    %1 = arith.addi %0, %arg1 : i32
    %2 = arith.index_cast %1 : i32 to index
    %3 = memref.load %arg2[%2] : memref<1xi32, #tpu.memory_space<smem>>
    %c0_i32 = arith.constant 0 : i32
    %c0_i32_0 = arith.constant 0 : i32
    return %c0_i32, %3 : i32, i32
  }
  func.func @transform_2(%arg0: i32, %arg1: i32, %arg2: memref<1xi32, #tpu.memory_space<smem>>, %arg3: memref<1xi32, #tpu.memory_space<smem>>) -> (i32, i32) {
    %c0_i32 = arith.constant 0 : i32
    %c0_i32_0 = arith.constant 0 : i32
    %c0_i32_1 = arith.constant 0 : i32
    return %c0_i32, %c0_i32_0 : i32, i32
  }
  func.func @transform_3(%arg0: i32, %arg1: i32, %arg2: memref<1xi32, #tpu.memory_space<smem>>, %arg3: memref<1xi32, #tpu.memory_space<smem>>) -> (i32, i32) {
    %c1_i32 = arith.constant 1 : i32
    %0 = arith.muli %arg0, %c1_i32 : i32
    %1 = arith.addi %0, %arg1 : i32
    %2 = arith.index_cast %1 : i32 to index
    %3 = memref.load %arg2[%2] : memref<1xi32, #tpu.memory_space<smem>>
    %c0_i32 = arith.constant 0 : i32
    return %arg0, %3 : i32, i32
  }
  func.func @transform_4(%arg0: i32, %arg1: i32, %arg2: memref<1xi32, #tpu.memory_space<smem>>, %arg3: memref<1xi32, #tpu.memory_space<smem>>) -> (i32, i32) {
    %c0_i32 = arith.constant 0 : i32
    %c0_i32_0 = arith.constant 0 : i32
    %c0_i32_1 = arith.constant 0 : i32
    return %c0_i32, %c0_i32_0 : i32, i32
  }
  func.func @transform_5(%arg0: i32, %arg1: i32, %arg2: memref<1xi32, #tpu.memory_space<smem>>, %arg3: memref<1xi32, #tpu.memory_space<smem>>) -> (i32, i32) {
    %c0_i32 = arith.constant 0 : i32
    %c0_i32_0 = arith.constant 0 : i32
    return %arg0, %c0_i32 : i32, i32
  }
}

module attributes {stable_mosaic.version = 11 : i64} {
  func.func @_gat_attention_kernel(%arg0: i32, %arg1: i32, %arg2: memref<1xi32, #tpu.memory_space<smem>>, %arg3: memref<1xi32, #tpu.memory_space<smem>>, %arg4: memref<128x1xf32, #tpu.memory_space<vmem>>, %arg5: memref<1x128xf32, #tpu.memory_space<vmem>>, %arg6: memref<128x128xbf16, #tpu.memory_space<vmem>>, %arg7: memref<128x128xi8, #tpu.memory_space<vmem>>, %arg8: memref<1x128xf32, #tpu.memory_space<vmem>>, %arg9: memref<128x128xf32, #tpu.memory_space<vmem>>, %arg10: memref<128x1xf32, #tpu.memory_space<vmem>>, %arg11: memref<128x1xf32, #tpu.memory_space<vmem>>, %arg12: memref<128x128xf32, #tpu.memory_space<vmem>>) attributes {dimension_semantics = [#tpu.dimension_semantics<parallel>, #tpu.dimension_semantics<arbitrary>], iteration_bounds = array<i64: 1, 1>, scalar_prefetch = 2 : i64, scratch_operands = 3 : i64, tpu.core_type = #tpu.core_type<tc>, window_params = [{transform_indices = @transform_0, window_bounds = array<i64: 128, 1>}, {transform_indices = @transform_1, window_bounds = array<i64: 1, 128>}, {pipeline_mode = #tpu.pipeline_mode<synchronous>, transform_indices = @transform_2, window_bounds = array<i64: 128, 128>}, {transform_indices = @transform_3, window_bounds = array<i64: 128, 128>}, {pipeline_mode = #tpu.pipeline_mode<synchronous>, transform_indices = @transform_4, window_bounds = array<i64: 1, 128>}, {transform_indices = @transform_5, window_bounds = array<i64: 128, 128>}]} {
    %0 = arith.index_cast %arg0 : i32 to index
    %1 = memref.load %arg3[%0] : memref<1xi32, #tpu.memory_space<smem>>
    %c0_i32 = arith.constant 0 : i32
    %2 = arith.cmpi eq, %arg1, %c0_i32 : i32
    %3 = arith.extui %2 : i1 to i32
    %c0_i32_0 = arith.constant 0 : i32
    %4 = arith.cmpi ne, %3, %c0_i32_0 : i32
    scf.if %4 {
      %cst = arith.constant -1.000000e+30 : f32
      %12 = vector.broadcast %cst : f32 to vector<128x1xf32>
      %c0 = arith.constant 0 : index
      %c0_3 = arith.constant 0 : index
      %13 = vector.load %arg10[%c0, %c0_3] : memref<128x1xf32, #tpu.memory_space<vmem>>, vector<128x1xf32>
      tpu.vector_store %arg10[%c0, %c0_3], %12 {strides = array<i32>} : memref<128x1xf32, #tpu.memory_space<vmem>>, vector<128x1xf32>,
      %cst_4 = arith.constant 0.000000e+00 : f32
      %14 = vector.broadcast %cst_4 : f32 to vector<128x1xf32>
      %c0_5 = arith.constant 0 : index
      %c0_6 = arith.constant 0 : index
      %15 = vector.load %arg11[%c0_5, %c0_6] : memref<128x1xf32, #tpu.memory_space<vmem>>, vector<128x1xf32>
      tpu.vector_store %arg11[%c0_5, %c0_6], %14 {strides = array<i32>} : memref<128x1xf32, #tpu.memory_space<vmem>>, vector<128x1xf32>,
      %cst_7 = arith.constant 0.000000e+00 : f32
      %16 = vector.broadcast %cst_7 : f32 to vector<128x128xf32>
      %c0_8 = arith.constant 0 : index
      %c0_9 = arith.constant 0 : index
      %17 = vector.load %arg12[%c0_8, %c0_9] : memref<128x128xf32, #tpu.memory_space<vmem>>, vector<128x128xf32>
      tpu.vector_store %arg12[%c0_8, %c0_9], %16 {strides = array<i32>} : memref<128x128xf32, #tpu.memory_space<vmem>>, vector<128x128xf32>,
    } else {
    }
    %5 = arith.cmpi slt, %arg1, %1 : i32
    %6 = arith.extui %5 : i1 to i32
    %c0_i32_1 = arith.constant 0 : i32
    %7 = arith.cmpi ne, %6, %c0_i32_1 : i32
    scf.if %7 {
      %c0 = arith.constant 0 : index
      %c0_3 = arith.constant 0 : index
      %12 = vector.load %arg4[%c0, %c0_3] : memref<128x1xf32, #tpu.memory_space<vmem>>, vector<128x1xf32>
      %c0_4 = arith.constant 0 : index
      %c0_5 = arith.constant 0 : index
      %13 = vector.load %arg5[%c0_4, %c0_5] : memref<1x128xf32, #tpu.memory_space<vmem>>, vector<1x128xf32>
      %14 = vector.broadcast %12 : vector<128x1xf32> to vector<128x128xf32>
      %15 = vector.broadcast %13 : vector<1x128xf32> to vector<128x128xf32>
      %16 = arith.addf %14, %15 : vector<128x128xf32>
      %cst = arith.constant 2.000000e-01 : f32
      %17 = vector.broadcast %cst : f32 to vector<128x128xf32>
      %18 = arith.mulf %17, %16 : vector<128x128xf32>
      %19 = arith.maximumf %16, %18 : vector<128x128xf32>
      %c0_6 = arith.constant 0 : index
      %c0_7 = arith.constant 0 : index
      %20 = vector.load %arg10[%c0_6, %c0_7] : memref<128x1xf32, #tpu.memory_space<vmem>>, vector<128x1xf32>
      %cst_8 = arith.constant dense<0xFF800000> : vector<128xf32>
      %21 = vector.multi_reduction <maximumf>, %19, %cst_8 [1] : vector<128x128xf32> to vector<128xf32>
      %22 = vector.shape_cast %21 : vector<128xf32> to vector<128x1xf32>
      %23 = arith.maximumf %20, %22 : vector<128x1xf32>
      %24 = arith.subf %20, %23 : vector<128x1xf32>
      %25 = math.exp %24 : vector<128x1xf32>
      %26 = vector.broadcast %23 : vector<128x1xf32> to vector<128x128xf32>
      %27 = arith.subf %19, %26 : vector<128x128xf32>
      %28 = math.exp %27 : vector<128x128xf32>
      %c0_9 = arith.constant 0 : index
      %c0_10 = arith.constant 0 : index
      %29 = vector.load %arg7[%c0_9, %c0_10] : memref<128x128xi8, #tpu.memory_space<vmem>>, vector<128x128xi8>
      %30 = arith.sitofp %29 : vector<128x128xi8> to vector<128x128xf32>
      %31 = arith.mulf %28, %30 : vector<128x128xf32>
      %c0_11 = arith.constant 0 : index
      %c0_12 = arith.constant 0 : index
      %32 = vector.load %arg11[%c0_11, %c0_12] : memref<128x1xf32, #tpu.memory_space<vmem>>, vector<128x1xf32>
      %33 = arith.mulf %25, %32 : vector<128x1xf32>
      %cst_13 = arith.constant dense<0.000000e+00> : vector<128xf32>
      %34 = vector.multi_reduction <add>, %31, %cst_13 [1] : vector<128x128xf32> to vector<128xf32>
      %35 = vector.shape_cast %34 : vector<128xf32> to vector<128x1xf32>
      %36 = arith.addf %33, %35 : vector<128x1xf32>
      %c0_14 = arith.constant 0 : index
      %c0_15 = arith.constant 0 : index
      %37 = vector.load %arg11[%c0_14, %c0_15] : memref<128x1xf32, #tpu.memory_space<vmem>>, vector<128x1xf32>
      tpu.vector_store %arg11[%c0_14, %c0_15], %36 {strides = array<i32>} : memref<128x1xf32, #tpu.memory_space<vmem>>, vector<128x1xf32>,
      %c1_i32_16 = arith.constant 1 : i32
      %38 = arith.muli %arg0, %c1_i32_16 : i32
      %39 = arith.addi %38, %arg1 : i32
      %40 = arith.index_cast %39 : i32 to index
      %41 = memref.load %arg2[%40] : memref<1xi32, #tpu.memory_space<smem>>
      %c128_i32 = arith.constant 128 : i32
      %42 = arith.muli %41, %c128_i32 : i32
      %43 = tpu.assume_multiple %42, 128 : i32
      %44 = arith.index_cast %43 : i32 to index
      %c0_17 = arith.constant 0 : index
      %45 = vector.load %arg6[%44, %c0_17] : memref<128x128xbf16, #tpu.memory_space<vmem>>, vector<128x128xbf16>
      %c0_18 = arith.constant 0 : index
      %c0_19 = arith.constant 0 : index
      %46 = vector.load %arg12[%c0_18, %c0_19] : memref<128x128xf32, #tpu.memory_space<vmem>>, vector<128x128xf32>
      %47 = vector.broadcast %25 : vector<128x1xf32> to vector<128x128xf32>
      %48 = arith.mulf %47, %46 : vector<128x128xf32>
      %49 = arith.truncf %31 : vector<128x128xf32> to vector<128x128xbf16>
      %cst_20 = arith.constant dense<0.000000e+00> : vector<128x128xf32>
      %50 = tpu.matmul %49, %45, %cst_20 {dimension_numbers = #tpu.dot_dimension_numbers<[1], [0], [0], [1], [0, 0, 1, 1], [], []>} : vector<128x128xbf16>, vector<128x128xbf16>, vector<128x128xf32> -> vector<128x128xf32>
      %51 = arith.addf %48, %50 : vector<128x128xf32>
      %c0_21 = arith.constant 0 : index
      %c0_22 = arith.constant 0 : index
      %52 = vector.load %arg12[%c0_21, %c0_22] : memref<128x128xf32, #tpu.memory_space<vmem>>, vector<128x128xf32>
      tpu.vector_store %arg12[%c0_21, %c0_22], %51 {strides = array<i32>} : memref<128x128xf32, #tpu.memory_space<vmem>>, vector<128x128xf32>,
      %c0_23 = arith.constant 0 : index
      %c0_24 = arith.constant 0 : index
      %53 = vector.load %arg10[%c0_23, %c0_24] : memref<128x1xf32, #tpu.memory_space<vmem>>, vector<128x1xf32>
      tpu.vector_store %arg10[%c0_23, %c0_24], %23 {strides = array<i32>} : memref<128x1xf32, #tpu.memory_space<vmem>>, vector<128x1xf32>,
    } else {
    }
    %c1_i32 = arith.constant 1 : i32
    %8 = arith.subi %1, %c1_i32 : i32
    %9 = arith.cmpi eq, %arg1, %8 : i32
    %10 = arith.extui %9 : i1 to i32
    %c0_i32_2 = arith.constant 0 : i32
    %11 = arith.cmpi ne, %10, %c0_i32_2 : i32
    scf.if %11 {
      %c0 = arith.constant 0 : index
      %c0_3 = arith.constant 0 : index
      %12 = vector.load %arg11[%c0, %c0_3] : memref<128x1xf32, #tpu.memory_space<vmem>>, vector<128x1xf32>
      %13 = tpu.reciprocal %12 {approx = true} : vector<128x1xf32> -> vector<128x1xf32>
      %c0_4 = arith.constant 0 : index
      %c0_5 = arith.constant 0 : index
      %14 = vector.load %arg12[%c0_4, %c0_5] : memref<128x128xf32, #tpu.memory_space<vmem>>, vector<128x128xf32>
      %15 = vector.broadcast %13 : vector<128x1xf32> to vector<128x128xf32>
      %16 = arith.mulf %14, %15 : vector<128x128xf32>
      %c0_6 = arith.constant 0 : index
      %c0_7 = arith.constant 0 : index
      %17 = vector.load %arg8[%c0_6, %c0_7] : memref<1x128xf32, #tpu.memory_space<vmem>>, vector<1x128xf32>
      %18 = vector.broadcast %17 : vector<1x128xf32> to vector<128x128xf32>
      %19 = arith.addf %16, %18 : vector<128x128xf32>
      %c0_8 = arith.constant 0 : index
      %c0_9 = arith.constant 0 : index
      %20 = vector.load %arg9[%c0_8, %c0_9] : memref<128x128xf32, #tpu.memory_space<vmem>>, vector<128x128xf32>
      tpu.vector_store %arg9[%c0_8, %c0_9], %19 {strides = array<i32>} : memref<128x128xf32, #tpu.memory_space<vmem>>, vector<128x128xf32>,
    } else {
    }
    return
  }
  func.func @transform_0(%arg0: i32, %arg1: i32, %arg2: memref<1xi32, #tpu.memory_space<smem>>, %arg3: memref<1xi32, #tpu.memory_space<smem>>) -> (i32, i32) {
    %c0_i32 = arith.constant 0 : i32
    %c0_i32_0 = arith.constant 0 : i32
    return %arg0, %c0_i32 : i32, i32
  }
  func.func @transform_1(%arg0: i32, %arg1: i32, %arg2: memref<1xi32, #tpu.memory_space<smem>>, %arg3: memref<1xi32, #tpu.memory_space<smem>>) -> (i32, i32) {
    %c1_i32 = arith.constant 1 : i32
    %0 = arith.muli %arg0, %c1_i32 : i32
    %1 = arith.addi %0, %arg1 : i32
    %2 = arith.index_cast %1 : i32 to index
    %3 = memref.load %arg2[%2] : memref<1xi32, #tpu.memory_space<smem>>
    %c0_i32 = arith.constant 0 : i32
    %c0_i32_0 = arith.constant 0 : i32
    return %c0_i32, %3 : i32, i32
  }
  func.func @transform_2(%arg0: i32, %arg1: i32, %arg2: memref<1xi32, #tpu.memory_space<smem>>, %arg3: memref<1xi32, #tpu.memory_space<smem>>) -> (i32, i32) {
    %c0_i32 = arith.constant 0 : i32
    %c0_i32_0 = arith.constant 0 : i32
    %c0_i32_1 = arith.constant 0 : i32
    return %c0_i32, %c0_i32_0 : i32, i32
  }
  func.func @transform_3(%arg0: i32, %arg1: i32, %arg2: memref<1xi32, #tpu.memory_space<smem>>, %arg3: memref<1xi32, #tpu.memory_space<smem>>) -> (i32, i32) {
    %c1_i32 = arith.constant 1 : i32
    %0 = arith.muli %arg0, %c1_i32 : i32
    %1 = arith.addi %0, %arg1 : i32
    %2 = arith.index_cast %1 : i32 to index
    %3 = memref.load %arg2[%2] : memref<1xi32, #tpu.memory_space<smem>>
    %c0_i32 = arith.constant 0 : i32
    return %arg0, %3 : i32, i32
  }
  func.func @transform_4(%arg0: i32, %arg1: i32, %arg2: memref<1xi32, #tpu.memory_space<smem>>, %arg3: memref<1xi32, #tpu.memory_space<smem>>) -> (i32, i32) {
    %c0_i32 = arith.constant 0 : i32
    %c0_i32_0 = arith.constant 0 : i32
    %c0_i32_1 = arith.constant 0 : i32
    return %c0_i32, %c0_i32_0 : i32, i32
  }
  func.func @transform_5(%arg0: i32, %arg1: i32, %arg2: memref<1xi32, #tpu.memory_space<smem>>, %arg3: memref<1xi32, #tpu.memory_space<smem>>) -> (i32, i32) {
    %c0_i32 = arith.constant 0 : i32
    %c0_i32_0 = arith.constant 0 : i32
    return %arg0, %c0_i32 : i32, i32
  }
}

</mosaic_0001>

<llo_original>
// kernel: gat_forward.4
$region0: #{gat_forward.4}
  #allocation0 [shape = 'u32[]', space=smem, size = 0x4, offset = 0x4, fixed_abs, tag = 'smem constant byte address 0x4 - core index']
  #allocation1 [shape = 'u32[144,128]{1,0:T(1,128)}', space=vmem, size = 0x12000, scoped, tag = 'internal scratch']
  %s0 = inlined_call_operand.vmem [shape: bf16[128,128], index: 0, kind: input, shape index: {}]
  %s1 = inlined_call_operand.vmem [shape: bf16[128,128], index: 1, kind: input, shape index: {}]
  %s2 = inlined_call_operand.vmem [shape: f32[1,128], index: 2, kind: input, shape index: {}]
  %s3 = inlined_call_operand.vmem [shape: f32[1,128], index: 3, kind: input, shape index: {}]
  %s4 = inlined_call_operand.vmem [shape: bf16[128,128], index: 4, kind: output, shape index: {0}]
  %s5 = inlined_call_operand.vmem [shape: f32[128,1], index: 5, kind: output, shape index: {1}]
  %s6 = inlined_call_operand.vmem [shape: f32[128,1], index: 6, kind: output, shape index: {2}]
  %7 = xla_tuple %s4, %s5, %s6
  %s8 = sld [smem:[#allocation0]]
  $region42: #{gat_forward.4} parent=0
    _
  %s10 = ssub.s32 1, %s8
  %s11 = scalar_select 0, %s10, %s8
  // Predicated region
  $region2: #{gat_forward.4} parent=0 // pred_check
    _
  $region3: #{gat_forward.4} parent=0 // pred_check_branch
    %13 = sbr.rel (0) target = $region5
  $region4: #{gat_forward.4} parent=0 // pred_region
    _
  $region5: #{gat_forward.4} parent=0 // pred_fallthru
    _
  // Predicated region
  $region6: #{gat_forward.4} parent=0 // pred_check
    _
  $region7: #{gat_forward.4} parent=0 // pred_check_branch
    %15 = sbr.rel (0) target = $region9
  $region8: #{gat_forward.4} parent=0 // pred_region
    _
  $region9: #{gat_forward.4} parent=0 // pred_fallthru
    _
  // Predicated region
  $region10: #{gat_forward.4} parent=0 // pred_check
    _
  $region11: #{gat_forward.4} parent=0 // pred_check_branch
    %17 = sbr.rel (0) target = $region13
  $region12: #{gat_forward.4} parent=0 // pred_region
    _
  $region13: #{gat_forward.4} parent=0 // pred_fallthru
    _
  // Predicated region
  $region14: #{gat_forward.4} parent=0 // pred_check
    _
  $region15: #{gat_forward.4} parent=0 // pred_check_branch
    %19 = sbr.rel (0) target = $region17
  $region16: #{gat_forward.4} parent=0 // pred_region
    _
  $region17: #{gat_forward.4} parent=0 // pred_fallthru
    _
  %v21 = vld [vmem:[%s0] sm:$0xf]
  %v22 = vld [vmem:[%s0 + $0x4] sm:$0xf]
  %v23 = vld [vmem:[%s0 + $0x8] sm:$0xf]
  %v24 = vld [vmem:[%s0 + $0xc] sm:$0xf]
  %v25 = vld [vmem:[%s0 + $0x10] sm:$0xf]
  %v26 = vld [vmem:[%s0 + $0x14] sm:$0xf]
  %v27 = vld [vmem:[%s0 + $0x18] sm:$0xf]
  %v28 = vld [vmem:[%s0 + $0x1c] sm:$0xf]
  %v29 = vld [vmem:[%s0 + $0x20] sm:$0xf]
  %v30 = vld [vmem:[%s0 + $0x24] sm:$0xf]
  %v31 = vld [vmem:[%s0 + $0x28] sm:$0xf]
  %v32 = vld [vmem:[%s0 + $0x2c] sm:$0xf]
  %v33 = vld [vmem:[%s0 + $0x30] sm:$0xf]
  %v34 = vld [vmem:[%s0 + $0x34] sm:$0xf]
  %v35 = vld [vmem:[%s0 + $0x38] sm:$0xf]
  %v36 = vld [vmem:[%s0 + $0x3c] sm:$0xf]
  %v37 = vld [vmem:[%s1] sm:$0xf]
  %v38 = vld [vmem:[%s1 + $0x4] sm:$0xf]
  %v39 = vld [vmem:[%s1 + $0x8] sm:$0xf]
  %v40 = vld [vmem:[%s1 + $0xc] sm:$0xf]
  %v41 = vld [vmem:[%s1 + $0x10] sm:$0xf]
  %v42 = vld [vmem:[%s1 + $0x14] sm:$0xf]
  %v43 = vld [vmem:[%s1 + $0x18] sm:$0xf]
  %v44 = vld [vmem:[%s1 + $0x1c] sm:$0xf]
  %v45 = vld [vmem:[%s1 + $0x20] sm:$0xf]
  %v46 = vld [vmem:[%s1 + $0x24] sm:$0xf]
  %v47 = vld [vmem:[%s1 + $0x28] sm:$0xf]
  %v48 = vld [vmem:[%s1 + $0x2c] sm:$0xf]
  %v49 = vld [vmem:[%s1 + $0x30] sm:$0xf]
  %v50 = vld [vmem:[%s1 + $0x34] sm:$0xf]
  %v51 = vld [vmem:[%s1 + $0x38] sm:$0xf]
  %v52 = vld [vmem:[%s1 + $0x3c] sm:$0xf]
  %v69 = vunpack.c.l.b16 %v21
  %v70 = vunpack.c.l.b16 %v22
  %v71 = vunpack.c.l.b16 %v23
  %v72 = vunpack.c.l.b16 %v24
  %v73 = vunpack.c.l.b16 %v25
  %v74 = vunpack.c.l.b16 %v26
  %v75 = vunpack.c.l.b16 %v27
  %v76 = vunpack.c.l.b16 %v28
  %v77 = vunpack.c.l.b16 %v29
  %v78 = vunpack.c.l.b16 %v30
  %v79 = vunpack.c.l.b16 %v31
  %v80 = vunpack.c.l.b16 %v32
  %v81 = vunpack.c.l.b16 %v33
  %v82 = vunpack.c.l.b16 %v34
  %v83 = vunpack.c.l.b16 %v35
  %v84 = vunpack.c.l.b16 %v36
  %v85 = vpack.c.b16 %v70, %v69
  %v86 = vpack.c.b16 %v72, %v71
  %v87 = vpack.c.b16 %v74, %v73
  %v88 = vpack.c.b16 %v76, %v75
  %v89 = vpack.c.b16 %v78, %v77
  %v90 = vpack.c.b16 %v80, %v79
  %v91 = vpack.c.b16 %v82, %v81
  %v92 = vpack.c.b16 %v84, %v83
  %v117 = vunpack.c.l.b16 %v37
  %v118 = vunpack.c.l.b16 %v38
  %v119 = vunpack.c.l.b16 %v39
  %v120 = vunpack.c.l.b16 %v40
  %v121 = vunpack.c.l.b16 %v41
  %v122 = vunpack.c.l.b16 %v42
  %v123 = vunpack.c.l.b16 %v43
  %v124 = vunpack.c.l.b16 %v44
  %v125 = vunpack.c.l.b16 %v45
  %v126 = vunpack.c.l.b16 %v46
  %v127 = vunpack.c.l.b16 %v47
  %v128 = vunpack.c.l.b16 %v48
  %v129 = vunpack.c.l.b16 %v49
  %v130 = vunpack.c.l.b16 %v50
  %v131 = vunpack.c.l.b16 %v51
  %v132 = vunpack.c.l.b16 %v52
  %v133 = vpack.c.b16 %v118, %v117
  %v134 = vpack.c.b16 %v120, %v119
  %v135 = vpack.c.b16 %v122, %v121
  %v136 = vpack.c.b16 %v124, %v123
  %v137 = vpack.c.b16 %v126, %v125
  %v138 = vpack.c.b16 %v128, %v127
  %v139 = vpack.c.b16 %v130, %v129
  %v140 = vpack.c.b16 %v132, %v131
  %149 = vmatprep.subr.bf16.mxu0 0
  %150 = vmatpush1.bf16.msra.mxu0 %v133
  %151 = vmatprep.subr.bf16.mxu0 0
  %152 = vmatpush1.bf16.msra.mxu0 %v134
  %153 = vmatprep.subr.bf16.mxu0 0
  %154 = vmatpush1.bf16.msra.mxu0 %v135
  %155 = vmatprep.subr.bf16.mxu0 0
  %156 = vmatpush1.bf16.msra.mxu0 %v136
  %157 = vmatprep.subr.bf16.mxu0 0
  %158 = vmatpush1.bf16.msra.mxu0 %v137
  %159 = vmatprep.subr.bf16.mxu0 0
  %160 = vmatpush1.bf16.msra.mxu0 %v138
  %161 = vmatprep.subr.bf16.mxu0 0
  %162 = vmatpush1.bf16.msra.mxu0 %v139
  %163 = vmatprep.subr.bf16.mxu0 0
  %164 = vmatpush1.bf16.msra.mxu0 %v140
  %165 = vmatprep.subr.bf16.mxu0 0
  %166 = vmatpush1.bf16.msra.mxu0 0
  %167 = vmatprep.subr.bf16.mxu0 0
  %168 = vmatpush1.bf16.msra.mxu0 0
  %169 = vmatprep.subr.bf16.mxu0 0
  %170 = vmatpush1.bf16.msra.mxu0 0
  %171 = vmatprep.subr.bf16.mxu0 0
  %172 = vmatpush1.bf16.msra.mxu0 0
  %173 = vmatprep.subr.bf16.mxu0 0
  %174 = vmatpush1.bf16.msra.mxu0 0
  %175 = vmatprep.subr.bf16.mxu0 0
  %176 = vmatpush1.bf16.msra.mxu0 0
  %177 = vmatprep.subr.bf16.mxu0 0
  %178 = vmatpush1.bf16.msra.mxu0 0
  %179 = vmatprep.subr.bf16.mxu0 0
  %180 = vmatpush1.bf16.msra.mxu0 0
  %181 = vmatprep.mubr.bf16.mxu0 0
  %182 = vmatmul.mubr.bf16.gmra.mrb[0].mxu0 %v85
  %v183 = vpop.f32.mrb[0].mxu0
  %v184 = vadd.f32 0.0, %v183
  %v185 = vpop.f32.mrb[0].mxu0
  %v186 = vpop.f32.mrb[0].mxu0
  %v187 = vadd.f32 0.0, %v186
  %v188 = vpop.f32.mrb[0].mxu0
  %189 = vmatprep.mubr.bf16.mxu0 0
  %190 = vmatmul.mubr.bf16.gmra.mrb[0].mxu0 %v86
  %v191 = vpop.f32.mrb[0].mxu0
  %v192 = vadd.f32 0.0, %v191
  %v193 = vpop.f32.mrb[0].mxu0
  %v194 = vpop.f32.mrb[0].mxu0
  %v195 = vadd.f32 0.0, %v194
  %v196 = vpop.f32.mrb[0].mxu0
  %197 = vmatprep.mubr.bf16.mxu0 0
  %198 = vmatmul.mubr.bf16.gmra.mrb[0].mxu0 %v87
  %v199 = vpop.f32.mrb[0].mxu0
  %v200 = vadd.f32 0.0, %v199
  %v201 = vpop.f32.mrb[0].mxu0
  %v202 = vpop.f32.mrb[0].mxu0
  %v203 = vadd.f32 0.0, %v202
  %v204 = vpop.f32.mrb[0].mxu0
  %205 = vmatprep.mubr.bf16.mxu0 0
  %206 = vmatmul.mubr.bf16.gmra.mrb[0].mxu0 %v88
  %v207 = vpop.f32.mrb[0].mxu0
  %v208 = vadd.f32 0.0, %v207
  %v209 = vpop.f32.mrb[0].mxu0
  %v210 = vpop.f32.mrb[0].mxu0
  %v211 = vadd.f32 0.0, %v210
  %v212 = vpop.f32.mrb[0].mxu0
  %213 = vmatprep.mubr.bf16.mxu0 0
  %214 = vmatmul.mubr.bf16.gmra.mrb[0].mxu0 %v89
  %v215 = vpop.f32.mrb[0].mxu0
  %v216 = vadd.f32 0.0, %v215
  %v217 = vpop.f32.mrb[0].mxu0
  %v218 = vpop.f32.mrb[0].mxu0
  %v219 = vadd.f32 0.0, %v218
  %v220 = vpop.f32.mrb[0].mxu0
  %221 = vmatprep.mubr.bf16.mxu0 0
  %222 = vmatmul.mubr.bf16.gmra.mrb[0].mxu0 %v90
  %v223 = vpop.f32.mrb[0].mxu0
  %v224 = vadd.f32 0.0, %v223
  %v225 = vpop.f32.mrb[0].mxu0
  %v226 = vpop.f32.mrb[0].mxu0
  %v227 = vadd.f32 0.0, %v226
  %v228 = vpop.f32.mrb[0].mxu0
  %229 = vmatprep.mubr.bf16.mxu0 0
  %230 = vmatmul.mubr.bf16.gmra.mrb[0].mxu0 %v91
  %v231 = vpop.f32.mrb[0].mxu0
  %v232 = vadd.f32 0.0, %v231
  %v233 = vpop.f32.mrb[0].mxu0
  %v234 = vpop.f32.mrb[0].mxu0
  %v235 = vadd.f32 0.0, %v234
  %v236 = vpop.f32.mrb[0].mxu0
  %237 = vmatprep.mubr.bf16.mxu0 0
  %238 = vmatmul.mubr.bf16.gmra.mrb[0].mxu0 %v92
  %v239 = vpop.f32.mrb[0].mxu0
  %v240 = vadd.f32 0.0, %v239
  %v241 = vpop.f32.mrb[0].mxu0
  %v242 = vpop.f32.mrb[0].mxu0
  %v243 = vadd.f32 0.0, %v242
  %v244 = vpop.f32.mrb[0].mxu0
  %245 = vdwg.mxu0
  %v246 = vpack.c.bf16 %v187, %v184
  %v247 = vpack.c.bf16 %v195, %v192
  %v248 = vpack.c.bf16 %v203, %v200
  %v249 = vpack.c.bf16 %v211, %v208
  %v250 = vpack.c.bf16 %v219, %v216
  %v251 = vpack.c.bf16 %v227, %v224
  %v252 = vpack.c.bf16 %v235, %v232
  %v253 = vpack.c.bf16 %v243, %v240
  %v262 = vunpack.c.l.b16 %v246
  %v263 = vunpack.c.h.b16 %v246
  %v264 = vunpack.c.l.b16 %v247
  %v265 = vunpack.c.h.b16 %v247
  %v266 = vunpack.c.l.b16 %v248
  %v267 = vunpack.c.h.b16 %v248
  %v268 = vunpack.c.l.b16 %v249
  %v269 = vunpack.c.h.b16 %v249
  %v270 = vunpack.c.l.b16 %v250
  %v271 = vunpack.c.h.b16 %v250
  %v272 = vunpack.c.l.b16 %v251
  %v273 = vunpack.c.h.b16 %v251
  %v274 = vunpack.c.l.b16 %v252
  %v275 = vunpack.c.h.b16 %v252
  %v276 = vunpack.c.l.b16 %v253
  %v277 = vunpack.c.h.b16 %v253
  %v278 = vpack.c.b16 %v262, %v262
  %v279 = vpack.c.b16 %v263, %v263
  %v280 = vpack.c.b16 %v264, %v264
  %v281 = vpack.c.b16 %v265, %v265
  %v282 = vpack.c.b16 %v266, %v266
  %v283 = vpack.c.b16 %v267, %v267
  %v284 = vpack.c.b16 %v268, %v268
  %v285 = vpack.c.b16 %v269, %v269
  %v286 = vpack.c.b16 %v270, %v270
  %v287 = vpack.c.b16 %v271, %v271
  %v288 = vpack.c.b16 %v272, %v272
  %v289 = vpack.c.b16 %v273, %v273
  %v290 = vpack.c.b16 %v274, %v274
  %v291 = vpack.c.b16 %v275, %v275
  %v292 = vpack.c.b16 %v276, %v276
  %v293 = vpack.c.b16 %v277, %v277
  %310 = vst [vmem:[%s4] sm:$0xf] %v278
  %311 = vst [vmem:[%s4 + $0x4] sm:$0xf] %v279
  %312 = vst [vmem:[%s4 + $0x8] sm:$0xf] %v280
  %313 = vst [vmem:[%s4 + $0xc] sm:$0xf] %v281
  %314 = vst [vmem:[%s4 + $0x10] sm:$0xf] %v282
  %315 = vst [vmem:[%s4 + $0x14] sm:$0xf] %v283
  %316 = vst [vmem:[%s4 + $0x18] sm:$0xf] %v284
  %317 = vst [vmem:[%s4 + $0x1c] sm:$0xf] %v285
  %318 = vst [vmem:[%s4 + $0x20] sm:$0xf] %v286
  %319 = vst [vmem:[%s4 + $0x24] sm:$0xf] %v287
  %320 = vst [vmem:[%s4 + $0x28] sm:$0xf] %v288
  %321 = vst [vmem:[%s4 + $0x2c] sm:$0xf] %v289
  %322 = vst [vmem:[%s4 + $0x30] sm:$0xf] %v290
  %323 = vst [vmem:[%s4 + $0x34] sm:$0xf] %v291
  %324 = vst [vmem:[%s4 + $0x38] sm:$0xf] %v292
  %325 = vst [vmem:[%s4 + $0x3c] sm:$0xf] %v293
  %v326 = vld [vmem:[%s2] sm:$0x1]
  %v328 = vlaneseq
  %v329 = vshrl.u32 %v328, 7
  %v330 = vsub.s32 0, %v329
  %v331 = vrot.slane %v326, %v330
  %v333 = vmul.f32 %v184, %v331
  %v334 = vmul.f32 %v187, %v331
  %v335 = vmul.f32 %v192, %v331
  %v336 = vmul.f32 %v195, %v331
  %v337 = vmul.f32 %v200, %v331
  %v338 = vmul.f32 %v203, %v331
  %v339 = vmul.f32 %v208, %v331
  %v340 = vmul.f32 %v211, %v331
  %v341 = vmul.f32 %v216, %v331
  %v342 = vmul.f32 %v219, %v331
  %v343 = vmul.f32 %v224, %v331
  %v344 = vmul.f32 %v227, %v331
  %v345 = vmul.f32 %v232, %v331
  %v346 = vmul.f32 %v235, %v331
  %v347 = vmul.f32 %v240, %v331
  %v348 = vmul.f32 %v243, %v331
  %349 = vadd.xlane.f32.xlu0 %v333
  %v350 = vpop.xlane.xlu0 %349
  %351 = vadd.xlane.f32.xlu0 %v334
  %v352 = vpop.xlane.xlu0 %351
  %353 = vadd.xlane.f32.xlu0 %v335
  %v354 = vpop.xlane.xlu0 %353
  %355 = vadd.xlane.f32.xlu0 %v336
  %v356 = vpop.xlane.xlu0 %355
  %357 = vadd.xlane.f32.xlu0 %v337
  %v358 = vpop.xlane.xlu0 %357
  %359 = vadd.xlane.f32.xlu0 %v338
  %v360 = vpop.xlane.xlu0 %359
  %361 = vadd.xlane.f32.xlu0 %v339
  %v362 = vpop.xlane.xlu0 %361
  %363 = vadd.xlane.f32.xlu0 %v340
  %v364 = vpop.xlane.xlu0 %363
  %365 = vadd.xlane.f32.xlu0 %v341
  %v366 = vpop.xlane.xlu0 %365
  %367 = vadd.xlane.f32.xlu0 %v342
  %v368 = vpop.xlane.xlu0 %367
  %369 = vadd.xlane.f32.xlu0 %v343
  %v370 = vpop.xlane.xlu0 %369
  %371 = vadd.xlane.f32.xlu0 %v344
  %v372 = vpop.xlane.xlu0 %371
  %373 = vadd.xlane.f32.xlu0 %v345
  %v374 = vpop.xlane.xlu0 %373
  %375 = vadd.xlane.f32.xlu0 %v346
  %v376 = vpop.xlane.xlu0 %375
  %377 = vadd.xlane.f32.xlu0 %v347
  %v378 = vpop.xlane.xlu0 %377
  %379 = vadd.xlane.f32.xlu0 %v348
  %v380 = vpop.xlane.xlu0 %379
  %vm381 = vcmask 7168
  %382 = vst.msk [vmem:[%s5] sm:$0xff] %vm381, %v350
  %383 = vst.msk [vmem:[%s5 + $0x8] sm:$0xff] %vm381, %v352
  %384 = vst.msk [vmem:[%s5 + $0x10] sm:$0xff] %vm381, %v354
  %385 = vst.msk [vmem:[%s5 + $0x18] sm:$0xff] %vm381, %v356
  %386 = vst.msk [vmem:[%s5 + $0x20] sm:$0xff] %vm381, %v358
  %387 = vst.msk [vmem:[%s5 + $0x28] sm:$0xff] %vm381, %v360
  %388 = vst.msk [vmem:[%s5 + $0x30] sm:$0xff] %vm381, %v362
  %389 = vst.msk [vmem:[%s5 + $0x38] sm:$0xff] %vm381, %v364
  %390 = vst.msk [vmem:[%s5 + $0x40] sm:$0xff] %vm381, %v366
  %391 = vst.msk [vmem:[%s5 + $0x48] sm:$0xff] %vm381, %v368
  %392 = vst.msk [vmem:[%s5 + $0x50] sm:$0xff] %vm381, %v370
  %393 = vst.msk [vmem:[%s5 + $0x58] sm:$0xff] %vm381, %v372
  %394 = vst.msk [vmem:[%s5 + $0x60] sm:$0xff] %vm381, %v374
  %395 = vst.msk [vmem:[%s5 + $0x68] sm:$0xff] %vm381, %v376
  %396 = vst.msk [vmem:[%s5 + $0x70] sm:$0xff] %vm381, %v378
  %397 = vst.msk [vmem:[%s5 + $0x78] sm:$0xff] %vm381, %v380
  %v398 = vld [vmem:[%s3] sm:$0x1]
  %v400 = vlaneseq
  %v401 = vshrl.u32 %v400, 7
  %v402 = vsub.s32 0, %v401
  %v403 = vrot.slane %v398, %v402
  %v405 = vmul.f32 %v184, %v403
  %v406 = vmul.f32 %v187, %v403
  %v407 = vmul.f32 %v192, %v403
  %v408 = vmul.f32 %v195, %v403
  %v409 = vmul.f32 %v200, %v403
  %v410 = vmul.f32 %v203, %v403
  %v411 = vmul.f32 %v208, %v403
  %v412 = vmul.f32 %v211, %v403
  %v413 = vmul.f32 %v216, %v403
  %v414 = vmul.f32 %v219, %v403
  %v415 = vmul.f32 %v224, %v403
  %v416 = vmul.f32 %v227, %v403
  %v417 = vmul.f32 %v232, %v403
  %v418 = vmul.f32 %v235, %v403
  %v419 = vmul.f32 %v240, %v403
  %v420 = vmul.f32 %v243, %v403
  %421 = vadd.xlane.f32.xlu0 %v405
  %v422 = vpop.xlane.xlu0 %421
  %423 = vadd.xlane.f32.xlu0 %v406
  %v424 = vpop.xlane.xlu0 %423
  %425 = vadd.xlane.f32.xlu0 %v407
  %v426 = vpop.xlane.xlu0 %425
  %427 = vadd.xlane.f32.xlu0 %v408
  %v428 = vpop.xlane.xlu0 %427
  %429 = vadd.xlane.f32.xlu0 %v409
  %v430 = vpop.xlane.xlu0 %429
  %431 = vadd.xlane.f32.xlu0 %v410
  %v432 = vpop.xlane.xlu0 %431
  %433 = vadd.xlane.f32.xlu0 %v411
  %v434 = vpop.xlane.xlu0 %433
  %435 = vadd.xlane.f32.xlu0 %v412
  %v436 = vpop.xlane.xlu0 %435
  %437 = vadd.xlane.f32.xlu0 %v413
  %v438 = vpop.xlane.xlu0 %437
  %439 = vadd.xlane.f32.xlu0 %v414
  %v440 = vpop.xlane.xlu0 %439
  %441 = vadd.xlane.f32.xlu0 %v415
  %v442 = vpop.xlane.xlu0 %441
  %443 = vadd.xlane.f32.xlu0 %v416
  %v444 = vpop.xlane.xlu0 %443
  %445 = vadd.xlane.f32.xlu0 %v417
  %v446 = vpop.xlane.xlu0 %445
  %447 = vadd.xlane.f32.xlu0 %v418
  %v448 = vpop.xlane.xlu0 %447
  %449 = vadd.xlane.f32.xlu0 %v419
  %v450 = vpop.xlane.xlu0 %449
  %451 = vadd.xlane.f32.xlu0 %v420
  %v452 = vpop.xlane.xlu0 %451
  %453 = vst.msk [vmem:[%s6] sm:$0xff] %vm381, %v422
  %454 = vst.msk [vmem:[%s6 + $0x8] sm:$0xff] %vm381, %v424
  %455 = vst.msk [vmem:[%s6 + $0x10] sm:$0xff] %vm381, %v426
  %456 = vst.msk [vmem:[%s6 + $0x18] sm:$0xff] %vm381, %v428
  %457 = vst.msk [vmem:[%s6 + $0x20] sm:$0xff] %vm381, %v430
  %458 = vst.msk [vmem:[%s6 + $0x28] sm:$0xff] %vm381, %v432
  %459 = vst.msk [vmem:[%s6 + $0x30] sm:$0xff] %vm381, %v434
  %460 = vst.msk [vmem:[%s6 + $0x38] sm:$0xff] %vm381, %v436
  %461 = vst.msk [vmem:[%s6 + $0x40] sm:$0xff] %vm381, %v438
  %462 = vst.msk [vmem:[%s6 + $0x48] sm:$0xff] %vm381, %v440
  %463 = vst.msk [vmem:[%s6 + $0x50] sm:$0xff] %vm381, %v442
  %464 = vst.msk [vmem:[%s6 + $0x58] sm:$0xff] %vm381, %v444
  %465 = vst.msk [vmem:[%s6 + $0x60] sm:$0xff] %vm381, %v446
  %466 = vst.msk [vmem:[%s6 + $0x68] sm:$0xff] %vm381, %v448
  %467 = vst.msk [vmem:[%s6 + $0x70] sm:$0xff] %vm381, %v450
  %468 = vst.msk [vmem:[%s6 + $0x78] sm:$0xff] %vm381, %v452
  // Predicated region
  $region18: #{gat_forward.4} parent=0 // pred_check
    _
  $region19: #{gat_forward.4} parent=0 // pred_check_branch
    %470 = sbr.rel (0) target = $region21
  $region20: #{gat_forward.4} parent=0 // pred_region
    _
  $region21: #{gat_forward.4} parent=0 // pred_fallthru
    _
  // Predicated region
  $region22: #{gat_forward.4} parent=0 // pred_check
    _
  $region23: #{gat_forward.4} parent=0 // pred_check_branch
    %472 = sbr.rel (0) target = $region25
  $region24: #{gat_forward.4} parent=0 // pred_region
    _
  $region25: #{gat_forward.4} parent=0 // pred_fallthru
    _
  // Predicated region
  $region26: #{gat_forward.4} parent=0 // pred_check
    _
  $region27: #{gat_forward.4} parent=0 // pred_check_branch
    %474 = sbr.rel (0) target = $region29
  $region28: #{gat_forward.4} parent=0 // pred_region
    _
  $region29: #{gat_forward.4} parent=0 // pred_fallthru
    _
  // Predicated region
  $region30: #{gat_forward.4} parent=0 // pred_check
    _
  $region31: #{gat_forward.4} parent=0 // pred_check_branch
    %476 = sbr.rel (0) target = $region33
  $region32: #{gat_forward.4} parent=0 // pred_region
    _
  $region33: #{gat_forward.4} parent=0 // pred_fallthru
    _
  // Predicated region
  $region34: #{gat_forward.4} parent=0 // pred_check
    _
  $region35: #{gat_forward.4} parent=0 // pred_check_branch
    %478 = sbr.rel (0) target = $region37
  $region36: #{gat_forward.4} parent=0 // pred_region
    _
  $region37: #{gat_forward.4} parent=0 // pred_fallthru
    _
  // Predicated region
  $region38: #{gat_forward.4} parent=0 // pred_check
    _
  $region39: #{gat_forward.4} parent=0 // pred_check_branch
    %480 = sbr.rel (0) target = $region41
  $region40: #{gat_forward.4} parent=0 // pred_region
    _
  $region41: #{gat_forward.4} parent=0 // pred_fallthru
    _

// kernel: gat_forward.5
$region0: #{gat_forward.5}
  #allocation0 [shape = 'u32[]', space=smem, size = 0x4, offset = 0x4, fixed_abs, tag = 'smem constant byte address 0x4 - core index']
  #allocation1 [shape = 'u32[144,128]{1,0:T(1,128)}', space=vmem, size = 0x12000, scoped, tag = 'internal scratch']
  #allocation2 [shape = 'f32[128,1]{1,0:T(8,128)}', space=vmem, size = 0x10000, scoped, tag = 'scratch operand']
  #allocation3 [shape = 'f32[128,1]{1,0:T(8,128)}', space=vmem, size = 0x10000, scoped, tag = 'scratch operand']
  #allocation4 [shape = 'f32[128,128]{1,0:T(8,128)}', space=vmem, size = 0x10000, scoped, tag = 'scratch operand']
  #allocation5 [shape = 's32[1]{0}', space=sflag, size = 0x4, scoped, tag = 'scoped memory for gat_forward.5']
  #allocation6 [shape = 's32[1]{0:T(128)S(6)}', space=smem, size = 0x200, scoped, tag = 'prefetched SMEM operand 0']
  #allocation7 [shape = 's32[1]{0:T(128)S(6)}', space=smem, size = 0x200, scoped, tag = 'prefetched SMEM operand 1']
  %s0 = inlined_call_operand.<no memory space> [shape: s32[1], index: 0, kind: input, shape index: {}]
  %s1 = inlined_call_operand.<no memory space> [shape: s32[1], index: 1, kind: input, shape index: {}]
  %s2 = inlined_call_operand.vmem [shape: f32[128,1], index: 2, kind: input, shape index: {}]
  %s3 = inlined_call_operand.vmem [shape: f32[1,128], index: 3, kind: input, shape index: {}]
  %s4 = inlined_call_operand.vmem [shape: bf16[128,128], index: 4, kind: input, shape index: {}]
  %s5 = inlined_call_operand.vmem [shape: s8[128,128], index: 5, kind: input, shape index: {}]
  %s6 = inlined_call_operand.vmem [shape: f32[1,128], index: 6, kind: input, shape index: {}]
  %s7 = inlined_call_operand.vmem [shape: bf16[128,128], index: 7, kind: output, shape index: {}]
  %s8 = sld [smem:[#allocation0]]
  $region42: #{gat_forward.5} parent=0
    _
  %s10 = ssub.s32 1, %s8
  %s11 = scalar_select 0, %s10, %s8
  %12 = sst [smem:[#allocation6]] %s0
  %13 = sst [smem:[#allocation7]] %s1
  // Predicated region
  $region2: #{gat_forward.5} parent=0 // pred_check
    _
  $region3: #{gat_forward.5} parent=0 // pred_check_branch
    %15 = sbr.rel (0) target = $region5
  $region4: #{gat_forward.5} parent=0 // pred_region
    _
  $region5: #{gat_forward.5} parent=0 // pred_fallthru
    _
  // Predicated region
  $region6: #{gat_forward.5} parent=0 // pred_check
    _
  $region7: #{gat_forward.5} parent=0 // pred_check_branch
    %17 = sbr.rel (0) target = $region9
  $region8: #{gat_forward.5} parent=0 // pred_region
    %s18 = sadd.s32 0, 0
    %s19 = sld [smem:[#allocation6 + %s18]]
    %p20 = scmp.lt.s32.totalorder %s19, 0
    %s21 = scalar_select %p20, %s19, 0
    %s22 = scalar_lea.vmem %s3, %s21
    %s23 = sadd.s32 0, 0
    %s24 = sld [smem:[#allocation6 + %s23]]
  $region9: #{gat_forward.5} parent=0 // pred_fallthru
    _
  // Predicated region
  $region10: #{gat_forward.5} parent=0 // pred_check
    _
  $region11: #{gat_forward.5} parent=0 // pred_check_branch
    %26 = sbr.rel (0) target = $region13
  $region12: #{gat_forward.5} parent=0 // pred_region
    _
  $region13: #{gat_forward.5} parent=0 // pred_fallthru
    _
  // Predicated region
  $region14: #{gat_forward.5} parent=0 // pred_check
    _
  $region15: #{gat_forward.5} parent=0 // pred_check_branch
    %28 = sbr.rel (0) target = $region17
  $region16: #{gat_forward.5} parent=0 // pred_region
    %s29 = sadd.s32 0, 0
    %s30 = sld [smem:[#allocation6 + %s29]]
    %p31 = scmp.lt.s32.totalorder %s30, 0
    %s32 = scalar_select %p31, %s30, 0
    %s33 = smul.addr %s32, 2
    %s34 = scalar_lea.vmem %s5, %s33
    %s35 = sadd.s32 0, 0
    %s36 = sld [smem:[#allocation6 + %s35]]
  $region17: #{gat_forward.5} parent=0 // pred_fallthru
    _
  // Predicated region
  $region18: #{gat_forward.5} parent=0 // pred_check
    _
  $region19: #{gat_forward.5} parent=0 // pred_check_branch
    %38 = sbr.rel (0) target = $region21
  $region20: #{gat_forward.5} parent=0 // pred_region
    _
  $region21: #{gat_forward.5} parent=0 // pred_fallthru
    _
  %s39 = sadd.s32 0, 0
  %s40 = sld [smem:[#allocation6 + %s39]]
  %p41 = scmp.lt.s32.totalorder %s40, 0
  %s42 = scalar_select %p41, %s40, 0
  %s43 = scalar_lea.vmem %s3, %s42
  %s44 = sadd.s32 0, 0
  %s45 = sld [smem:[#allocation6 + %s44]]
  %p46 = scmp.lt.s32.totalorder %s45, 0
  %s47 = scalar_select %p46, %s45, 0
  %s48 = smul.addr %s47, 2
  %s49 = scalar_lea.vmem %s5, %s48
  %s50 = sadd.s32 0, 0
  %s51 = sld [smem:[#allocation6 + %s50]]
  %p52 = scmp.lt.s32.totalorder %s51, 0
  %s53 = scalar_select %p52, %s51, 0
  %s54 = scalar_lea.vmem %s3, %s53
  %s55 = sadd.s32 0, 0
  %s56 = sld [smem:[#allocation6 + %s55]]
  %s57 = sadd.s32 0, 0
  %s58 = sld [smem:[#allocation6 + %s57]]
  %p59 = scmp.lt.s32.totalorder %s58, 0
  %s60 = scalar_select %p59, %s58, 0
  %s61 = smul.addr %s60, 2
  %s62 = scalar_lea.vmem %s5, %s61
  %s63 = sadd.s32 0, 0
  %s64 = sld [smem:[#allocation6 + %s63]]
  %s66 = sld [smem:[#allocation7]]
  %p67 = scmp.eq.s32.totalorder 0, 0
  // Predicated region
  $region22: #{gat_forward.5} parent=0 // pred_check
    %p68 = pneg %p67
  $region23: #{gat_forward.5} parent=0 // pred_check_branch
    %70 = sbr.rel (%p68) target = $region25
  $region24: #{gat_forward.5} parent=0 // pred_region
    %vm71 = vcmask 7168
    %72 = vst.msk [vmem:[#allocation2] sm:$0xff] %vm71, -1e+30
    %73 = vst.msk [vmem:[#allocation2 + $0x8] sm:$0xff] %vm71, -1e+30
    %74 = vst.msk [vmem:[#allocation2 + $0x10] sm:$0xff] %vm71, -1e+30
    %75 = vst.msk [vmem:[#allocation2 + $0x18] sm:$0xff] %vm71, -1e+30
    %76 = vst.msk [vmem:[#allocation2 + $0x20] sm:$0xff] %vm71, -1e+30
    %77 = vst.msk [vmem:[#allocation2 + $0x28] sm:$0xff] %vm71, -1e+30
    %78 = vst.msk [vmem:[#allocation2 + $0x30] sm:$0xff] %vm71, -1e+30
    %79 = vst.msk [vmem:[#allocation2 + $0x38] sm:$0xff] %vm71, -1e+30
    %80 = vst.msk [vmem:[#allocation2 + $0x40] sm:$0xff] %vm71, -1e+30
    %81 = vst.msk [vmem:[#allocation2 + $0x48] sm:$0xff] %vm71, -1e+30
    %82 = vst.msk [vmem:[#allocation2 + $0x50] sm:$0xff] %vm71, -1e+30
    %83 = vst.msk [vmem:[#allocation2 + $0x58] sm:$0xff] %vm71, -1e+30
    %84 = vst.msk [vmem:[#allocation2 + $0x60] sm:$0xff] %vm71, -1e+30
    %85 = vst.msk [vmem:[#allocation2 + $0x68] sm:$0xff] %vm71, -1e+30
    %86 = vst.msk [vmem:[#allocation2 + $0x70] sm:$0xff] %vm71, -1e+30
    %87 = vst.msk [vmem:[#allocation2 + $0x78] sm:$0xff] %vm71, -1e+30
    %88 = vst.msk [vmem:[#allocation3] sm:$0xff] %vm71, 0.0
    %89 = vst.msk [vmem:[#allocation3 + $0x8] sm:$0xff] %vm71, 0.0
    %90 = vst.msk [vmem:[#allocation3 + $0x10] sm:$0xff] %vm71, 0.0
    %91 = vst.msk [vmem:[#allocation3 + $0x18] sm:$0xff] %vm71, 0.0
    %92 = vst.msk [vmem:[#allocation3 + $0x20] sm:$0xff] %vm71, 0.0
    %93 = vst.msk [vmem:[#allocation3 + $0x28] sm:$0xff] %vm71, 0.0
    %94 = vst.msk [vmem:[#allocation3 + $0x30] sm:$0xff] %vm71, 0.0
    %95 = vst.msk [vmem:[#allocation3 + $0x38] sm:$0xff] %vm71, 0.0
    %96 = vst.msk [vmem:[#allocation3 + $0x40] sm:$0xff] %vm71, 0.0
    %97 = vst.msk [vmem:[#allocation3 + $0x48] sm:$0xff] %vm71, 0.0
    %98 = vst.msk [vmem:[#allocation3 + $0x50] sm:$0xff] %vm71, 0.0
    %99 = vst.msk [vmem:[#allocation3 + $0x58] sm:$0xff] %vm71, 0.0
    %100 = vst.msk [vmem:[#allocation3 + $0x60] sm:$0xff] %vm71, 0.0
    %101 = vst.msk [vmem:[#allocation3 + $0x68] sm:$0xff] %vm71, 0.0
    %102 = vst.msk [vmem:[#allocation3 + $0x70] sm:$0xff] %vm71, 0.0
    %103 = vst.msk [vmem:[#allocation3 + $0x78] sm:$0xff] %vm71, 0.0
    %104 = vst [vmem:[#allocation4] sm:$0xff] 0.0
    %105 = vst [vmem:[#allocation4 + $0x8] sm:$0xff] 0.0
    %106 = vst [vmem:[#allocation4 + $0x10] sm:$0xff] 0.0
    %107 = vst [vmem:[#allocation4 + $0x18] sm:$0xff] 0.0
    %108 = vst [vmem:[#allocation4 + $0x20] sm:$0xff] 0.0
    %109 = vst [vmem:[#allocation4 + $0x28] sm:$0xff] 0.0
    %110 = vst [vmem:[#allocation4 + $0x30] sm:$0xff] 0.0
    %111 = vst [vmem:[#allocation4 + $0x38] sm:$0xff] 0.0
    %112 = vst [vmem:[#allocation4 + $0x40] sm:$0xff] 0.0
    %113 = vst [vmem:[#allocation4 + $0x48] sm:$0xff] 0.0
    %114 = vst [vmem:[#allocation4 + $0x50] sm:$0xff] 0.0
    %115 = vst [vmem:[#allocation4 + $0x58] sm:$0xff] 0.0
    %116 = vst [vmem:[#allocation4 + $0x60] sm:$0xff] 0.0
    %117 = vst [vmem:[#allocation4 + $0x68] sm:$0xff] 0.0
    %118 = vst [vmem:[#allocation4 + $0x70] sm:$0xff] 0.0
    %119 = vst [vmem:[#allocation4 + $0x78] sm:$0xff] 0.0
  $region25: #{gat_forward.5} parent=0 // pred_fallthru
    _
  %p120 = scmp.lt.s32.totalorder 0, %s66
  // Predicated region
  $region26: #{gat_forward.5} parent=0 // pred_check
    %p121 = pneg %p120
  $region27: #{gat_forward.5} parent=0 // pred_check_branch
    %123 = sbr.rel (%p121) target = $region29
  $region28: #{gat_forward.5} parent=0 // pred_region
    %v124 = vld [vmem:[%s2] sm:$0xff]
    %v125 = vld [vmem:[%s2 + $0x8] sm:$0xff]
    %v126 = vld [vmem:[%s2 + $0x10] sm:$0xff]
    %v127 = vld [vmem:[%s2 + $0x18] sm:$0xff]
    %v128 = vld [vmem:[%s2 + $0x20] sm:$0xff]
    %v129 = vld [vmem:[%s2 + $0x28] sm:$0xff]
    %v130 = vld [vmem:[%s2 + $0x30] sm:$0xff]
    %v131 = vld [vmem:[%s2 + $0x38] sm:$0xff]
    %v132 = vld [vmem:[%s2 + $0x40] sm:$0xff]
    %v133 = vld [vmem:[%s2 + $0x48] sm:$0xff]
    %v134 = vld [vmem:[%s2 + $0x50] sm:$0xff]
    %v135 = vld [vmem:[%s2 + $0x58] sm:$0xff]
    %v136 = vld [vmem:[%s2 + $0x60] sm:$0xff]
    %v137 = vld [vmem:[%s2 + $0x68] sm:$0xff]
    %v138 = vld [vmem:[%s2 + $0x70] sm:$0xff]
    %v139 = vld [vmem:[%s2 + $0x78] sm:$0xff]
    %v140 = vld [vmem:[%s54] sm:$0x1]
    %142 = vset.pattern.permute.xlu0 0
    %143 = vperm.xlu0 %142, %v124
    %v144 = vpop.permute.xlu0 %143
    %147 = vset.pattern.permute.xlu0 0
    %148 = vperm.xlu0 %147, %v125
    %v149 = vpop.permute.xlu0 %148
    %152 = vset.pattern.permute.xlu0 0
    %153 = vperm.xlu0 %152, %v126
    %v154 = vpop.permute.xlu0 %153
    %157 = vset.pattern.permute.xlu0 0
    %158 = vperm.xlu0 %157, %v127
    %v159 = vpop.permute.xlu0 %158
    %162 = vset.pattern.permute.xlu0 0
    %163 = vperm.xlu0 %162, %v128
    %v164 = vpop.permute.xlu0 %163
    %167 = vset.pattern.permute.xlu0 0
    %168 = vperm.xlu0 %167, %v129
    %v169 = vpop.permute.xlu0 %168
    %172 = vset.pattern.permute.xlu0 0
    %173 = vperm.xlu0 %172, %v130
    %v174 = vpop.permute.xlu0 %173
    %177 = vset.pattern.permute.xlu0 0
    %178 = vperm.xlu0 %177, %v131
    %v179 = vpop.permute.xlu0 %178
    %182 = vset.pattern.permute.xlu0 0
    %183 = vperm.xlu0 %182, %v132
    %v184 = vpop.permute.xlu0 %183
    %187 = vset.pattern.permute.xlu0 0
    %188 = vperm.xlu0 %187, %v133
    %v189 = vpop.permute.xlu0 %188
    %192 = vset.pattern.permute.xlu0 0
    %193 = vperm.xlu0 %192, %v134
    %v194 = vpop.permute.xlu0 %193
    %197 = vset.pattern.permute.xlu0 0
    %198 = vperm.xlu0 %197, %v135
    %v199 = vpop.permute.xlu0 %198
    %202 = vset.pattern.permute.xlu0 0
    %203 = vperm.xlu0 %202, %v136
    %v204 = vpop.permute.xlu0 %203
    %207 = vset.pattern.permute.xlu0 0
    %208 = vperm.xlu0 %207, %v137
    %v209 = vpop.permute.xlu0 %208
    %212 = vset.pattern.permute.xlu0 0
    %213 = vperm.xlu0 %212, %v138
    %v214 = vpop.permute.xlu0 %213
    %217 = vset.pattern.permute.xlu0 0
    %218 = vperm.xlu0 %217, %v139
    %v219 = vpop.permute.xlu0 %218
    %v222 = vlaneseq
    %v223 = vshrl.u32 %v222, 7
    %v224 = vsub.s32 0, %v223
    %v225 = vrot.slane %v140, %v224
    %v227 = vadd.f32 %v144, %v225
    %v228 = vadd.f32 %v149, %v225
    %v229 = vadd.f32 %v154, %v225
    %v230 = vadd.f32 %v159, %v225
    %v231 = vadd.f32 %v164, %v225
    %v232 = vadd.f32 %v169, %v225
    %v233 = vadd.f32 %v174, %v225
    %v234 = vadd.f32 %v179, %v225
    %v235 = vadd.f32 %v184, %v225
    %v236 = vadd.f32 %v189, %v225
    %v237 = vadd.f32 %v194, %v225
    %v238 = vadd.f32 %v199, %v225
    %v239 = vadd.f32 %v204, %v225
    %v240 = vadd.f32 %v209, %v225
    %v241 = vadd.f32 %v214, %v225
    %v242 = vadd.f32 %v219, %v225
    %v243 = vmul.f32 %v227, 0.2
    %v244 = vmul.f32 %v228, 0.2
    %v245 = vmul.f32 %v229, 0.2
    %v246 = vmul.f32 %v230, 0.2
    %v247 = vmul.f32 %v231, 0.2
    %v248 = vmul.f32 %v232, 0.2
    %v249 = vmul.f32 %v233, 0.2
    %v250 = vmul.f32 %v234, 0.2
    %v251 = vmul.f32 %v235, 0.2
    %v252 = vmul.f32 %v236, 0.2
    %v253 = vmul.f32 %v237, 0.2
    %v254 = vmul.f32 %v238, 0.2
    %v255 = vmul.f32 %v239, 0.2
    %v256 = vmul.f32 %v240, 0.2
    %v257 = vmul.f32 %v241, 0.2
    %v258 = vmul.f32 %v242, 0.2
    %v259 = vmax.f32 %v227, %v243
    %v260 = vmax.f32 %v228, %v244
    %v261 = vmax.f32 %v229, %v245
    %v262 = vmax.f32 %v230, %v246
    %v263 = vmax.f32 %v231, %v247
    %v264 = vmax.f32 %v232, %v248
    %v265 = vmax.f32 %v233, %v249
    %v266 = vmax.f32 %v234, %v250
    %v267 = vmax.f32 %v235, %v251
    %v268 = vmax.f32 %v236, %v252
    %v269 = vmax.f32 %v237, %v253
    %v270 = vmax.f32 %v238, %v254
    %v271 = vmax.f32 %v239, %v255
    %v272 = vmax.f32 %v240, %v256
    %v273 = vmax.f32 %v241, %v257
    %v274 = vmax.f32 %v242, %v258
    %v275 = vld [vmem:[#allocation2] sm:$0xff]
    %v276 = vld [vmem:[#allocation2 + $0x8] sm:$0xff]
    %v277 = vld [vmem:[#allocation2 + $0x10] sm:$0xff]
    %v278 = vld [vmem:[#allocation2 + $0x18] sm:$0xff]
    %v279 = vld [vmem:[#allocation2 + $0x20] sm:$0xff]
    %v280 = vld [vmem:[#allocation2 + $0x28] sm:$0xff]
    %v281 = vld [vmem:[#allocation2 + $0x30] sm:$0xff]
    %v282 = vld [vmem:[#allocation2 + $0x38] sm:$0xff]
    %v283 = vld [vmem:[#allocation2 + $0x40] sm:$0xff]
    %v284 = vld [vmem:[#allocation2 + $0x48] sm:$0xff]
    %v285 = vld [vmem:[#allocation2 + $0x50] sm:$0xff]
    %v286 = vld [vmem:[#allocation2 + $0x58] sm:$0xff]
    %v287 = vld [vmem:[#allocation2 + $0x60] sm:$0xff]
    %v288 = vld [vmem:[#allocation2 + $0x68] sm:$0xff]
    %v289 = vld [vmem:[#allocation2 + $0x70] sm:$0xff]
    %v290 = vld [vmem:[#allocation2 + $0x78] sm:$0xff]
    %291 = vmax.xlane.f32.xlu0 %v259
    %v292 = vpop.xlane.xlu0 %291
    %293 = vmax.xlane.f32.xlu0 %v260
    %v294 = vpop.xlane.xlu0 %293
    %295 = vmax.xlane.f32.xlu0 %v261
    %v296 = vpop.xlane.xlu0 %295
    %297 = vmax.xlane.f32.xlu0 %v262
    %v298 = vpop.xlane.xlu0 %297
    %299 = vmax.xlane.f32.xlu0 %v263
    %v300 = vpop.xlane.xlu0 %299
    %301 = vmax.xlane.f32.xlu0 %v264
    %v302 = vpop.xlane.xlu0 %301
    %303 = vmax.xlane.f32.xlu0 %v265
    %v304 = vpop.xlane.xlu0 %303
    %305 = vmax.xlane.f32.xlu0 %v266
    %v306 = vpop.xlane.xlu0 %305
    %307 = vmax.xlane.f32.xlu0 %v267
    %v308 = vpop.xlane.xlu0 %307
    %309 = vmax.xlane.f32.xlu0 %v268
    %v310 = vpop.xlane.xlu0 %309
    %311 = vmax.xlane.f32.xlu0 %v269
    %v312 = vpop.xlane.xlu0 %311
    %313 = vmax.xlane.f32.xlu0 %v270
    %v314 = vpop.xlane.xlu0 %313
    %315 = vmax.xlane.f32.xlu0 %v271
    %v316 = vpop.xlane.xlu0 %315
    %317 = vmax.xlane.f32.xlu0 %v272
    %v318 = vpop.xlane.xlu0 %317
    %319 = vmax.xlane.f32.xlu0 %v273
    %v320 = vpop.xlane.xlu0 %319
    %321 = vmax.xlane.f32.xlu0 %v274
    %v322 = vpop.xlane.xlu0 %321
    %v323 = vmax.f32 %v275, %v292
    %v324 = vmax.f32 %v276, %v294
    %v325 = vmax.f32 %v277, %v296
    %v326 = vmax.f32 %v278, %v298
    %v327 = vmax.f32 %v279, %v300
    %v328 = vmax.f32 %v280, %v302
    %v329 = vmax.f32 %v281, %v304
    %v330 = vmax.f32 %v282, %v306
    %v331 = vmax.f32 %v283, %v308
    %v332 = vmax.f32 %v284, %v310
    %v333 = vmax.f32 %v285, %v312
    %v334 = vmax.f32 %v286, %v314
    %v335 = vmax.f32 %v287, %v316
    %v336 = vmax.f32 %v288, %v318
    %v337 = vmax.f32 %v289, %v320
    %v338 = vmax.f32 %v290, %v322
    %v339 = vsub.f32 %v275, %v323
    %v340 = vsub.f32 %v276, %v324
    %v341 = vsub.f32 %v277, %v325
    %v342 = vsub.f32 %v278, %v326
    %v343 = vsub.f32 %v279, %v327
    %v344 = vsub.f32 %v280, %v328
    %v345 = vsub.f32 %v281, %v329
    %v346 = vsub.f32 %v282, %v330
    %v347 = vsub.f32 %v283, %v331
    %v348 = vsub.f32 %v284, %v332
    %v349 = vsub.f32 %v285, %v333
    %v350 = vsub.f32 %v286, %v334
    %v351 = vsub.f32 %v287, %v335
    %v352 = vsub.f32 %v288, %v336
    %v353 = vsub.f32 %v289, %v337
    %v354 = vsub.f32 %v290, %v338
    %v355 = vmul.f32 %v339, 1.442695
    %v356 = vpow.pop %v355
    %v357 = vmul.f32 %v340, 1.442695
    %v358 = vpow.pop %v357
    %v359 = vmul.f32 %v341, 1.442695
    %v360 = vpow.pop %v359
    %v361 = vmul.f32 %v342, 1.442695
    %v362 = vpow.pop %v361
    %v363 = vmul.f32 %v343, 1.442695
    %v364 = vpow.pop %v363
    %v365 = vmul.f32 %v344, 1.442695
    %v366 = vpow.pop %v365
    %v367 = vmul.f32 %v345, 1.442695
    %v368 = vpow.pop %v367
    %v369 = vmul.f32 %v346, 1.442695
    %v370 = vpow.pop %v369
    %v371 = vmul.f32 %v347, 1.442695
    %v372 = vpow.pop %v371
    %v373 = vmul.f32 %v348, 1.442695
    %v374 = vpow.pop %v373
    %v375 = vmul.f32 %v349, 1.442695
    %v376 = vpow.pop %v375
    %v377 = vmul.f32 %v350, 1.442695
    %v378 = vpow.pop %v377
    %v379 = vmul.f32 %v351, 1.442695
    %v380 = vpow.pop %v379
    %v381 = vmul.f32 %v352, 1.442695
    %v382 = vpow.pop %v381
    %v383 = vmul.f32 %v353, 1.442695
    %v384 = vpow.pop %v383
    %v385 = vmul.f32 %v354, 1.442695
    %v386 = vpow.pop %v385
    %388 = vset.pattern.permute.xlu0 0
    %389 = vperm.xlu0 %388, %v323
    %v390 = vpop.permute.xlu0 %389
    %393 = vset.pattern.permute.xlu0 0
    %394 = vperm.xlu0 %393, %v324
    %v395 = vpop.permute.xlu0 %394
    %398 = vset.pattern.permute.xlu0 0
    %399 = vperm.xlu0 %398, %v325
    %v400 = vpop.permute.xlu0 %399
    %403 = vset.pattern.permute.xlu0 0
    %404 = vperm.xlu0 %403, %v326
    %v405 = vpop.permute.xlu0 %404
    %408 = vset.pattern.permute.xlu0 0
    %409 = vperm.xlu0 %408, %v327
    %v410 = vpop.permute.xlu0 %409
    %413 = vset.pattern.permute.xlu0 0
    %414 = vperm.xlu0 %413, %v328
    %v415 = vpop.permute.xlu0 %414
    %418 = vset.pattern.permute.xlu0 0
    %419 = vperm.xlu0 %418, %v329
    %v420 = vpop.permute.xlu0 %419
    %423 = vset.pattern.permute.xlu0 0
    %424 = vperm.xlu0 %423, %v330
    %v425 = vpop.permute.xlu0 %424
    %428 = vset.pattern.permute.xlu0 0
    %429 = vperm.xlu0 %428, %v331
    %v430 = vpop.permute.xlu0 %429
    %433 = vset.pattern.permute.xlu0 0
    %434 = vperm.xlu0 %433, %v332
    %v435 = vpop.permute.xlu0 %434
    %438 = vset.pattern.permute.xlu0 0
    %439 = vperm.xlu0 %438, %v333
    %v440 = vpop.permute.xlu0 %439
    %443 = vset.pattern.permute.xlu0 0
    %444 = vperm.xlu0 %443, %v334
    %v445 = vpop.permute.xlu0 %444
    %448 = vset.pattern.permute.xlu0 0
    %449 = vperm.xlu0 %448, %v335
    %v450 = vpop.permute.xlu0 %449
    %453 = vset.pattern.permute.xlu0 0
    %454 = vperm.xlu0 %453, %v336
    %v455 = vpop.permute.xlu0 %454
    %458 = vset.pattern.permute.xlu0 0
    %459 = vperm.xlu0 %458, %v337
    %v460 = vpop.permute.xlu0 %459
    %463 = vset.pattern.permute.xlu0 0
    %464 = vperm.xlu0 %463, %v338
    %v465 = vpop.permute.xlu0 %464
    %v467 = vsub.f32 %v259, %v390
    %v468 = vsub.f32 %v260, %v395
    %v469 = vsub.f32 %v261, %v400
    %v470 = vsub.f32 %v262, %v405
    %v471 = vsub.f32 %v263, %v410
    %v472 = vsub.f32 %v264, %v415
    %v473 = vsub.f32 %v265, %v420
    %v474 = vsub.f32 %v266, %v425
    %v475 = vsub.f32 %v267, %v430
    %v476 = vsub.f32 %v268, %v435
    %v477 = vsub.f32 %v269, %v440
    %v478 = vsub.f32 %v270, %v445
    %v479 = vsub.f32 %v271, %v450
    %v480 = vsub.f32 %v272, %v455
    %v481 = vsub.f32 %v273, %v460
    %v482 = vsub.f32 %v274, %v465
    %v483 = vmul.f32 %v467, 1.442695
    %v484 = vpow.pop %v483
    %v485 = vmul.f32 %v468, 1.442695
    %v486 = vpow.pop %v485
    %v487 = vmul.f32 %v469, 1.442695
    %v488 = vpow.pop %v487
    %v489 = vmul.f32 %v470, 1.442695
    %v490 = vpow.pop %v489
    %v491 = vmul.f32 %v471, 1.442695
    %v492 = vpow.pop %v491
    %v493 = vmul.f32 %v472, 1.442695
    %v494 = vpow.pop %v493
    %v495 = vmul.f32 %v473, 1.442695
    %v496 = vpow.pop %v495
    %v497 = vmul.f32 %v474, 1.442695
    %v498 = vpow.pop %v497
    %v499 = vmul.f32 %v475, 1.442695
    %v500 = vpow.pop %v499
    %v501 = vmul.f32 %v476, 1.442695
    %v502 = vpow.pop %v501
    %v503 = vmul.f32 %v477, 1.442695
    %v504 = vpow.pop %v503
    %v505 = vmul.f32 %v478, 1.442695
    %v506 = vpow.pop %v505
    %v507 = vmul.f32 %v479, 1.442695
    %v508 = vpow.pop %v507
    %v509 = vmul.f32 %v480, 1.442695
    %v510 = vpow.pop %v509
    %v511 = vmul.f32 %v481, 1.442695
    %v512 = vpow.pop %v511
    %v513 = vmul.f32 %v482, 1.442695
    %v514 = vpow.pop %v513
    %v515 = vld [vmem:[%s62] sm:$0x3]
    %v516 = vld [vmem:[%s62 + $0x2] sm:$0x3]
    %v517 = vld [vmem:[%s62 + $0x4] sm:$0x3]
    %v518 = vld [vmem:[%s62 + $0x6] sm:$0x3]
    %v519 = vld [vmem:[%s62 + $0x8] sm:$0x3]
    %v520 = vld [vmem:[%s62 + $0xa] sm:$0x3]
    %v521 = vld [vmem:[%s62 + $0xc] sm:$0x3]
    %v522 = vld [vmem:[%s62 + $0xe] sm:$0x3]
    %v523 = vld [vmem:[%s62 + $0x10] sm:$0x3]
    %v524 = vld [vmem:[%s62 + $0x12] sm:$0x3]
    %v525 = vld [vmem:[%s62 + $0x14] sm:$0x3]
    %v526 = vld [vmem:[%s62 + $0x16] sm:$0x3]
    %v527 = vld [vmem:[%s62 + $0x18] sm:$0x3]
    %v528 = vld [vmem:[%s62 + $0x1a] sm:$0x3]
    %v529 = vld [vmem:[%s62 + $0x1c] sm:$0x3]
    %v530 = vld [vmem:[%s62 + $0x1e] sm:$0x3]
    %v531 = vunpack.c.0.s8 %v515
    %v532 = vunpack.c.0.s8 %v516
    %v533 = vunpack.c.0.s8 %v517
    %v534 = vunpack.c.0.s8 %v518
    %v535 = vunpack.c.0.s8 %v519
    %v536 = vunpack.c.0.s8 %v520
    %v537 = vunpack.c.0.s8 %v521
    %v538 = vunpack.c.0.s8 %v522
    %v539 = vunpack.c.0.s8 %v523
    %v540 = vunpack.c.0.s8 %v524
    %v541 = vunpack.c.0.s8 %v525
    %v542 = vunpack.c.0.s8 %v526
    %v543 = vunpack.c.0.s8 %v527
    %v544 = vunpack.c.0.s8 %v528
    %v545 = vunpack.c.0.s8 %v529
    %v546 = vunpack.c.0.s8 %v530
    %v547 = vcvt.s32.f32 %v531
    %v548 = vcvt.s32.f32 %v532
    %v549 = vcvt.s32.f32 %v533
    %v550 = vcvt.s32.f32 %v534
    %v551 = vcvt.s32.f32 %v535
    %v552 = vcvt.s32.f32 %v536
    %v553 = vcvt.s32.f32 %v537
    %v554 = vcvt.s32.f32 %v538
    %v555 = vcvt.s32.f32 %v539
    %v556 = vcvt.s32.f32 %v540
    %v557 = vcvt.s32.f32 %v541
    %v558 = vcvt.s32.f32 %v542
    %v559 = vcvt.s32.f32 %v543
    %v560 = vcvt.s32.f32 %v544
    %v561 = vcvt.s32.f32 %v545
    %v562 = vcvt.s32.f32 %v546
    %v563 = vmul.f32 %v484, %v547
    %v564 = vmul.f32 %v486, %v548
    %v565 = vmul.f32 %v488, %v549
    %v566 = vmul.f32 %v490, %v550
    %v567 = vmul.f32 %v492, %v551
    %v568 = vmul.f32 %v494, %v552
    %v569 = vmul.f32 %v496, %v553
    %v570 = vmul.f32 %v498, %v554
    %v571 = vmul.f32 %v500, %v555
    %v572 = vmul.f32 %v502, %v556
    %v573 = vmul.f32 %v504, %v557
    %v574 = vmul.f32 %v506, %v558
    %v575 = vmul.f32 %v508, %v559
    %v576 = vmul.f32 %v510, %v560
    %v577 = vmul.f32 %v512, %v561
    %v578 = vmul.f32 %v514, %v562
    %v579 = vld [vmem:[#allocation3] sm:$0xff]
    %v580 = vld [vmem:[#allocation3 + $0x8] sm:$0xff]
    %v581 = vld [vmem:[#allocation3 + $0x10] sm:$0xff]
    %v582 = vld [vmem:[#allocation3 + $0x18] sm:$0xff]
    %v583 = vld [vmem:[#allocation3 + $0x20] sm:$0xff]
    %v584 = vld [vmem:[#allocation3 + $0x28] sm:$0xff]
    %v585 = vld [vmem:[#allocation3 + $0x30] sm:$0xff]
    %v586 = vld [vmem:[#allocation3 + $0x38] sm:$0xff]
    %v587 = vld [vmem:[#allocation3 + $0x40] sm:$0xff]
    %v588 = vld [vmem:[#allocation3 + $0x48] sm:$0xff]
    %v589 = vld [vmem:[#allocation3 + $0x50] sm:$0xff]
    %v590 = vld [vmem:[#allocation3 + $0x58] sm:$0xff]
    %v591 = vld [vmem:[#allocation3 + $0x60] sm:$0xff]
    %v592 = vld [vmem:[#allocation3 + $0x68] sm:$0xff]
    %v593 = vld [vmem:[#allocation3 + $0x70] sm:$0xff]
    %v594 = vld [vmem:[#allocation3 + $0x78] sm:$0xff]
    %v595 = vmul.f32 %v356, %v579
    %v596 = vmul.f32 %v358, %v580
    %v597 = vmul.f32 %v360, %v581
    %v598 = vmul.f32 %v362, %v582
    %v599 = vmul.f32 %v364, %v583
    %v600 = vmul.f32 %v366, %v584
    %v601 = vmul.f32 %v368, %v585
    %v602 = vmul.f32 %v370, %v586
    %v603 = vmul.f32 %v372, %v587
    %v604 = vmul.f32 %v374, %v588
    %v605 = vmul.f32 %v376, %v589
    %v606 = vmul.f32 %v378, %v590
    %v607 = vmul.f32 %v380, %v591
    %v608 = vmul.f32 %v382, %v592
    %v609 = vmul.f32 %v384, %v593
    %v610 = vmul.f32 %v386, %v594
    %611 = vadd.xlane.f32.xlu0 %v563
    %v612 = vpop.xlane.xlu0 %611
    %613 = vadd.xlane.f32.xlu0 %v564
    %v614 = vpop.xlane.xlu0 %613
    %615 = vadd.xlane.f32.xlu0 %v565
    %v616 = vpop.xlane.xlu0 %615
    %617 = vadd.xlane.f32.xlu0 %v566
    %v618 = vpop.xlane.xlu0 %617
    %619 = vadd.xlane.f32.xlu0 %v567
    %v620 = vpop.xlane.xlu0 %619
    %621 = vadd.xlane.f32.xlu0 %v568
    %v622 = vpop.xlane.xlu0 %621
    %623 = vadd.xlane.f32.xlu0 %v569
    %v624 = vpop.xlane.xlu0 %623
    %625 = vadd.xlane.f32.xlu0 %v570
    %v626 = vpop.xlane.xlu0 %625
    %627 = vadd.xlane.f32.xlu0 %v571
    %v628 = vpop.xlane.xlu0 %627
    %629 = vadd.xlane.f32.xlu0 %v572
    %v630 = vpop.xlane.xlu0 %629
    %631 = vadd.xlane.f32.xlu0 %v573
    %v632 = vpop.xlane.xlu0 %631
    %633 = vadd.xlane.f32.xlu0 %v574
    %v634 = vpop.xlane.xlu0 %633
    %635 = vadd.xlane.f32.xlu0 %v575
    %v636 = vpop.xlane.xlu0 %635
    %637 = vadd.xlane.f32.xlu0 %v576
    %v638 = vpop.xlane.xlu0 %637
    %639 = vadd.xlane.f32.xlu0 %v577
    %v640 = vpop.xlane.xlu0 %639
    %641 = vadd.xlane.f32.xlu0 %v578
    %v642 = vpop.xlane.xlu0 %641
    %v643 = vadd.f32 %v595, %v612
    %v644 = vadd.f32 %v596, %v614
    %v645 = vadd.f32 %v597, %v616
    %v646 = vadd.f32 %v598, %v618
    %v647 = vadd.f32 %v599, %v620
    %v648 = vadd.f32 %v600, %v622
    %v649 = vadd.f32 %v601, %v624
    %v650 = vadd.f32 %v602, %v626
    %v651 = vadd.f32 %v603, %v628
    %v652 = vadd.f32 %v604, %v630
    %v653 = vadd.f32 %v605, %v632
    %v654 = vadd.f32 %v606, %v634
    %v655 = vadd.f32 %v607, %v636
    %v656 = vadd.f32 %v608, %v638
    %v657 = vadd.f32 %v609, %v640
    %v658 = vadd.f32 %v610, %v642
    %vm659 = vcmask 7168
    %660 = vst.msk [vmem:[#allocation3] sm:$0xff] %vm659, %v643
    %661 = vst.msk [vmem:[#allocation3 + $0x8] sm:$0xff] %vm659, %v644
    %662 = vst.msk [vmem:[#allocation3 + $0x10] sm:$0xff] %vm659, %v645
    %663 = vst.msk [vmem:[#allocation3 + $0x18] sm:$0xff] %vm659, %v646
    %664 = vst.msk [vmem:[#allocation3 + $0x20] sm:$0xff] %vm659, %v647
    %665 = vst.msk [vmem:[#allocation3 + $0x28] sm:$0xff] %vm659, %v648
    %666 = vst.msk [vmem:[#allocation3 + $0x30] sm:$0xff] %vm659, %v649
    %667 = vst.msk [vmem:[#allocation3 + $0x38] sm:$0xff] %vm659, %v650
    %668 = vst.msk [vmem:[#allocation3 + $0x40] sm:$0xff] %vm659, %v651
    %669 = vst.msk [vmem:[#allocation3 + $0x48] sm:$0xff] %vm659, %v652
    %670 = vst.msk [vmem:[#allocation3 + $0x50] sm:$0xff] %vm659, %v653
    %671 = vst.msk [vmem:[#allocation3 + $0x58] sm:$0xff] %vm659, %v654
    %672 = vst.msk [vmem:[#allocation3 + $0x60] sm:$0xff] %vm659, %v655
    %673 = vst.msk [vmem:[#allocation3 + $0x68] sm:$0xff] %vm659, %v656
    %674 = vst.msk [vmem:[#allocation3 + $0x70] sm:$0xff] %vm659, %v657
    %675 = vst.msk [vmem:[#allocation3 + $0x78] sm:$0xff] %vm659, %v658
    %s676 = sadd.s32 0, 0
    %s677 = sld [smem:[#allocation6 + %s676]]
    %s678 = smul.u32 %s677, 128
    %s679 = sshra.s32 %s678, 3
    %s680 = sand.u32 %s678, 7
    %s681 = smul.addr %s679, 4
    %s682 = scalar_lea.vmem %s4, %s681
    %v683 = vld [vmem:[%s682] sm:$0xf]
    %v684 = vld [vmem:[%s682 + $0x4] sm:$0xf]
    %v685 = vld [vmem:[%s682 + $0x8] sm:$0xf]
    %v686 = vld [vmem:[%s682 + $0xc] sm:$0xf]
    %v687 = vld [vmem:[%s682 + $0x10] sm:$0xf]
    %v688 = vld [vmem:[%s682 + $0x14] sm:$0xf]
    %v689 = vld [vmem:[%s682 + $0x18] sm:$0xf]
    %v690 = vld [vmem:[%s682 + $0x1c] sm:$0xf]
    %v691 = vld [vmem:[%s682 + $0x20] sm:$0xf]
    %v692 = vld [vmem:[%s682 + $0x24] sm:$0xf]
    %v693 = vld [vmem:[%s682 + $0x28] sm:$0xf]
    %v694 = vld [vmem:[%s682 + $0x2c] sm:$0xf]
    %v695 = vld [vmem:[%s682 + $0x30] sm:$0xf]
    %v696 = vld [vmem:[%s682 + $0x34] sm:$0xf]
    %v697 = vld [vmem:[%s682 + $0x38] sm:$0xf]
    %v698 = vld [vmem:[%s682 + $0x3c] sm:$0xf]
    %v699 = vld [vmem:[#allocation4] sm:$0xff]
    %v700 = vld [vmem:[#allocation4 + $0x8] sm:$0xff]
    %v701 = vld [vmem:[#allocation4 + $0x10] sm:$0xff]
    %v702 = vld [vmem:[#allocation4 + $0x18] sm:$0xff]
    %v703 = vld [vmem:[#allocation4 + $0x20] sm:$0xff]
    %v704 = vld [vmem:[#allocation4 + $0x28] sm:$0xff]
    %v705 = vld [vmem:[#allocation4 + $0x30] sm:$0xff]
    %v706 = vld [vmem:[#allocation4 + $0x38] sm:$0xff]
    %v707 = vld [vmem:[#allocation4 + $0x40] sm:$0xff]
    %v708 = vld [vmem:[#allocation4 + $0x48] sm:$0xff]
    %v709 = vld [vmem:[#allocation4 + $0x50] sm:$0xff]
    %v710 = vld [vmem:[#allocation4 + $0x58] sm:$0xff]
    %v711 = vld [vmem:[#allocation4 + $0x60] sm:$0xff]
    %v712 = vld [vmem:[#allocation4 + $0x68] sm:$0xff]
    %v713 = vld [vmem:[#allocation4 + $0x70] sm:$0xff]
    %v714 = vld [vmem:[#allocation4 + $0x78] sm:$0xff]
    %716 = vset.pattern.permute.xlu0 0
    %717 = vperm.xlu0 %716, %v356
    %v718 = vpop.permute.xlu0 %717
    %721 = vset.pattern.permute.xlu0 0
    %722 = vperm.xlu0 %721, %v358
    %v723 = vpop.permute.xlu0 %722
    %726 = vset.pattern.permute.xlu0 0
    %727 = vperm.xlu0 %726, %v360
    %v728 = vpop.permute.xlu0 %727
    %731 = vset.pattern.permute.xlu0 0
    %732 = vperm.xlu0 %731, %v362
    %v733 = vpop.permute.xlu0 %732
    %736 = vset.pattern.permute.xlu0 0
    %737 = vperm.xlu0 %736, %v364
    %v738 = vpop.permute.xlu0 %737
    %741 = vset.pattern.permute.xlu0 0
    %742 = vperm.xlu0 %741, %v366
    %v743 = vpop.permute.xlu0 %742
    %746 = vset.pattern.permute.xlu0 0
    %747 = vperm.xlu0 %746, %v368
    %v748 = vpop.permute.xlu0 %747
    %751 = vset.pattern.permute.xlu0 0
    %752 = vperm.xlu0 %751, %v370
    %v753 = vpop.permute.xlu0 %752
    %756 = vset.pattern.permute.xlu0 0
    %757 = vperm.xlu0 %756, %v372
    %v758 = vpop.permute.xlu0 %757
    %761 = vset.pattern.permute.xlu0 0
    %762 = vperm.xlu0 %761, %v374
    %v763 = vpop.permute.xlu0 %762
    %766 = vset.pattern.permute.xlu0 0
    %767 = vperm.xlu0 %766, %v376
    %v768 = vpop.permute.xlu0 %767
    %771 = vset.pattern.permute.xlu0 0
    %772 = vperm.xlu0 %771, %v378
    %v773 = vpop.permute.xlu0 %772
    %776 = vset.pattern.permute.xlu0 0
    %777 = vperm.xlu0 %776, %v380
    %v778 = vpop.permute.xlu0 %777
    %781 = vset.pattern.permute.xlu0 0
    %782 = vperm.xlu0 %781, %v382
    %v783 = vpop.permute.xlu0 %782
    %786 = vset.pattern.permute.xlu0 0
    %787 = vperm.xlu0 %786, %v384
    %v788 = vpop.permute.xlu0 %787
    %791 = vset.pattern.permute.xlu0 0
    %792 = vperm.xlu0 %791, %v386
    %v793 = vpop.permute.xlu0 %792
    %v795 = vmul.f32 %v718, %v699
    %v796 = vmul.f32 %v723, %v700
    %v797 = vmul.f32 %v728, %v701
    %v798 = vmul.f32 %v733, %v702
    %v799 = vmul.f32 %v738, %v703
    %v800 = vmul.f32 %v743, %v704
    %v801 = vmul.f32 %v748, %v705
    %v802 = vmul.f32 %v753, %v706
    %v803 = vmul.f32 %v758, %v707
    %v804 = vmul.f32 %v763, %v708
    %v805 = vmul.f32 %v768, %v709
    %v806 = vmul.f32 %v773, %v710
    %v807 = vmul.f32 %v778, %v711
    %v808 = vmul.f32 %v783, %v712
    %v809 = vmul.f32 %v788, %v713
    %v810 = vmul.f32 %v793, %v714
    %v811 = vpack.c.bf16 %v564, %v563
    %v812 = vpack.c.bf16 %v566, %v565
    %v813 = vpack.c.bf16 %v568, %v567
    %v814 = vpack.c.bf16 %v570, %v569
    %v815 = vpack.c.bf16 %v572, %v571
    %v816 = vpack.c.bf16 %v574, %v573
    %v817 = vpack.c.bf16 %v576, %v575
    %v818 = vpack.c.bf16 %v578, %v577
    %v835 = vunpack.c.l.b16 %v683
    %v836 = vunpack.c.l.b16 %v684
    %v837 = vunpack.c.l.b16 %v685
    %v838 = vunpack.c.l.b16 %v686
    %v839 = vunpack.c.l.b16 %v687
    %v840 = vunpack.c.l.b16 %v688
    %v841 = vunpack.c.l.b16 %v689
    %v842 = vunpack.c.l.b16 %v690
    %v843 = vunpack.c.l.b16 %v691
    %v844 = vunpack.c.l.b16 %v692
    %v845 = vunpack.c.l.b16 %v693
    %v846 = vunpack.c.l.b16 %v694
    %v847 = vunpack.c.l.b16 %v695
    %v848 = vunpack.c.l.b16 %v696
    %v849 = vunpack.c.l.b16 %v697
    %v850 = vunpack.c.l.b16 %v698
    %v851 = vpack.c.b16 %v836, %v835
    %v852 = vpack.c.b16 %v838, %v837
    %v853 = vpack.c.b16 %v840, %v839
    %v854 = vpack.c.b16 %v842, %v841
    %v855 = vpack.c.b16 %v844, %v843
    %v856 = vpack.c.b16 %v846, %v845
    %v857 = vpack.c.b16 %v848, %v847
    %v858 = vpack.c.b16 %v850, %v849
    %867 = vmatprep.subr.bf16.mxu0 0
    %868 = vmatpush1.bf16.msra.mxu0 %v851
    %869 = vmatprep.subr.bf16.mxu0 0
    %870 = vmatpush1.bf16.msra.mxu0 %v852
    %871 = vmatprep.subr.bf16.mxu0 0
    %872 = vmatpush1.bf16.msra.mxu0 %v853
    %873 = vmatprep.subr.bf16.mxu0 0
    %874 = vmatpush1.bf16.msra.mxu0 %v854
    %875 = vmatprep.subr.bf16.mxu0 0
    %876 = vmatpush1.bf16.msra.mxu0 %v855
    %877 = vmatprep.subr.bf16.mxu0 0
    %878 = vmatpush1.bf16.msra.mxu0 %v856
    %879 = vmatprep.subr.bf16.mxu0 0
    %880 = vmatpush1.bf16.msra.mxu0 %v857
    %881 = vmatprep.subr.bf16.mxu0 0
    %882 = vmatpush1.bf16.msra.mxu0 %v858
    %883 = vmatprep.subr.bf16.mxu0 0
    %884 = vmatpush1.bf16.msra.mxu0 0
    %885 = vmatprep.subr.bf16.mxu0 0
    %886 = vmatpush1.bf16.msra.mxu0 0
    %887 = vmatprep.subr.bf16.mxu0 0
    %888 = vmatpush1.bf16.msra.mxu0 0
    %889 = vmatprep.subr.bf16.mxu0 0
    %890 = vmatpush1.bf16.msra.mxu0 0
    %891 = vmatprep.subr.bf16.mxu0 0
    %892 = vmatpush1.bf16.msra.mxu0 0
    %893 = vmatprep.subr.bf16.mxu0 0
    %894 = vmatpush1.bf16.msra.mxu0 0
    %895 = vmatprep.subr.bf16.mxu0 0
    %896 = vmatpush1.bf16.msra.mxu0 0
    %897 = vmatprep.subr.bf16.mxu0 0
    %898 = vmatpush1.bf16.msra.mxu0 0
    %899 = vmatprep.mubr.bf16.mxu0 0
    %900 = vmatmul.mubr.bf16.gmra.mrb[0].mxu0 %v811
    %v901 = vpop.f32.mrb[0].mxu0
    %v902 = vadd.f32 0.0, %v901
    %v903 = vpop.f32.mrb[0].mxu0
    %v904 = vpop.f32.mrb[0].mxu0
    %v905 = vadd.f32 0.0, %v904
    %v906 = vpop.f32.mrb[0].mxu0
    %907 = vmatprep.mubr.bf16.mxu0 0
    %908 = vmatmul.mubr.bf16.gmra.mrb[0].mxu0 %v812
    %v909 = vpop.f32.mrb[0].mxu0
    %v910 = vadd.f32 0.0, %v909
    %v911 = vpop.f32.mrb[0].mxu0
    %v912 = vpop.f32.mrb[0].mxu0
    %v913 = vadd.f32 0.0, %v912
    %v914 = vpop.f32.mrb[0].mxu0
    %915 = vmatprep.mubr.bf16.mxu0 0
    %916 = vmatmul.mubr.bf16.gmra.mrb[0].mxu0 %v813
    %v917 = vpop.f32.mrb[0].mxu0
    %v918 = vadd.f32 0.0, %v917
    %v919 = vpop.f32.mrb[0].mxu0
    %v920 = vpop.f32.mrb[0].mxu0
    %v921 = vadd.f32 0.0, %v920
    %v922 = vpop.f32.mrb[0].mxu0
    %923 = vmatprep.mubr.bf16.mxu0 0
    %924 = vmatmul.mubr.bf16.gmra.mrb[0].mxu0 %v814
    %v925 = vpop.f32.mrb[0].mxu0
    %v926 = vadd.f32 0.0, %v925
    %v927 = vpop.f32.mrb[0].mxu0
    %v928 = vpop.f32.mrb[0].mxu0
    %v929 = vadd.f32 0.0, %v928
    %v930 = vpop.f32.mrb[0].mxu0
    %931 = vmatprep.mubr.bf16.mxu0 0
    %932 = vmatmul.mubr.bf16.gmra.mrb[0].mxu0 %v815
    %v933 = vpop.f32.mrb[0].mxu0
    %v934 = vadd.f32 0.0, %v933
    %v935 = vpop.f32.mrb[0].mxu0
    %v936 = vpop.f32.mrb[0].mxu0
    %v937 = vadd.f32 0.0, %v936
    %v938 = vpop.f32.mrb[0].mxu0
    %939 = vmatprep.mubr.bf16.mxu0 0
    %940 = vmatmul.mubr.bf16.gmra.mrb[0].mxu0 %v816
    %v941 = vpop.f32.mrb[0].mxu0
    %v942 = vadd.f32 0.0, %v941
    %v943 = vpop.f32.mrb[0].mxu0
    %v944 = vpop.f32.mrb[0].mxu0
    %v945 = vadd.f32 0.0, %v944
    %v946 = vpop.f32.mrb[0].mxu0
    %947 = vmatprep.mubr.bf16.mxu0 0
    %948 = vmatmul.mubr.bf16.gmra.mrb[0].mxu0 %v817
    %v949 = vpop.f32.mrb[0].mxu0
    %v950 = vadd.f32 0.0, %v949
    %v951 = vpop.f32.mrb[0].mxu0
    %v952 = vpop.f32.mrb[0].mxu0
    %v953 = vadd.f32 0.0, %v952
    %v954 = vpop.f32.mrb[0].mxu0
    %955 = vmatprep.mubr.bf16.mxu0 0
    %956 = vmatmul.mubr.bf16.gmra.mrb[0].mxu0 %v818
    %v957 = vpop.f32.mrb[0].mxu0
    %v958 = vadd.f32 0.0, %v957
    %v959 = vpop.f32.mrb[0].mxu0
    %v960 = vpop.f32.mrb[0].mxu0
    %v961 = vadd.f32 0.0, %v960
    %v962 = vpop.f32.mrb[0].mxu0
    %963 = vdwg.mxu0
    %v964 = vadd.f32 %v795, %v902
    %v965 = vadd.f32 %v796, %v905
    %v966 = vadd.f32 %v797, %v910
    %v967 = vadd.f32 %v798, %v913
    %v968 = vadd.f32 %v799, %v918
    %v969 = vadd.f32 %v800, %v921
    %v970 = vadd.f32 %v801, %v926
    %v971 = vadd.f32 %v802, %v929
    %v972 = vadd.f32 %v803, %v934
    %v973 = vadd.f32 %v804, %v937
    %v974 = vadd.f32 %v805, %v942
    %v975 = vadd.f32 %v806, %v945
    %v976 = vadd.f32 %v807, %v950
    %v977 = vadd.f32 %v808, %v953
    %v978 = vadd.f32 %v809, %v958
    %v979 = vadd.f32 %v810, %v961
    %980 = vst [vmem:[#allocation4] sm:$0xff] %v964
    %981 = vst [vmem:[#allocation4 + $0x8] sm:$0xff] %v965
    %982 = vst [vmem:[#allocation4 + $0x10] sm:$0xff] %v966
    %983 = vst [vmem:[#allocation4 + $0x18] sm:$0xff] %v967
    %984 = vst [vmem:[#allocation4 + $0x20] sm:$0xff] %v968
    %985 = vst [vmem:[#allocation4 + $0x28] sm:$0xff] %v969
    %986 = vst [vmem:[#allocation4 + $0x30] sm:$0xff] %v970
    %987 = vst [vmem:[#allocation4 + $0x38] sm:$0xff] %v971
    %988 = vst [vmem:[#allocation4 + $0x40] sm:$0xff] %v972
    %989 = vst [vmem:[#allocation4 + $0x48] sm:$0xff] %v973
    %990 = vst [vmem:[#allocation4 + $0x50] sm:$0xff] %v974
    %991 = vst [vmem:[#allocation4 + $0x58] sm:$0xff] %v975
    %992 = vst [vmem:[#allocation4 + $0x60] sm:$0xff] %v976
    %993 = vst [vmem:[#allocation4 + $0x68] sm:$0xff] %v977
    %994 = vst [vmem:[#allocation4 + $0x70] sm:$0xff] %v978
    %995 = vst [vmem:[#allocation4 + $0x78] sm:$0xff] %v979
    %996 = vst.msk [vmem:[#allocation2] sm:$0xff] %vm659, %v323
    %997 = vst.msk [vmem:[#allocation2 + $0x8] sm:$0xff] %vm659, %v324
    %998 = vst.msk [vmem:[#allocation2 + $0x10] sm:$0xff] %vm659, %v325
    %999 = vst.msk [vmem:[#allocation2 + $0x18] sm:$0xff] %vm659, %v326
    %1000 = vst.msk [vmem:[#allocation2 + $0x20] sm:$0xff] %vm659, %v327
    %1001 = vst.msk [vmem:[#allocation2 + $0x28] sm:$0xff] %vm659, %v328
    %1002 = vst.msk [vmem:[#allocation2 + $0x30] sm:$0xff] %vm659, %v329
    %1003 = vst.msk [vmem:[#allocation2 + $0x38] sm:$0xff] %vm659, %v330
    %1004 = vst.msk [vmem:[#allocation2 + $0x40] sm:$0xff] %vm659, %v331
    %1005 = vst.msk [vmem:[#allocation2 + $0x48] sm:$0xff] %vm659, %v332
    %1006 = vst.msk [vmem:[#allocation2 + $0x50] sm:$0xff] %vm659, %v333
    %1007 = vst.msk [vmem:[#allocation2 + $0x58] sm:$0xff] %vm659, %v334
    %1008 = vst.msk [vmem:[#allocation2 + $0x60] sm:$0xff] %vm659, %v335
    %1009 = vst.msk [vmem:[#allocation2 + $0x68] sm:$0xff] %vm659, %v336
    %1010 = vst.msk [vmem:[#allocation2 + $0x70] sm:$0xff] %vm659, %v337
    %1011 = vst.msk [vmem:[#allocation2 + $0x78] sm:$0xff] %vm659, %v338
  $region29: #{gat_forward.5} parent=0 // pred_fallthru
    _
  %s1012 = ssub.s32 %s66, 1
  %p1013 = scmp.eq.s32.totalorder 0, %s1012
  // Predicated region
  $region30: #{gat_forward.5} parent=0 // pred_check
    %p1014 = pneg %p1013
  $region31: #{gat_forward.5} parent=0 // pred_check_branch
    %1016 = sbr.rel (%p1014) target = $region33
  $region32: #{gat_forward.5} parent=0 // pred_region
    %v1017 = vld [vmem:[#allocation3] sm:$0xff]
    %v1018 = vld [vmem:[#allocation3 + $0x8] sm:$0xff]
    %v1019 = vld [vmem:[#allocation3 + $0x10] sm:$0xff]
    %v1020 = vld [vmem:[#allocation3 + $0x18] sm:$0xff]
    %v1021 = vld [vmem:[#allocation3 + $0x20] sm:$0xff]
    %v1022 = vld [vmem:[#allocation3 + $0x28] sm:$0xff]
    %v1023 = vld [vmem:[#allocation3 + $0x30] sm:$0xff]
    %v1024 = vld [vmem:[#allocation3 + $0x38] sm:$0xff]
    %v1025 = vld [vmem:[#allocation3 + $0x40] sm:$0xff]
    %v1026 = vld [vmem:[#allocation3 + $0x48] sm:$0xff]
    %v1027 = vld [vmem:[#allocation3 + $0x50] sm:$0xff]
    %v1028 = vld [vmem:[#allocation3 + $0x58] sm:$0xff]
    %v1029 = vld [vmem:[#allocation3 + $0x60] sm:$0xff]
    %v1030 = vld [vmem:[#allocation3 + $0x68] sm:$0xff]
    %v1031 = vld [vmem:[#allocation3 + $0x70] sm:$0xff]
    %v1032 = vld [vmem:[#allocation3 + $0x78] sm:$0xff]
    %v1033 = vrcp.pop %v1017
    %v1034 = vrcp.pop %v1018
    %v1035 = vrcp.pop %v1019
    %v1036 = vrcp.pop %v1020
    %v1037 = vrcp.pop %v1021
    %v1038 = vrcp.pop %v1022
    %v1039 = vrcp.pop %v1023
    %v1040 = vrcp.pop %v1024
    %v1041 = vrcp.pop %v1025
    %v1042 = vrcp.pop %v1026
    %v1043 = vrcp.pop %v1027
    %v1044 = vrcp.pop %v1028
    %v1045 = vrcp.pop %v1029
    %v1046 = vrcp.pop %v1030
    %v1047 = vrcp.pop %v1031
    %v1048 = vrcp.pop %v1032
    %v1049 = vld [vmem:[#allocation4] sm:$0xff]
    %v1050 = vld [vmem:[#allocation4 + $0x8] sm:$0xff]
    %v1051 = vld [vmem:[#allocation4 + $0x10] sm:$0xff]
    %v1052 = vld [vmem:[#allocation4 + $0x18] sm:$0xff]
    %v1053 = vld [vmem:[#allocation4 + $0x20] sm:$0xff]
    %v1054 = vld [vmem:[#allocation4 + $0x28] sm:$0xff]
    %v1055 = vld [vmem:[#allocation4 + $0x30] sm:$0xff]
    %v1056 = vld [vmem:[#allocation4 + $0x38] sm:$0xff]
    %v1057 = vld [vmem:[#allocation4 + $0x40] sm:$0xff]
    %v1058 = vld [vmem:[#allocation4 + $0x48] sm:$0xff]
    %v1059 = vld [vmem:[#allocation4 + $0x50] sm:$0xff]
    %v1060 = vld [vmem:[#allocation4 + $0x58] sm:$0xff]
    %v1061 = vld [vmem:[#allocation4 + $0x60] sm:$0xff]
    %v1062 = vld [vmem:[#allocation4 + $0x68] sm:$0xff]
    %v1063 = vld [vmem:[#allocation4 + $0x70] sm:$0xff]
    %v1064 = vld [vmem:[#allocation4 + $0x78] sm:$0xff]
    %1066 = vset.pattern.permute.xlu0 0
    %1067 = vperm.xlu0 %1066, %v1033
    %v1068 = vpop.permute.xlu0 %1067
    %1071 = vset.pattern.permute.xlu0 0
    %1072 = vperm.xlu0 %1071, %v1034
    %v1073 = vpop.permute.xlu0 %1072
    %1076 = vset.pattern.permute.xlu0 0
    %1077 = vperm.xlu0 %1076, %v1035
    %v1078 = vpop.permute.xlu0 %1077
    %1081 = vset.pattern.permute.xlu0 0
    %1082 = vperm.xlu0 %1081, %v1036
    %v1083 = vpop.permute.xlu0 %1082
    %1086 = vset.pattern.permute.xlu0 0
    %1087 = vperm.xlu0 %1086, %v1037
    %v1088 = vpop.permute.xlu0 %1087
    %1091 = vset.pattern.permute.xlu0 0
    %1092 = vperm.xlu0 %1091, %v1038
    %v1093 = vpop.permute.xlu0 %1092
    %1096 = vset.pattern.permute.xlu0 0
    %1097 = vperm.xlu0 %1096, %v1039
    %v1098 = vpop.permute.xlu0 %1097
    %1101 = vset.pattern.permute.xlu0 0
    %1102 = vperm.xlu0 %1101, %v1040
    %v1103 = vpop.permute.xlu0 %1102
    %1106 = vset.pattern.permute.xlu0 0
    %1107 = vperm.xlu0 %1106, %v1041
    %v1108 = vpop.permute.xlu0 %1107
    %1111 = vset.pattern.permute.xlu0 0
    %1112 = vperm.xlu0 %1111, %v1042
    %v1113 = vpop.permute.xlu0 %1112
    %1116 = vset.pattern.permute.xlu0 0
    %1117 = vperm.xlu0 %1116, %v1043
    %v1118 = vpop.permute.xlu0 %1117
    %1121 = vset.pattern.permute.xlu0 0
    %1122 = vperm.xlu0 %1121, %v1044
    %v1123 = vpop.permute.xlu0 %1122
    %1126 = vset.pattern.permute.xlu0 0
    %1127 = vperm.xlu0 %1126, %v1045
    %v1128 = vpop.permute.xlu0 %1127
    %1131 = vset.pattern.permute.xlu0 0
    %1132 = vperm.xlu0 %1131, %v1046
    %v1133 = vpop.permute.xlu0 %1132
    %1136 = vset.pattern.permute.xlu0 0
    %1137 = vperm.xlu0 %1136, %v1047
    %v1138 = vpop.permute.xlu0 %1137
    %1141 = vset.pattern.permute.xlu0 0
    %1142 = vperm.xlu0 %1141, %v1048
    %v1143 = vpop.permute.xlu0 %1142
    %v1145 = vmul.f32 %v1049, %v1068
    %v1146 = vmul.f32 %v1050, %v1073
    %v1147 = vmul.f32 %v1051, %v1078
    %v1148 = vmul.f32 %v1052, %v1083
    %v1149 = vmul.f32 %v1053, %v1088
    %v1150 = vmul.f32 %v1054, %v1093
    %v1151 = vmul.f32 %v1055, %v1098
    %v1152 = vmul.f32 %v1056, %v1103
    %v1153 = vmul.f32 %v1057, %v1108
    %v1154 = vmul.f32 %v1058, %v1113
    %v1155 = vmul.f32 %v1059, %v1118
    %v1156 = vmul.f32 %v1060, %v1123
    %v1157 = vmul.f32 %v1061, %v1128
    %v1158 = vmul.f32 %v1062, %v1133
    %v1159 = vmul.f32 %v1063, %v1138
    %v1160 = vmul.f32 %v1064, %v1143
    %v1161 = vld [vmem:[%s6] sm:$0x1]
    %v1163 = vlaneseq
    %v1164 = vshrl.u32 %v1163, 7
    %v1165 = vsub.s32 0, %v1164
    %v1166 = vrot.slane %v1161, %v1165
    %v1168 = vadd.f32 %v1145, %v1166
    %v1169 = vadd.f32 %v1146, %v1166
    %v1170 = vadd.f32 %v1147, %v1166
    %v1171 = vadd.f32 %v1148, %v1166
    %v1172 = vadd.f32 %v1149, %v1166
    %v1173 = vadd.f32 %v1150, %v1166
    %v1174 = vadd.f32 %v1151, %v1166
    %v1175 = vadd.f32 %v1152, %v1166
    %v1176 = vadd.f32 %v1153, %v1166
    %v1177 = vadd.f32 %v1154, %v1166
    %v1178 = vadd.f32 %v1155, %v1166
    %v1179 = vadd.f32 %v1156, %v1166
    %v1180 = vadd.f32 %v1157, %v1166
    %v1181 = vadd.f32 %v1158, %v1166
    %v1182 = vadd.f32 %v1159, %v1166
    %v1183 = vadd.f32 %v1160, %v1166
    %vm1184 = vcmp.gt.f32.partialorder %v1168, 0.0
    %vm1185 = vcmp.gt.f32.partialorder %v1169, 0.0
    %vm1186 = vcmp.gt.f32.partialorder %v1170, 0.0
    %vm1187 = vcmp.gt.f32.partialorder %v1171, 0.0
    %vm1188 = vcmp.gt.f32.partialorder %v1172, 0.0
    %vm1189 = vcmp.gt.f32.partialorder %v1173, 0.0
    %vm1190 = vcmp.gt.f32.partialorder %v1174, 0.0
    %vm1191 = vcmp.gt.f32.partialorder %v1175, 0.0
    %vm1192 = vcmp.gt.f32.partialorder %v1176, 0.0
    %vm1193 = vcmp.gt.f32.partialorder %v1177, 0.0
    %vm1194 = vcmp.gt.f32.partialorder %v1178, 0.0
    %vm1195 = vcmp.gt.f32.partialorder %v1179, 0.0
    %vm1196 = vcmp.gt.f32.partialorder %v1180, 0.0
    %vm1197 = vcmp.gt.f32.partialorder %v1181, 0.0
    %vm1198 = vcmp.gt.f32.partialorder %v1182, 0.0
    %vm1199 = vcmp.gt.f32.partialorder %v1183, 0.0
    %v1200 = vmin.f32 %v1168, 0.0
    %v1201 = vmin.f32 %v1169, 0.0
    %v1202 = vmin.f32 %v1170, 0.0
    %v1203 = vmin.f32 %v1171, 0.0
    %v1204 = vmin.f32 %v1172, 0.0
    %v1205 = vmin.f32 %v1173, 0.0
    %v1206 = vmin.f32 %v1174, 0.0
    %v1207 = vmin.f32 %v1175, 0.0
    %v1208 = vmin.f32 %v1176, 0.0
    %v1209 = vmin.f32 %v1177, 0.0
    %v1210 = vmin.f32 %v1178, 0.0
    %v1211 = vmin.f32 %v1179, 0.0
    %v1212 = vmin.f32 %v1180, 0.0
    %v1213 = vmin.f32 %v1181, 0.0
    %v1214 = vmin.f32 %v1182, 0.0
    %v1215 = vmin.f32 %v1183, 0.0
    %v1216 = vmul.f32 %v1200, 1.442695
    %v1217 = vpow.pop %v1216
    %v1218 = vmul.f32 %v1201, 1.442695
    %v1219 = vpow.pop %v1218
    %v1220 = vmul.f32 %v1202, 1.442695
    %v1221 = vpow.pop %v1220
    %v1222 = vmul.f32 %v1203, 1.442695
    %v1223 = vpow.pop %v1222
    %v1224 = vmul.f32 %v1204, 1.442695
    %v1225 = vpow.pop %v1224
    %v1226 = vmul.f32 %v1205, 1.442695
    %v1227 = vpow.pop %v1226
    %v1228 = vmul.f32 %v1206, 1.442695
    %v1229 = vpow.pop %v1228
    %v1230 = vmul.f32 %v1207, 1.442695
    %v1231 = vpow.pop %v1230
    %v1232 = vmul.f32 %v1208, 1.442695
    %v1233 = vpow.pop %v1232
    %v1234 = vmul.f32 %v1209, 1.442695
    %v1235 = vpow.pop %v1234
    %v1236 = vmul.f32 %v1210, 1.442695
    %v1237 = vpow.pop %v1236
    %v1238 = vmul.f32 %v1211, 1.442695
    %v1239 = vpow.pop %v1238
    %v1240 = vmul.f32 %v1212, 1.442695
    %v1241 = vpow.pop %v1240
    %v1242 = vmul.f32 %v1213, 1.442695
    %v1243 = vpow.pop %v1242
    %v1244 = vmul.f32 %v1214, 1.442695
    %v1245 = vpow.pop %v1244
    %v1246 = vmul.f32 %v1215, 1.442695
    %v1247 = vpow.pop %v1246
    %v1248 = vsub.f32 %v1217, 1.0
    %v1249 = vsub.f32 %v1219, 1.0
    %v1250 = vsub.f32 %v1221, 1.0
    %v1251 = vsub.f32 %v1223, 1.0
    %v1252 = vsub.f32 %v1225, 1.0
    %v1253 = vsub.f32 %v1227, 1.0
    %v1254 = vsub.f32 %v1229, 1.0
    %v1255 = vsub.f32 %v1231, 1.0
    %v1256 = vsub.f32 %v1233, 1.0
    %v1257 = vsub.f32 %v1235, 1.0
    %v1258 = vsub.f32 %v1237, 1.0
    %v1259 = vsub.f32 %v1239, 1.0
    %v1260 = vsub.f32 %v1241, 1.0
    %v1261 = vsub.f32 %v1243, 1.0
    %v1262 = vsub.f32 %v1245, 1.0
    %v1263 = vsub.f32 %v1247, 1.0
    %v1264 = vsel %vm1184, %v1168, %v1248
    %v1265 = vsel %vm1185, %v1169, %v1249
    %v1266 = vsel %vm1186, %v1170, %v1250
    %v1267 = vsel %vm1187, %v1171, %v1251
    %v1268 = vsel %vm1188, %v1172, %v1252
    %v1269 = vsel %vm1189, %v1173, %v1253
    %v1270 = vsel %vm1190, %v1174, %v1254
    %v1271 = vsel %vm1191, %v1175, %v1255
    %v1272 = vsel %vm1192, %v1176, %v1256
    %v1273 = vsel %vm1193, %v1177, %v1257
    %v1274 = vsel %vm1194, %v1178, %v1258
    %v1275 = vsel %vm1195, %v1179, %v1259
    %v1276 = vsel %vm1196, %v1180, %v1260
    %v1277 = vsel %vm1197, %v1181, %v1261
    %v1278 = vsel %vm1198, %v1182, %v1262
    %v1279 = vsel %vm1199, %v1183, %v1263
    %v1280 = vpack.c.bf16 %v1265, %v1264
    %v1281 = vpack.c.bf16 %v1267, %v1266
    %v1282 = vpack.c.bf16 %v1269, %v1268
    %v1283 = vpack.c.bf16 %v1271, %v1270
    %v1284 = vpack.c.bf16 %v1273, %v1272
    %v1285 = vpack.c.bf16 %v1275, %v1274
    %v1286 = vpack.c.bf16 %v1277, %v1276
    %v1287 = vpack.c.bf16 %v1279, %v1278
    %v1296 = vunpack.c.l.b16 %v1280
    %v1297 = vunpack.c.h.b16 %v1280
    %v1298 = vunpack.c.l.b16 %v1281
    %v1299 = vunpack.c.h.b16 %v1281
    %v1300 = vunpack.c.l.b16 %v1282
    %v1301 = vunpack.c.h.b16 %v1282
    %v1302 = vunpack.c.l.b16 %v1283
    %v1303 = vunpack.c.h.b16 %v1283
    %v1304 = vunpack.c.l.b16 %v1284
    %v1305 = vunpack.c.h.b16 %v1284
    %v1306 = vunpack.c.l.b16 %v1285
    %v1307 = vunpack.c.h.b16 %v1285
    %v1308 = vunpack.c.l.b16 %v1286
    %v1309 = vunpack.c.h.b16 %v1286
    %v1310 = vunpack.c.l.b16 %v1287
    %v1311 = vunpack.c.h.b16 %v1287
    %v1312 = vpack.c.b16 %v1296, %v1296
    %v1313 = vpack.c.b16 %v1297, %v1297
    %v1314 = vpack.c.b16 %v1298, %v1298
    %v1315 = vpack.c.b16 %v1299, %v1299
    %v1316 = vpack.c.b16 %v1300, %v1300
    %v1317 = vpack.c.b16 %v1301, %v1301
    %v1318 = vpack.c.b16 %v1302, %v1302
    %v1319 = vpack.c.b16 %v1303, %v1303
    %v1320 = vpack.c.b16 %v1304, %v1304
    %v1321 = vpack.c.b16 %v1305, %v1305
    %v1322 = vpack.c.b16 %v1306, %v1306
    %v1323 = vpack.c.b16 %v1307, %v1307
    %v1324 = vpack.c.b16 %v1308, %v1308
    %v1325 = vpack.c.b16 %v1309, %v1309
    %v1326 = vpack.c.b16 %v1310, %v1310
    %v1327 = vpack.c.b16 %v1311, %v1311
    %1344 = vst [vmem:[%s7] sm:$0xf] %v1312
    %1345 = vst [vmem:[%s7 + $0x4] sm:$0xf] %v1313
    %1346 = vst [vmem:[%s7 + $0x8] sm:$0xf] %v1314
    %1347 = vst [vmem:[%s7 + $0xc] sm:$0xf] %v1315
    %1348 = vst [vmem:[%s7 + $0x10] sm:$0xf] %v1316
    %1349 = vst [vmem:[%s7 + $0x14] sm:$0xf] %v1317
    %1350 = vst [vmem:[%s7 + $0x18] sm:$0xf] %v1318
    %1351 = vst [vmem:[%s7 + $0x1c] sm:$0xf] %v1319
    %1352 = vst [vmem:[%s7 + $0x20] sm:$0xf] %v1320
    %1353 = vst [vmem:[%s7 + $0x24] sm:$0xf] %v1321
    %1354 = vst [vmem:[%s7 + $0x28] sm:$0xf] %v1322
    %1355 = vst [vmem:[%s7 + $0x2c] sm:$0xf] %v1323
    %1356 = vst [vmem:[%s7 + $0x30] sm:$0xf] %v1324
    %1357 = vst [vmem:[%s7 + $0x34] sm:$0xf] %v1325
    %1358 = vst [vmem:[%s7 + $0x38] sm:$0xf] %v1326
    %1359 = vst [vmem:[%s7 + $0x3c] sm:$0xf] %v1327
  $region33: #{gat_forward.5} parent=0 // pred_fallthru
    _
  // Predicated region
  $region34: #{gat_forward.5} parent=0 // pred_check
    _
  $region35: #{gat_forward.5} parent=0 // pred_check_branch
    %1361 = sbr.rel (0) target = $region37
  $region36: #{gat_forward.5} parent=0 // pred_region
    _
  $region37: #{gat_forward.5} parent=0 // pred_fallthru
    _
  // Predicated region
  $region38: #{gat_forward.5} parent=0 // pred_check
    _
  $region39: #{gat_forward.5} parent=0 // pred_check_branch
    %1363 = sbr.rel (0) target = $region41
  $region40: #{gat_forward.5} parent=0 // pred_region
    _
  $region41: #{gat_forward.5} parent=0 // pred_fallthru
    _

// kernel: gat_forward.7
$region0: #{gat_forward.7}
  #allocation0 [shape = 'u32[]', space=smem, size = 0x4, offset = 0x4, fixed_abs, tag = 'smem constant byte address 0x4 - core index']
  #allocation1 [shape = 'u32[144,128]{1,0:T(1,128)}', space=vmem, size = 0x12000, scoped, tag = 'internal scratch']
  #allocation2 [shape = 'f32[128,1]{1,0:T(8,128)}', space=vmem, size = 0x10000, scoped, tag = 'scratch operand']
  #allocation3 [shape = 'f32[128,1]{1,0:T(8,128)}', space=vmem, size = 0x10000, scoped, tag = 'scratch operand']
  #allocation4 [shape = 'f32[128,128]{1,0:T(8,128)}', space=vmem, size = 0x10000, scoped, tag = 'scratch operand']
  #allocation5 [shape = 's32[1]{0}', space=sflag, size = 0x4, scoped, tag = 'scoped memory for gat_forward.7']
  #allocation6 [shape = 's32[1]{0:T(128)S(6)}', space=smem, size = 0x200, scoped, tag = 'prefetched SMEM operand 0']
  #allocation7 [shape = 's32[1]{0:T(128)S(6)}', space=smem, size = 0x200, scoped, tag = 'prefetched SMEM operand 1']
  %s0 = inlined_call_operand.<no memory space> [shape: s32[1], index: 0, kind: input, shape index: {}]
  %s1 = inlined_call_operand.<no memory space> [shape: s32[1], index: 1, kind: input, shape index: {}]
  %s2 = inlined_call_operand.vmem [shape: f32[128,1], index: 2, kind: input, shape index: {}]
  %s3 = inlined_call_operand.vmem [shape: f32[1,128], index: 3, kind: input, shape index: {}]
  %s4 = inlined_call_operand.vmem [shape: bf16[128,128], index: 4, kind: input, shape index: {}]
  %s5 = inlined_call_operand.vmem [shape: s8[128,128], index: 5, kind: input, shape index: {}]
  %s6 = inlined_call_operand.vmem [shape: f32[1,128], index: 6, kind: input, shape index: {}]
  %s7 = inlined_call_operand.vmem [shape: f32[128,128], index: 7, kind: output, shape index: {}]
  %s8 = sld [smem:[#allocation0]]
  $region42: #{gat_forward.7} parent=0
    _
  %s10 = ssub.s32 1, %s8
  %s11 = scalar_select 0, %s10, %s8
  %12 = sst [smem:[#allocation6]] %s0
  %13 = sst [smem:[#allocation7]] %s1
  // Predicated region
  $region2: #{gat_forward.7} parent=0 // pred_check
    _
  $region3: #{gat_forward.7} parent=0 // pred_check_branch
    %15 = sbr.rel (0) target = $region5
  $region4: #{gat_forward.7} parent=0 // pred_region
    _
  $region5: #{gat_forward.7} parent=0 // pred_fallthru
    _
  // Predicated region
  $region6: #{gat_forward.7} parent=0 // pred_check
    _
  $region7: #{gat_forward.7} parent=0 // pred_check_branch
    %17 = sbr.rel (0) target = $region9
  $region8: #{gat_forward.7} parent=0 // pred_region
    %s18 = sadd.s32 0, 0
    %s19 = sld [smem:[#allocation6 + %s18]]
    %p20 = scmp.lt.s32.totalorder %s19, 0
    %s21 = scalar_select %p20, %s19, 0
    %s22 = scalar_lea.vmem %s3, %s21
    %s23 = sadd.s32 0, 0
    %s24 = sld [smem:[#allocation6 + %s23]]
  $region9: #{gat_forward.7} parent=0 // pred_fallthru
    _
  // Predicated region
  $region10: #{gat_forward.7} parent=0 // pred_check
    _
  $region11: #{gat_forward.7} parent=0 // pred_check_branch
    %26 = sbr.rel (0) target = $region13
  $region12: #{gat_forward.7} parent=0 // pred_region
    _
  $region13: #{gat_forward.7} parent=0 // pred_fallthru
    _
  // Predicated region
  $region14: #{gat_forward.7} parent=0 // pred_check
    _
  $region15: #{gat_forward.7} parent=0 // pred_check_branch
    %28 = sbr.rel (0) target = $region17
  $region16: #{gat_forward.7} parent=0 // pred_region
    %s29 = sadd.s32 0, 0
    %s30 = sld [smem:[#allocation6 + %s29]]
    %p31 = scmp.lt.s32.totalorder %s30, 0
    %s32 = scalar_select %p31, %s30, 0
    %s33 = smul.addr %s32, 2
    %s34 = scalar_lea.vmem %s5, %s33
    %s35 = sadd.s32 0, 0
    %s36 = sld [smem:[#allocation6 + %s35]]
  $region17: #{gat_forward.7} parent=0 // pred_fallthru
    _
  // Predicated region
  $region18: #{gat_forward.7} parent=0 // pred_check
    _
  $region19: #{gat_forward.7} parent=0 // pred_check_branch
    %38 = sbr.rel (0) target = $region21
  $region20: #{gat_forward.7} parent=0 // pred_region
    _
  $region21: #{gat_forward.7} parent=0 // pred_fallthru
    _
  %s39 = sadd.s32 0, 0
  %s40 = sld [smem:[#allocation6 + %s39]]
  %p41 = scmp.lt.s32.totalorder %s40, 0
  %s42 = scalar_select %p41, %s40, 0
  %s43 = scalar_lea.vmem %s3, %s42
  %s44 = sadd.s32 0, 0
  %s45 = sld [smem:[#allocation6 + %s44]]
  %p46 = scmp.lt.s32.totalorder %s45, 0
  %s47 = scalar_select %p46, %s45, 0
  %s48 = smul.addr %s47, 2
  %s49 = scalar_lea.vmem %s5, %s48
  %s50 = sadd.s32 0, 0
  %s51 = sld [smem:[#allocation6 + %s50]]
  %p52 = scmp.lt.s32.totalorder %s51, 0
  %s53 = scalar_select %p52, %s51, 0
  %s54 = scalar_lea.vmem %s3, %s53
  %s55 = sadd.s32 0, 0
  %s56 = sld [smem:[#allocation6 + %s55]]
  %s57 = sadd.s32 0, 0
  %s58 = sld [smem:[#allocation6 + %s57]]
  %p59 = scmp.lt.s32.totalorder %s58, 0
  %s60 = scalar_select %p59, %s58, 0
  %s61 = smul.addr %s60, 2
  %s62 = scalar_lea.vmem %s5, %s61
  %s63 = sadd.s32 0, 0
  %s64 = sld [smem:[#allocation6 + %s63]]
  %s66 = sld [smem:[#allocation7]]
  %p67 = scmp.eq.s32.totalorder 0, 0
  // Predicated region
  $region22: #{gat_forward.7} parent=0 // pred_check
    %p68 = pneg %p67
  $region23: #{gat_forward.7} parent=0 // pred_check_branch
    %70 = sbr.rel (%p68) target = $region25
  $region24: #{gat_forward.7} parent=0 // pred_region
    %vm71 = vcmask 7168
    %72 = vst.msk [vmem:[#allocation2] sm:$0xff] %vm71, -1e+30
    %73 = vst.msk [vmem:[#allocation2 + $0x8] sm:$0xff] %vm71, -1e+30
    %74 = vst.msk [vmem:[#allocation2 + $0x10] sm:$0xff] %vm71, -1e+30
    %75 = vst.msk [vmem:[#allocation2 + $0x18] sm:$0xff] %vm71, -1e+30
    %76 = vst.msk [vmem:[#allocation2 + $0x20] sm:$0xff] %vm71, -1e+30
    %77 = vst.msk [vmem:[#allocation2 + $0x28] sm:$0xff] %vm71, -1e+30
    %78 = vst.msk [vmem:[#allocation2 + $0x30] sm:$0xff] %vm71, -1e+30
    %79 = vst.msk [vmem:[#allocation2 + $0x38] sm:$0xff] %vm71, -1e+30
    %80 = vst.msk [vmem:[#allocation2 + $0x40] sm:$0xff] %vm71, -1e+30
    %81 = vst.msk [vmem:[#allocation2 + $0x48] sm:$0xff] %vm71, -1e+30
    %82 = vst.msk [vmem:[#allocation2 + $0x50] sm:$0xff] %vm71, -1e+30
    %83 = vst.msk [vmem:[#allocation2 + $0x58] sm:$0xff] %vm71, -1e+30
    %84 = vst.msk [vmem:[#allocation2 + $0x60] sm:$0xff] %vm71, -1e+30
    %85 = vst.msk [vmem:[#allocation2 + $0x68] sm:$0xff] %vm71, -1e+30
    %86 = vst.msk [vmem:[#allocation2 + $0x70] sm:$0xff] %vm71, -1e+30
    %87 = vst.msk [vmem:[#allocation2 + $0x78] sm:$0xff] %vm71, -1e+30
    %88 = vst.msk [vmem:[#allocation3] sm:$0xff] %vm71, 0.0
    %89 = vst.msk [vmem:[#allocation3 + $0x8] sm:$0xff] %vm71, 0.0
    %90 = vst.msk [vmem:[#allocation3 + $0x10] sm:$0xff] %vm71, 0.0
    %91 = vst.msk [vmem:[#allocation3 + $0x18] sm:$0xff] %vm71, 0.0
    %92 = vst.msk [vmem:[#allocation3 + $0x20] sm:$0xff] %vm71, 0.0
    %93 = vst.msk [vmem:[#allocation3 + $0x28] sm:$0xff] %vm71, 0.0
    %94 = vst.msk [vmem:[#allocation3 + $0x30] sm:$0xff] %vm71, 0.0
    %95 = vst.msk [vmem:[#allocation3 + $0x38] sm:$0xff] %vm71, 0.0
    %96 = vst.msk [vmem:[#allocation3 + $0x40] sm:$0xff] %vm71, 0.0
    %97 = vst.msk [vmem:[#allocation3 + $0x48] sm:$0xff] %vm71, 0.0
    %98 = vst.msk [vmem:[#allocation3 + $0x50] sm:$0xff] %vm71, 0.0
    %99 = vst.msk [vmem:[#allocation3 + $0x58] sm:$0xff] %vm71, 0.0
    %100 = vst.msk [vmem:[#allocation3 + $0x60] sm:$0xff] %vm71, 0.0
    %101 = vst.msk [vmem:[#allocation3 + $0x68] sm:$0xff] %vm71, 0.0
    %102 = vst.msk [vmem:[#allocation3 + $0x70] sm:$0xff] %vm71, 0.0
    %103 = vst.msk [vmem:[#allocation3 + $0x78] sm:$0xff] %vm71, 0.0
    %104 = vst [vmem:[#allocation4] sm:$0xff] 0.0
    %105 = vst [vmem:[#allocation4 + $0x8] sm:$0xff] 0.0
    %106 = vst [vmem:[#allocation4 + $0x10] sm:$0xff] 0.0
    %107 = vst [vmem:[#allocation4 + $0x18] sm:$0xff] 0.0
    %108 = vst [vmem:[#allocation4 + $0x20] sm:$0xff] 0.0
    %109 = vst [vmem:[#allocation4 + $0x28] sm:$0xff] 0.0
    %110 = vst [vmem:[#allocation4 + $0x30] sm:$0xff] 0.0
    %111 = vst [vmem:[#allocation4 + $0x38] sm:$0xff] 0.0
    %112 = vst [vmem:[#allocation4 + $0x40] sm:$0xff] 0.0
    %113 = vst [vmem:[#allocation4 + $0x48] sm:$0xff] 0.0
    %114 = vst [vmem:[#allocation4 + $0x50] sm:$0xff] 0.0
    %115 = vst [vmem:[#allocation4 + $0x58] sm:$0xff] 0.0
    %116 = vst [vmem:[#allocation4 + $0x60] sm:$0xff] 0.0
    %117 = vst [vmem:[#allocation4 + $0x68] sm:$0xff] 0.0
    %118 = vst [vmem:[#allocation4 + $0x70] sm:$0xff] 0.0
    %119 = vst [vmem:[#allocation4 + $0x78] sm:$0xff] 0.0
  $region25: #{gat_forward.7} parent=0 // pred_fallthru
    _
  %p120 = scmp.lt.s32.totalorder 0, %s66
  // Predicated region
  $region26: #{gat_forward.7} parent=0 // pred_check
    %p121 = pneg %p120
  $region27: #{gat_forward.7} parent=0 // pred_check_branch
    %123 = sbr.rel (%p121) target = $region29
  $region28: #{gat_forward.7} parent=0 // pred_region
    %v124 = vld [vmem:[%s2] sm:$0xff]
    %v125 = vld [vmem:[%s2 + $0x8] sm:$0xff]
    %v126 = vld [vmem:[%s2 + $0x10] sm:$0xff]
    %v127 = vld [vmem:[%s2 + $0x18] sm:$0xff]
    %v128 = vld [vmem:[%s2 + $0x20] sm:$0xff]
    %v129 = vld [vmem:[%s2 + $0x28] sm:$0xff]
    %v130 = vld [vmem:[%s2 + $0x30] sm:$0xff]
    %v131 = vld [vmem:[%s2 + $0x38] sm:$0xff]
    %v132 = vld [vmem:[%s2 + $0x40] sm:$0xff]
    %v133 = vld [vmem:[%s2 + $0x48] sm:$0xff]
    %v134 = vld [vmem:[%s2 + $0x50] sm:$0xff]
    %v135 = vld [vmem:[%s2 + $0x58] sm:$0xff]
    %v136 = vld [vmem:[%s2 + $0x60] sm:$0xff]
    %v137 = vld [vmem:[%s2 + $0x68] sm:$0xff]
    %v138 = vld [vmem:[%s2 + $0x70] sm:$0xff]
    %v139 = vld [vmem:[%s2 + $0x78] sm:$0xff]
    %v140 = vld [vmem:[%s54] sm:$0x1]
    %142 = vset.pattern.permute.xlu0 0
    %143 = vperm.xlu0 %142, %v124
    %v144 = vpop.permute.xlu0 %143
    %147 = vset.pattern.permute.xlu0 0
    %148 = vperm.xlu0 %147, %v125
    %v149 = vpop.permute.xlu0 %148
    %152 = vset.pattern.permute.xlu0 0
    %153 = vperm.xlu0 %152, %v126
    %v154 = vpop.permute.xlu0 %153
    %157 = vset.pattern.permute.xlu0 0
    %158 = vperm.xlu0 %157, %v127
    %v159 = vpop.permute.xlu0 %158
    %162 = vset.pattern.permute.xlu0 0
    %163 = vperm.xlu0 %162, %v128
    %v164 = vpop.permute.xlu0 %163
    %167 = vset.pattern.permute.xlu0 0
    %168 = vperm.xlu0 %167, %v129
    %v169 = vpop.permute.xlu0 %168
    %172 = vset.pattern.permute.xlu0 0
    %173 = vperm.xlu0 %172, %v130
    %v174 = vpop.permute.xlu0 %173
    %177 = vset.pattern.permute.xlu0 0
    %178 = vperm.xlu0 %177, %v131
    %v179 = vpop.permute.xlu0 %178
    %182 = vset.pattern.permute.xlu0 0
    %183 = vperm.xlu0 %182, %v132
    %v184 = vpop.permute.xlu0 %183
    %187 = vset.pattern.permute.xlu0 0
    %188 = vperm.xlu0 %187, %v133
    %v189 = vpop.permute.xlu0 %188
    %192 = vset.pattern.permute.xlu0 0
    %193 = vperm.xlu0 %192, %v134
    %v194 = vpop.permute.xlu0 %193
    %197 = vset.pattern.permute.xlu0 0
    %198 = vperm.xlu0 %197, %v135
    %v199 = vpop.permute.xlu0 %198
    %202 = vset.pattern.permute.xlu0 0
    %203 = vperm.xlu0 %202, %v136
    %v204 = vpop.permute.xlu0 %203
    %207 = vset.pattern.permute.xlu0 0
    %208 = vperm.xlu0 %207, %v137
    %v209 = vpop.permute.xlu0 %208
    %212 = vset.pattern.permute.xlu0 0
    %213 = vperm.xlu0 %212, %v138
    %v214 = vpop.permute.xlu0 %213
    %217 = vset.pattern.permute.xlu0 0
    %218 = vperm.xlu0 %217, %v139
    %v219 = vpop.permute.xlu0 %218
    %v222 = vlaneseq
    %v223 = vshrl.u32 %v222, 7
    %v224 = vsub.s32 0, %v223
    %v225 = vrot.slane %v140, %v224
    %v227 = vadd.f32 %v144, %v225
    %v228 = vadd.f32 %v149, %v225
    %v229 = vadd.f32 %v154, %v225
    %v230 = vadd.f32 %v159, %v225
    %v231 = vadd.f32 %v164, %v225
    %v232 = vadd.f32 %v169, %v225
    %v233 = vadd.f32 %v174, %v225
    %v234 = vadd.f32 %v179, %v225
    %v235 = vadd.f32 %v184, %v225
    %v236 = vadd.f32 %v189, %v225
    %v237 = vadd.f32 %v194, %v225
    %v238 = vadd.f32 %v199, %v225
    %v239 = vadd.f32 %v204, %v225
    %v240 = vadd.f32 %v209, %v225
    %v241 = vadd.f32 %v214, %v225
    %v242 = vadd.f32 %v219, %v225
    %v243 = vmul.f32 %v227, 0.2
    %v244 = vmul.f32 %v228, 0.2
    %v245 = vmul.f32 %v229, 0.2
    %v246 = vmul.f32 %v230, 0.2
    %v247 = vmul.f32 %v231, 0.2
    %v248 = vmul.f32 %v232, 0.2
    %v249 = vmul.f32 %v233, 0.2
    %v250 = vmul.f32 %v234, 0.2
    %v251 = vmul.f32 %v235, 0.2
    %v252 = vmul.f32 %v236, 0.2
    %v253 = vmul.f32 %v237, 0.2
    %v254 = vmul.f32 %v238, 0.2
    %v255 = vmul.f32 %v239, 0.2
    %v256 = vmul.f32 %v240, 0.2
    %v257 = vmul.f32 %v241, 0.2
    %v258 = vmul.f32 %v242, 0.2
    %v259 = vmax.f32 %v227, %v243
    %v260 = vmax.f32 %v228, %v244
    %v261 = vmax.f32 %v229, %v245
    %v262 = vmax.f32 %v230, %v246
    %v263 = vmax.f32 %v231, %v247
    %v264 = vmax.f32 %v232, %v248
    %v265 = vmax.f32 %v233, %v249
    %v266 = vmax.f32 %v234, %v250
    %v267 = vmax.f32 %v235, %v251
    %v268 = vmax.f32 %v236, %v252
    %v269 = vmax.f32 %v237, %v253
    %v270 = vmax.f32 %v238, %v254
    %v271 = vmax.f32 %v239, %v255
    %v272 = vmax.f32 %v240, %v256
    %v273 = vmax.f32 %v241, %v257
    %v274 = vmax.f32 %v242, %v258
    %v275 = vld [vmem:[#allocation2] sm:$0xff]
    %v276 = vld [vmem:[#allocation2 + $0x8] sm:$0xff]
    %v277 = vld [vmem:[#allocation2 + $0x10] sm:$0xff]
    %v278 = vld [vmem:[#allocation2 + $0x18] sm:$0xff]
    %v279 = vld [vmem:[#allocation2 + $0x20] sm:$0xff]
    %v280 = vld [vmem:[#allocation2 + $0x28] sm:$0xff]
    %v281 = vld [vmem:[#allocation2 + $0x30] sm:$0xff]
    %v282 = vld [vmem:[#allocation2 + $0x38] sm:$0xff]
    %v283 = vld [vmem:[#allocation2 + $0x40] sm:$0xff]
    %v284 = vld [vmem:[#allocation2 + $0x48] sm:$0xff]
    %v285 = vld [vmem:[#allocation2 + $0x50] sm:$0xff]
    %v286 = vld [vmem:[#allocation2 + $0x58] sm:$0xff]
    %v287 = vld [vmem:[#allocation2 + $0x60] sm:$0xff]
    %v288 = vld [vmem:[#allocation2 + $0x68] sm:$0xff]
    %v289 = vld [vmem:[#allocation2 + $0x70] sm:$0xff]
    %v290 = vld [vmem:[#allocation2 + $0x78] sm:$0xff]
    %291 = vmax.xlane.f32.xlu0 %v259
    %v292 = vpop.xlane.xlu0 %291
    %293 = vmax.xlane.f32.xlu0 %v260
    %v294 = vpop.xlane.xlu0 %293
    %295 = vmax.xlane.f32.xlu0 %v261
    %v296 = vpop.xlane.xlu0 %295
    %297 = vmax.xlane.f32.xlu0 %v262
    %v298 = vpop.xlane.xlu0 %297
    %299 = vmax.xlane.f32.xlu0 %v263
    %v300 = vpop.xlane.xlu0 %299
    %301 = vmax.xlane.f32.xlu0 %v264
    %v302 = vpop.xlane.xlu0 %301
    %303 = vmax.xlane.f32.xlu0 %v265
    %v304 = vpop.xlane.xlu0 %303
    %305 = vmax.xlane.f32.xlu0 %v266
    %v306 = vpop.xlane.xlu0 %305
    %307 = vmax.xlane.f32.xlu0 %v267
    %v308 = vpop.xlane.xlu0 %307
    %309 = vmax.xlane.f32.xlu0 %v268
    %v310 = vpop.xlane.xlu0 %309
    %311 = vmax.xlane.f32.xlu0 %v269
    %v312 = vpop.xlane.xlu0 %311
    %313 = vmax.xlane.f32.xlu0 %v270
    %v314 = vpop.xlane.xlu0 %313
    %315 = vmax.xlane.f32.xlu0 %v271
    %v316 = vpop.xlane.xlu0 %315
    %317 = vmax.xlane.f32.xlu0 %v272
    %v318 = vpop.xlane.xlu0 %317
    %319 = vmax.xlane.f32.xlu0 %v273
    %v320 = vpop.xlane.xlu0 %319
    %321 = vmax.xlane.f32.xlu0 %v274
    %v322 = vpop.xlane.xlu0 %321
    %v323 = vmax.f32 %v275, %v292
    %v324 = vmax.f32 %v276, %v294
    %v325 = vmax.f32 %v277, %v296
    %v326 = vmax.f32 %v278, %v298
    %v327 = vmax.f32 %v279, %v300
    %v328 = vmax.f32 %v280, %v302
    %v329 = vmax.f32 %v281, %v304
    %v330 = vmax.f32 %v282, %v306
    %v331 = vmax.f32 %v283, %v308
    %v332 = vmax.f32 %v284, %v310
    %v333 = vmax.f32 %v285, %v312
    %v334 = vmax.f32 %v286, %v314
    %v335 = vmax.f32 %v287, %v316
    %v336 = vmax.f32 %v288, %v318
    %v337 = vmax.f32 %v289, %v320
    %v338 = vmax.f32 %v290, %v322
    %v339 = vsub.f32 %v275, %v323
    %v340 = vsub.f32 %v276, %v324
    %v341 = vsub.f32 %v277, %v325
    %v342 = vsub.f32 %v278, %v326
    %v343 = vsub.f32 %v279, %v327
    %v344 = vsub.f32 %v280, %v328
    %v345 = vsub.f32 %v281, %v329
    %v346 = vsub.f32 %v282, %v330
    %v347 = vsub.f32 %v283, %v331
    %v348 = vsub.f32 %v284, %v332
    %v349 = vsub.f32 %v285, %v333
    %v350 = vsub.f32 %v286, %v334
    %v351 = vsub.f32 %v287, %v335
    %v352 = vsub.f32 %v288, %v336
    %v353 = vsub.f32 %v289, %v337
    %v354 = vsub.f32 %v290, %v338
    %v355 = vmul.f32 %v339, 1.442695
    %v356 = vpow.pop %v355
    %v357 = vmul.f32 %v340, 1.442695
    %v358 = vpow.pop %v357
    %v359 = vmul.f32 %v341, 1.442695
    %v360 = vpow.pop %v359
    %v361 = vmul.f32 %v342, 1.442695
    %v362 = vpow.pop %v361
    %v363 = vmul.f32 %v343, 1.442695
    %v364 = vpow.pop %v363
    %v365 = vmul.f32 %v344, 1.442695
    %v366 = vpow.pop %v365
    %v367 = vmul.f32 %v345, 1.442695
    %v368 = vpow.pop %v367
    %v369 = vmul.f32 %v346, 1.442695
    %v370 = vpow.pop %v369
    %v371 = vmul.f32 %v347, 1.442695
    %v372 = vpow.pop %v371
    %v373 = vmul.f32 %v348, 1.442695
    %v374 = vpow.pop %v373
    %v375 = vmul.f32 %v349, 1.442695
    %v376 = vpow.pop %v375
    %v377 = vmul.f32 %v350, 1.442695
    %v378 = vpow.pop %v377
    %v379 = vmul.f32 %v351, 1.442695
    %v380 = vpow.pop %v379
    %v381 = vmul.f32 %v352, 1.442695
    %v382 = vpow.pop %v381
    %v383 = vmul.f32 %v353, 1.442695
    %v384 = vpow.pop %v383
    %v385 = vmul.f32 %v354, 1.442695
    %v386 = vpow.pop %v385
    %388 = vset.pattern.permute.xlu0 0
    %389 = vperm.xlu0 %388, %v323
    %v390 = vpop.permute.xlu0 %389
    %393 = vset.pattern.permute.xlu0 0
    %394 = vperm.xlu0 %393, %v324
    %v395 = vpop.permute.xlu0 %394
    %398 = vset.pattern.permute.xlu0 0
    %399 = vperm.xlu0 %398, %v325
    %v400 = vpop.permute.xlu0 %399
    %403 = vset.pattern.permute.xlu0 0
    %404 = vperm.xlu0 %403, %v326
    %v405 = vpop.permute.xlu0 %404
    %408 = vset.pattern.permute.xlu0 0
    %409 = vperm.xlu0 %408, %v327
    %v410 = vpop.permute.xlu0 %409
    %413 = vset.pattern.permute.xlu0 0
    %414 = vperm.xlu0 %413, %v328
    %v415 = vpop.permute.xlu0 %414
    %418 = vset.pattern.permute.xlu0 0
    %419 = vperm.xlu0 %418, %v329
    %v420 = vpop.permute.xlu0 %419
    %423 = vset.pattern.permute.xlu0 0
    %424 = vperm.xlu0 %423, %v330
    %v425 = vpop.permute.xlu0 %424
    %428 = vset.pattern.permute.xlu0 0
    %429 = vperm.xlu0 %428, %v331
    %v430 = vpop.permute.xlu0 %429
    %433 = vset.pattern.permute.xlu0 0
    %434 = vperm.xlu0 %433, %v332
    %v435 = vpop.permute.xlu0 %434
    %438 = vset.pattern.permute.xlu0 0
    %439 = vperm.xlu0 %438, %v333
    %v440 = vpop.permute.xlu0 %439
    %443 = vset.pattern.permute.xlu0 0
    %444 = vperm.xlu0 %443, %v334
    %v445 = vpop.permute.xlu0 %444
    %448 = vset.pattern.permute.xlu0 0
    %449 = vperm.xlu0 %448, %v335
    %v450 = vpop.permute.xlu0 %449
    %453 = vset.pattern.permute.xlu0 0
    %454 = vperm.xlu0 %453, %v336
    %v455 = vpop.permute.xlu0 %454
    %458 = vset.pattern.permute.xlu0 0
    %459 = vperm.xlu0 %458, %v337
    %v460 = vpop.permute.xlu0 %459
    %463 = vset.pattern.permute.xlu0 0
    %464 = vperm.xlu0 %463, %v338
    %v465 = vpop.permute.xlu0 %464
    %v467 = vsub.f32 %v259, %v390
    %v468 = vsub.f32 %v260, %v395
    %v469 = vsub.f32 %v261, %v400
    %v470 = vsub.f32 %v262, %v405
    %v471 = vsub.f32 %v263, %v410
    %v472 = vsub.f32 %v264, %v415
    %v473 = vsub.f32 %v265, %v420
    %v474 = vsub.f32 %v266, %v425
    %v475 = vsub.f32 %v267, %v430
    %v476 = vsub.f32 %v268, %v435
    %v477 = vsub.f32 %v269, %v440
    %v478 = vsub.f32 %v270, %v445
    %v479 = vsub.f32 %v271, %v450
    %v480 = vsub.f32 %v272, %v455
    %v481 = vsub.f32 %v273, %v460
    %v482 = vsub.f32 %v274, %v465
    %v483 = vmul.f32 %v467, 1.442695
    %v484 = vpow.pop %v483
    %v485 = vmul.f32 %v468, 1.442695
    %v486 = vpow.pop %v485
    %v487 = vmul.f32 %v469, 1.442695
    %v488 = vpow.pop %v487
    %v489 = vmul.f32 %v470, 1.442695
    %v490 = vpow.pop %v489
    %v491 = vmul.f32 %v471, 1.442695
    %v492 = vpow.pop %v491
    %v493 = vmul.f32 %v472, 1.442695
    %v494 = vpow.pop %v493
    %v495 = vmul.f32 %v473, 1.442695
    %v496 = vpow.pop %v495
    %v497 = vmul.f32 %v474, 1.442695
    %v498 = vpow.pop %v497
    %v499 = vmul.f32 %v475, 1.442695
    %v500 = vpow.pop %v499
    %v501 = vmul.f32 %v476, 1.442695
    %v502 = vpow.pop %v501
    %v503 = vmul.f32 %v477, 1.442695
    %v504 = vpow.pop %v503
    %v505 = vmul.f32 %v478, 1.442695
    %v506 = vpow.pop %v505
    %v507 = vmul.f32 %v479, 1.442695
    %v508 = vpow.pop %v507
    %v509 = vmul.f32 %v480, 1.442695
    %v510 = vpow.pop %v509
    %v511 = vmul.f32 %v481, 1.442695
    %v512 = vpow.pop %v511
    %v513 = vmul.f32 %v482, 1.442695
    %v514 = vpow.pop %v513
    %v515 = vld [vmem:[%s62] sm:$0x3]
    %v516 = vld [vmem:[%s62 + $0x2] sm:$0x3]
    %v517 = vld [vmem:[%s62 + $0x4] sm:$0x3]
    %v518 = vld [vmem:[%s62 + $0x6] sm:$0x3]
    %v519 = vld [vmem:[%s62 + $0x8] sm:$0x3]
    %v520 = vld [vmem:[%s62 + $0xa] sm:$0x3]
    %v521 = vld [vmem:[%s62 + $0xc] sm:$0x3]
    %v522 = vld [vmem:[%s62 + $0xe] sm:$0x3]
    %v523 = vld [vmem:[%s62 + $0x10] sm:$0x3]
    %v524 = vld [vmem:[%s62 + $0x12] sm:$0x3]
    %v525 = vld [vmem:[%s62 + $0x14] sm:$0x3]
    %v526 = vld [vmem:[%s62 + $0x16] sm:$0x3]
    %v527 = vld [vmem:[%s62 + $0x18] sm:$0x3]
    %v528 = vld [vmem:[%s62 + $0x1a] sm:$0x3]
    %v529 = vld [vmem:[%s62 + $0x1c] sm:$0x3]
    %v530 = vld [vmem:[%s62 + $0x1e] sm:$0x3]
    %v531 = vunpack.c.0.s8 %v515
    %v532 = vunpack.c.0.s8 %v516
    %v533 = vunpack.c.0.s8 %v517
    %v534 = vunpack.c.0.s8 %v518
    %v535 = vunpack.c.0.s8 %v519
    %v536 = vunpack.c.0.s8 %v520
    %v537 = vunpack.c.0.s8 %v521
    %v538 = vunpack.c.0.s8 %v522
    %v539 = vunpack.c.0.s8 %v523
    %v540 = vunpack.c.0.s8 %v524
    %v541 = vunpack.c.0.s8 %v525
    %v542 = vunpack.c.0.s8 %v526
    %v543 = vunpack.c.0.s8 %v527
    %v544 = vunpack.c.0.s8 %v528
    %v545 = vunpack.c.0.s8 %v529
    %v546 = vunpack.c.0.s8 %v530
    %v547 = vcvt.s32.f32 %v531
    %v548 = vcvt.s32.f32 %v532
    %v549 = vcvt.s32.f32 %v533
    %v550 = vcvt.s32.f32 %v534
    %v551 = vcvt.s32.f32 %v535
    %v552 = vcvt.s32.f32 %v536
    %v553 = vcvt.s32.f32 %v537
    %v554 = vcvt.s32.f32 %v538
    %v555 = vcvt.s32.f32 %v539
    %v556 = vcvt.s32.f32 %v540
    %v557 = vcvt.s32.f32 %v541
    %v558 = vcvt.s32.f32 %v542
    %v559 = vcvt.s32.f32 %v543
    %v560 = vcvt.s32.f32 %v544
    %v561 = vcvt.s32.f32 %v545
    %v562 = vcvt.s32.f32 %v546
    %v563 = vmul.f32 %v484, %v547
    %v564 = vmul.f32 %v486, %v548
    %v565 = vmul.f32 %v488, %v549
    %v566 = vmul.f32 %v490, %v550
    %v567 = vmul.f32 %v492, %v551
    %v568 = vmul.f32 %v494, %v552
    %v569 = vmul.f32 %v496, %v553
    %v570 = vmul.f32 %v498, %v554
    %v571 = vmul.f32 %v500, %v555
    %v572 = vmul.f32 %v502, %v556
    %v573 = vmul.f32 %v504, %v557
    %v574 = vmul.f32 %v506, %v558
    %v575 = vmul.f32 %v508, %v559
    %v576 = vmul.f32 %v510, %v560
    %v577 = vmul.f32 %v512, %v561
    %v578 = vmul.f32 %v514, %v562
    %v579 = vld [vmem:[#allocation3] sm:$0xff]
    %v580 = vld [vmem:[#allocation3 + $0x8] sm:$0xff]
    %v581 = vld [vmem:[#allocation3 + $0x10] sm:$0xff]
    %v582 = vld [vmem:[#allocation3 + $0x18] sm:$0xff]
    %v583 = vld [vmem:[#allocation3 + $0x20] sm:$0xff]
    %v584 = vld [vmem:[#allocation3 + $0x28] sm:$0xff]
    %v585 = vld [vmem:[#allocation3 + $0x30] sm:$0xff]
    %v586 = vld [vmem:[#allocation3 + $0x38] sm:$0xff]
    %v587 = vld [vmem:[#allocation3 + $0x40] sm:$0xff]
    %v588 = vld [vmem:[#allocation3 + $0x48] sm:$0xff]
    %v589 = vld [vmem:[#allocation3 + $0x50] sm:$0xff]
    %v590 = vld [vmem:[#allocation3 + $0x58] sm:$0xff]
    %v591 = vld [vmem:[#allocation3 + $0x60] sm:$0xff]
    %v592 = vld [vmem:[#allocation3 + $0x68] sm:$0xff]
    %v593 = vld [vmem:[#allocation3 + $0x70] sm:$0xff]
    %v594 = vld [vmem:[#allocation3 + $0x78] sm:$0xff]
    %v595 = vmul.f32 %v356, %v579
    %v596 = vmul.f32 %v358, %v580
    %v597 = vmul.f32 %v360, %v581
    %v598 = vmul.f32 %v362, %v582
    %v599 = vmul.f32 %v364, %v583
    %v600 = vmul.f32 %v366, %v584
    %v601 = vmul.f32 %v368, %v585
    %v602 = vmul.f32 %v370, %v586
    %v603 = vmul.f32 %v372, %v587
    %v604 = vmul.f32 %v374, %v588
    %v605 = vmul.f32 %v376, %v589
    %v606 = vmul.f32 %v378, %v590
    %v607 = vmul.f32 %v380, %v591
    %v608 = vmul.f32 %v382, %v592
    %v609 = vmul.f32 %v384, %v593
    %v610 = vmul.f32 %v386, %v594
    %611 = vadd.xlane.f32.xlu0 %v563
    %v612 = vpop.xlane.xlu0 %611
    %613 = vadd.xlane.f32.xlu0 %v564
    %v614 = vpop.xlane.xlu0 %613
    %615 = vadd.xlane.f32.xlu0 %v565
    %v616 = vpop.xlane.xlu0 %615
    %617 = vadd.xlane.f32.xlu0 %v566
    %v618 = vpop.xlane.xlu0 %617
    %619 = vadd.xlane.f32.xlu0 %v567
    %v620 = vpop.xlane.xlu0 %619
    %621 = vadd.xlane.f32.xlu0 %v568
    %v622 = vpop.xlane.xlu0 %621
    %623 = vadd.xlane.f32.xlu0 %v569
    %v624 = vpop.xlane.xlu0 %623
    %625 = vadd.xlane.f32.xlu0 %v570
    %v626 = vpop.xlane.xlu0 %625
    %627 = vadd.xlane.f32.xlu0 %v571
    %v628 = vpop.xlane.xlu0 %627
    %629 = vadd.xlane.f32.xlu0 %v572
    %v630 = vpop.xlane.xlu0 %629
    %631 = vadd.xlane.f32.xlu0 %v573
    %v632 = vpop.xlane.xlu0 %631
    %633 = vadd.xlane.f32.xlu0 %v574
    %v634 = vpop.xlane.xlu0 %633
    %635 = vadd.xlane.f32.xlu0 %v575
    %v636 = vpop.xlane.xlu0 %635
    %637 = vadd.xlane.f32.xlu0 %v576
    %v638 = vpop.xlane.xlu0 %637
    %639 = vadd.xlane.f32.xlu0 %v577
    %v640 = vpop.xlane.xlu0 %639
    %641 = vadd.xlane.f32.xlu0 %v578
    %v642 = vpop.xlane.xlu0 %641
    %v643 = vadd.f32 %v595, %v612
    %v644 = vadd.f32 %v596, %v614
    %v645 = vadd.f32 %v597, %v616
    %v646 = vadd.f32 %v598, %v618
    %v647 = vadd.f32 %v599, %v620
    %v648 = vadd.f32 %v600, %v622
    %v649 = vadd.f32 %v601, %v624
    %v650 = vadd.f32 %v602, %v626
    %v651 = vadd.f32 %v603, %v628
    %v652 = vadd.f32 %v604, %v630
    %v653 = vadd.f32 %v605, %v632
    %v654 = vadd.f32 %v606, %v634
    %v655 = vadd.f32 %v607, %v636
    %v656 = vadd.f32 %v608, %v638
    %v657 = vadd.f32 %v609, %v640
    %v658 = vadd.f32 %v610, %v642
    %vm659 = vcmask 7168
    %660 = vst.msk [vmem:[#allocation3] sm:$0xff] %vm659, %v643
    %661 = vst.msk [vmem:[#allocation3 + $0x8] sm:$0xff] %vm659, %v644
    %662 = vst.msk [vmem:[#allocation3 + $0x10] sm:$0xff] %vm659, %v645
    %663 = vst.msk [vmem:[#allocation3 + $0x18] sm:$0xff] %vm659, %v646
    %664 = vst.msk [vmem:[#allocation3 + $0x20] sm:$0xff] %vm659, %v647
    %665 = vst.msk [vmem:[#allocation3 + $0x28] sm:$0xff] %vm659, %v648
    %666 = vst.msk [vmem:[#allocation3 + $0x30] sm:$0xff] %vm659, %v649
    %667 = vst.msk [vmem:[#allocation3 + $0x38] sm:$0xff] %vm659, %v650
    %668 = vst.msk [vmem:[#allocation3 + $0x40] sm:$0xff] %vm659, %v651
    %669 = vst.msk [vmem:[#allocation3 + $0x48] sm:$0xff] %vm659, %v652
    %670 = vst.msk [vmem:[#allocation3 + $0x50] sm:$0xff] %vm659, %v653
    %671 = vst.msk [vmem:[#allocation3 + $0x58] sm:$0xff] %vm659, %v654
    %672 = vst.msk [vmem:[#allocation3 + $0x60] sm:$0xff] %vm659, %v655
    %673 = vst.msk [vmem:[#allocation3 + $0x68] sm:$0xff] %vm659, %v656
    %674 = vst.msk [vmem:[#allocation3 + $0x70] sm:$0xff] %vm659, %v657
    %675 = vst.msk [vmem:[#allocation3 + $0x78] sm:$0xff] %vm659, %v658
    %s676 = sadd.s32 0, 0
    %s677 = sld [smem:[#allocation6 + %s676]]
    %s678 = smul.u32 %s677, 128
    %s679 = sshra.s32 %s678, 3
    %s680 = sand.u32 %s678, 7
    %s681 = smul.addr %s679, 4
    %s682 = scalar_lea.vmem %s4, %s681
    %v683 = vld [vmem:[%s682] sm:$0xf]
    %v684 = vld [vmem:[%s682 + $0x4] sm:$0xf]
    %v685 = vld [vmem:[%s682 + $0x8] sm:$0xf]
    %v686 = vld [vmem:[%s682 + $0xc] sm:$0xf]
    %v687 = vld [vmem:[%s682 + $0x10] sm:$0xf]
    %v688 = vld [vmem:[%s682 + $0x14] sm:$0xf]
    %v689 = vld [vmem:[%s682 + $0x18] sm:$0xf]
    %v690 = vld [vmem:[%s682 + $0x1c] sm:$0xf]
    %v691 = vld [vmem:[%s682 + $0x20] sm:$0xf]
    %v692 = vld [vmem:[%s682 + $0x24] sm:$0xf]
    %v693 = vld [vmem:[%s682 + $0x28] sm:$0xf]
    %v694 = vld [vmem:[%s682 + $0x2c] sm:$0xf]
    %v695 = vld [vmem:[%s682 + $0x30] sm:$0xf]
    %v696 = vld [vmem:[%s682 + $0x34] sm:$0xf]
    %v697 = vld [vmem:[%s682 + $0x38] sm:$0xf]
    %v698 = vld [vmem:[%s682 + $0x3c] sm:$0xf]
    %v699 = vld [vmem:[#allocation4] sm:$0xff]
    %v700 = vld [vmem:[#allocation4 + $0x8] sm:$0xff]
    %v701 = vld [vmem:[#allocation4 + $0x10] sm:$0xff]
    %v702 = vld [vmem:[#allocation4 + $0x18] sm:$0xff]
    %v703 = vld [vmem:[#allocation4 + $0x20] sm:$0xff]
    %v704 = vld [vmem:[#allocation4 + $0x28] sm:$0xff]
    %v705 = vld [vmem:[#allocation4 + $0x30] sm:$0xff]
    %v706 = vld [vmem:[#allocation4 + $0x38] sm:$0xff]
    %v707 = vld [vmem:[#allocation4 + $0x40] sm:$0xff]
    %v708 = vld [vmem:[#allocation4 + $0x48] sm:$0xff]
    %v709 = vld [vmem:[#allocation4 + $0x50] sm:$0xff]
    %v710 = vld [vmem:[#allocation4 + $0x58] sm:$0xff]
    %v711 = vld [vmem:[#allocation4 + $0x60] sm:$0xff]
    %v712 = vld [vmem:[#allocation4 + $0x68] sm:$0xff]
    %v713 = vld [vmem:[#allocation4 + $0x70] sm:$0xff]
    %v714 = vld [vmem:[#allocation4 + $0x78] sm:$0xff]
    %716 = vset.pattern.permute.xlu0 0
    %717 = vperm.xlu0 %716, %v356
    %v718 = vpop.permute.xlu0 %717
    %721 = vset.pattern.permute.xlu0 0
    %722 = vperm.xlu0 %721, %v358
    %v723 = vpop.permute.xlu0 %722
    %726 = vset.pattern.permute.xlu0 0
    %727 = vperm.xlu0 %726, %v360
    %v728 = vpop.permute.xlu0 %727
    %731 = vset.pattern.permute.xlu0 0
    %732 = vperm.xlu0 %731, %v362
    %v733 = vpop.permute.xlu0 %732
    %736 = vset.pattern.permute.xlu0 0
    %737 = vperm.xlu0 %736, %v364
    %v738 = vpop.permute.xlu0 %737
    %741 = vset.pattern.permute.xlu0 0
    %742 = vperm.xlu0 %741, %v366
    %v743 = vpop.permute.xlu0 %742
    %746 = vset.pattern.permute.xlu0 0
    %747 = vperm.xlu0 %746, %v368
    %v748 = vpop.permute.xlu0 %747
    %751 = vset.pattern.permute.xlu0 0
    %752 = vperm.xlu0 %751, %v370
    %v753 = vpop.permute.xlu0 %752
    %756 = vset.pattern.permute.xlu0 0
    %757 = vperm.xlu0 %756, %v372
    %v758 = vpop.permute.xlu0 %757
    %761 = vset.pattern.permute.xlu0 0
    %762 = vperm.xlu0 %761, %v374
    %v763 = vpop.permute.xlu0 %762
    %766 = vset.pattern.permute.xlu0 0
    %767 = vperm.xlu0 %766, %v376
    %v768 = vpop.permute.xlu0 %767
    %771 = vset.pattern.permute.xlu0 0
    %772 = vperm.xlu0 %771, %v378
    %v773 = vpop.permute.xlu0 %772
    %776 = vset.pattern.permute.xlu0 0
    %777 = vperm.xlu0 %776, %v380
    %v778 = vpop.permute.xlu0 %777
    %781 = vset.pattern.permute.xlu0 0
    %782 = vperm.xlu0 %781, %v382
    %v783 = vpop.permute.xlu0 %782
    %786 = vset.pattern.permute.xlu0 0
    %787 = vperm.xlu0 %786, %v384
    %v788 = vpop.permute.xlu0 %787
    %791 = vset.pattern.permute.xlu0 0
    %792 = vperm.xlu0 %791, %v386
    %v793 = vpop.permute.xlu0 %792
    %v795 = vmul.f32 %v718, %v699
    %v796 = vmul.f32 %v723, %v700
    %v797 = vmul.f32 %v728, %v701
    %v798 = vmul.f32 %v733, %v702
    %v799 = vmul.f32 %v738, %v703
    %v800 = vmul.f32 %v743, %v704
    %v801 = vmul.f32 %v748, %v705
    %v802 = vmul.f32 %v753, %v706
    %v803 = vmul.f32 %v758, %v707
    %v804 = vmul.f32 %v763, %v708
    %v805 = vmul.f32 %v768, %v709
    %v806 = vmul.f32 %v773, %v710
    %v807 = vmul.f32 %v778, %v711
    %v808 = vmul.f32 %v783, %v712
    %v809 = vmul.f32 %v788, %v713
    %v810 = vmul.f32 %v793, %v714
    %v811 = vpack.c.bf16 %v564, %v563
    %v812 = vpack.c.bf16 %v566, %v565
    %v813 = vpack.c.bf16 %v568, %v567
    %v814 = vpack.c.bf16 %v570, %v569
    %v815 = vpack.c.bf16 %v572, %v571
    %v816 = vpack.c.bf16 %v574, %v573
    %v817 = vpack.c.bf16 %v576, %v575
    %v818 = vpack.c.bf16 %v578, %v577
    %v835 = vunpack.c.l.b16 %v683
    %v836 = vunpack.c.l.b16 %v684
    %v837 = vunpack.c.l.b16 %v685
    %v838 = vunpack.c.l.b16 %v686
    %v839 = vunpack.c.l.b16 %v687
    %v840 = vunpack.c.l.b16 %v688
    %v841 = vunpack.c.l.b16 %v689
    %v842 = vunpack.c.l.b16 %v690
    %v843 = vunpack.c.l.b16 %v691
    %v844 = vunpack.c.l.b16 %v692
    %v845 = vunpack.c.l.b16 %v693
    %v846 = vunpack.c.l.b16 %v694
    %v847 = vunpack.c.l.b16 %v695
    %v848 = vunpack.c.l.b16 %v696
    %v849 = vunpack.c.l.b16 %v697
    %v850 = vunpack.c.l.b16 %v698
    %v851 = vpack.c.b16 %v836, %v835
    %v852 = vpack.c.b16 %v838, %v837
    %v853 = vpack.c.b16 %v840, %v839
    %v854 = vpack.c.b16 %v842, %v841
    %v855 = vpack.c.b16 %v844, %v843
    %v856 = vpack.c.b16 %v846, %v845
    %v857 = vpack.c.b16 %v848, %v847
    %v858 = vpack.c.b16 %v850, %v849
    %867 = vmatprep.subr.bf16.mxu0 0
    %868 = vmatpush1.bf16.msra.mxu0 %v851
    %869 = vmatprep.subr.bf16.mxu0 0
    %870 = vmatpush1.bf16.msra.mxu0 %v852
    %871 = vmatprep.subr.bf16.mxu0 0
    %872 = vmatpush1.bf16.msra.mxu0 %v853
    %873 = vmatprep.subr.bf16.mxu0 0
    %874 = vmatpush1.bf16.msra.mxu0 %v854
    %875 = vmatprep.subr.bf16.mxu0 0
    %876 = vmatpush1.bf16.msra.mxu0 %v855
    %877 = vmatprep.subr.bf16.mxu0 0
    %878 = vmatpush1.bf16.msra.mxu0 %v856
    %879 = vmatprep.subr.bf16.mxu0 0
    %880 = vmatpush1.bf16.msra.mxu0 %v857
    %881 = vmatprep.subr.bf16.mxu0 0
    %882 = vmatpush1.bf16.msra.mxu0 %v858
    %883 = vmatprep.subr.bf16.mxu0 0
    %884 = vmatpush1.bf16.msra.mxu0 0
    %885 = vmatprep.subr.bf16.mxu0 0
    %886 = vmatpush1.bf16.msra.mxu0 0
    %887 = vmatprep.subr.bf16.mxu0 0
    %888 = vmatpush1.bf16.msra.mxu0 0
    %889 = vmatprep.subr.bf16.mxu0 0
    %890 = vmatpush1.bf16.msra.mxu0 0
    %891 = vmatprep.subr.bf16.mxu0 0
    %892 = vmatpush1.bf16.msra.mxu0 0
    %893 = vmatprep.subr.bf16.mxu0 0
    %894 = vmatpush1.bf16.msra.mxu0 0
    %895 = vmatprep.subr.bf16.mxu0 0
    %896 = vmatpush1.bf16.msra.mxu0 0
    %897 = vmatprep.subr.bf16.mxu0 0
    %898 = vmatpush1.bf16.msra.mxu0 0
    %899 = vmatprep.mubr.bf16.mxu0 0
    %900 = vmatmul.mubr.bf16.gmra.mrb[0].mxu0 %v811
    %v901 = vpop.f32.mrb[0].mxu0
    %v902 = vadd.f32 0.0, %v901
    %v903 = vpop.f32.mrb[0].mxu0
    %v904 = vpop.f32.mrb[0].mxu0
    %v905 = vadd.f32 0.0, %v904
    %v906 = vpop.f32.mrb[0].mxu0
    %907 = vmatprep.mubr.bf16.mxu0 0
    %908 = vmatmul.mubr.bf16.gmra.mrb[0].mxu0 %v812
    %v909 = vpop.f32.mrb[0].mxu0
    %v910 = vadd.f32 0.0, %v909
    %v911 = vpop.f32.mrb[0].mxu0
    %v912 = vpop.f32.mrb[0].mxu0
    %v913 = vadd.f32 0.0, %v912
    %v914 = vpop.f32.mrb[0].mxu0
    %915 = vmatprep.mubr.bf16.mxu0 0
    %916 = vmatmul.mubr.bf16.gmra.mrb[0].mxu0 %v813
    %v917 = vpop.f32.mrb[0].mxu0
    %v918 = vadd.f32 0.0, %v917
    %v919 = vpop.f32.mrb[0].mxu0
    %v920 = vpop.f32.mrb[0].mxu0
    %v921 = vadd.f32 0.0, %v920
    %v922 = vpop.f32.mrb[0].mxu0
    %923 = vmatprep.mubr.bf16.mxu0 0
    %924 = vmatmul.mubr.bf16.gmra.mrb[0].mxu0 %v814
    %v925 = vpop.f32.mrb[0].mxu0
    %v926 = vadd.f32 0.0, %v925
    %v927 = vpop.f32.mrb[0].mxu0
    %v928 = vpop.f32.mrb[0].mxu0
    %v929 = vadd.f32 0.0, %v928
    %v930 = vpop.f32.mrb[0].mxu0
    %931 = vmatprep.mubr.bf16.mxu0 0
    %932 = vmatmul.mubr.bf16.gmra.mrb[0].mxu0 %v815
    %v933 = vpop.f32.mrb[0].mxu0
    %v934 = vadd.f32 0.0, %v933
    %v935 = vpop.f32.mrb[0].mxu0
    %v936 = vpop.f32.mrb[0].mxu0
    %v937 = vadd.f32 0.0, %v936
    %v938 = vpop.f32.mrb[0].mxu0
    %939 = vmatprep.mubr.bf16.mxu0 0
    %940 = vmatmul.mubr.bf16.gmra.mrb[0].mxu0 %v816
    %v941 = vpop.f32.mrb[0].mxu0
    %v942 = vadd.f32 0.0, %v941
    %v943 = vpop.f32.mrb[0].mxu0
    %v944 = vpop.f32.mrb[0].mxu0
    %v945 = vadd.f32 0.0, %v944
    %v946 = vpop.f32.mrb[0].mxu0
    %947 = vmatprep.mubr.bf16.mxu0 0
    %948 = vmatmul.mubr.bf16.gmra.mrb[0].mxu0 %v817
    %v949 = vpop.f32.mrb[0].mxu0
    %v950 = vadd.f32 0.0, %v949
    %v951 = vpop.f32.mrb[0].mxu0
    %v952 = vpop.f32.mrb[0].mxu0
    %v953 = vadd.f32 0.0, %v952
    %v954 = vpop.f32.mrb[0].mxu0
    %955 = vmatprep.mubr.bf16.mxu0 0
    %956 = vmatmul.mubr.bf16.gmra.mrb[0].mxu0 %v818
    %v957 = vpop.f32.mrb[0].mxu0
    %v958 = vadd.f32 0.0, %v957
    %v959 = vpop.f32.mrb[0].mxu0
    %v960 = vpop.f32.mrb[0].mxu0
    %v961 = vadd.f32 0.0, %v960
    %v962 = vpop.f32.mrb[0].mxu0
    %963 = vdwg.mxu0
    %v964 = vadd.f32 %v795, %v902
    %v965 = vadd.f32 %v796, %v905
    %v966 = vadd.f32 %v797, %v910
    %v967 = vadd.f32 %v798, %v913
    %v968 = vadd.f32 %v799, %v918
    %v969 = vadd.f32 %v800, %v921
    %v970 = vadd.f32 %v801, %v926
    %v971 = vadd.f32 %v802, %v929
    %v972 = vadd.f32 %v803, %v934
    %v973 = vadd.f32 %v804, %v937
    %v974 = vadd.f32 %v805, %v942
    %v975 = vadd.f32 %v806, %v945
    %v976 = vadd.f32 %v807, %v950
    %v977 = vadd.f32 %v808, %v953
    %v978 = vadd.f32 %v809, %v958
    %v979 = vadd.f32 %v810, %v961
    %980 = vst [vmem:[#allocation4] sm:$0xff] %v964
    %981 = vst [vmem:[#allocation4 + $0x8] sm:$0xff] %v965
    %982 = vst [vmem:[#allocation4 + $0x10] sm:$0xff] %v966
    %983 = vst [vmem:[#allocation4 + $0x18] sm:$0xff] %v967
    %984 = vst [vmem:[#allocation4 + $0x20] sm:$0xff] %v968
    %985 = vst [vmem:[#allocation4 + $0x28] sm:$0xff] %v969
    %986 = vst [vmem:[#allocation4 + $0x30] sm:$0xff] %v970
    %987 = vst [vmem:[#allocation4 + $0x38] sm:$0xff] %v971
    %988 = vst [vmem:[#allocation4 + $0x40] sm:$0xff] %v972
    %989 = vst [vmem:[#allocation4 + $0x48] sm:$0xff] %v973
    %990 = vst [vmem:[#allocation4 + $0x50] sm:$0xff] %v974
    %991 = vst [vmem:[#allocation4 + $0x58] sm:$0xff] %v975
    %992 = vst [vmem:[#allocation4 + $0x60] sm:$0xff] %v976
    %993 = vst [vmem:[#allocation4 + $0x68] sm:$0xff] %v977
    %994 = vst [vmem:[#allocation4 + $0x70] sm:$0xff] %v978
    %995 = vst [vmem:[#allocation4 + $0x78] sm:$0xff] %v979
    %996 = vst.msk [vmem:[#allocation2] sm:$0xff] %vm659, %v323
    %997 = vst.msk [vmem:[#allocation2 + $0x8] sm:$0xff] %vm659, %v324
    %998 = vst.msk [vmem:[#allocation2 + $0x10] sm:$0xff] %vm659, %v325
    %999 = vst.msk [vmem:[#allocation2 + $0x18] sm:$0xff] %vm659, %v326
    %1000 = vst.msk [vmem:[#allocation2 + $0x20] sm:$0xff] %vm659, %v327
    %1001 = vst.msk [vmem:[#allocation2 + $0x28] sm:$0xff] %vm659, %v328
    %1002 = vst.msk [vmem:[#allocation2 + $0x30] sm:$0xff] %vm659, %v329
    %1003 = vst.msk [vmem:[#allocation2 + $0x38] sm:$0xff] %vm659, %v330
    %1004 = vst.msk [vmem:[#allocation2 + $0x40] sm:$0xff] %vm659, %v331
    %1005 = vst.msk [vmem:[#allocation2 + $0x48] sm:$0xff] %vm659, %v332
    %1006 = vst.msk [vmem:[#allocation2 + $0x50] sm:$0xff] %vm659, %v333
    %1007 = vst.msk [vmem:[#allocation2 + $0x58] sm:$0xff] %vm659, %v334
    %1008 = vst.msk [vmem:[#allocation2 + $0x60] sm:$0xff] %vm659, %v335
    %1009 = vst.msk [vmem:[#allocation2 + $0x68] sm:$0xff] %vm659, %v336
    %1010 = vst.msk [vmem:[#allocation2 + $0x70] sm:$0xff] %vm659, %v337
    %1011 = vst.msk [vmem:[#allocation2 + $0x78] sm:$0xff] %vm659, %v338
  $region29: #{gat_forward.7} parent=0 // pred_fallthru
    _
  %s1012 = ssub.s32 %s66, 1
  %p1013 = scmp.eq.s32.totalorder 0, %s1012
  // Predicated region
  $region30: #{gat_forward.7} parent=0 // pred_check
    %p1014 = pneg %p1013
  $region31: #{gat_forward.7} parent=0 // pred_check_branch
    %1016 = sbr.rel (%p1014) target = $region33
  $region32: #{gat_forward.7} parent=0 // pred_region
    %v1017 = vld [vmem:[#allocation3] sm:$0xff]
    %v1018 = vld [vmem:[#allocation3 + $0x8] sm:$0xff]
    %v1019 = vld [vmem:[#allocation3 + $0x10] sm:$0xff]
    %v1020 = vld [vmem:[#allocation3 + $0x18] sm:$0xff]
    %v1021 = vld [vmem:[#allocation3 + $0x20] sm:$0xff]
    %v1022 = vld [vmem:[#allocation3 + $0x28] sm:$0xff]
    %v1023 = vld [vmem:[#allocation3 + $0x30] sm:$0xff]
    %v1024 = vld [vmem:[#allocation3 + $0x38] sm:$0xff]
    %v1025 = vld [vmem:[#allocation3 + $0x40] sm:$0xff]
    %v1026 = vld [vmem:[#allocation3 + $0x48] sm:$0xff]
    %v1027 = vld [vmem:[#allocation3 + $0x50] sm:$0xff]
    %v1028 = vld [vmem:[#allocation3 + $0x58] sm:$0xff]
    %v1029 = vld [vmem:[#allocation3 + $0x60] sm:$0xff]
    %v1030 = vld [vmem:[#allocation3 + $0x68] sm:$0xff]
    %v1031 = vld [vmem:[#allocation3 + $0x70] sm:$0xff]
    %v1032 = vld [vmem:[#allocation3 + $0x78] sm:$0xff]
    %v1033 = vrcp.pop %v1017
    %v1034 = vrcp.pop %v1018
    %v1035 = vrcp.pop %v1019
    %v1036 = vrcp.pop %v1020
    %v1037 = vrcp.pop %v1021
    %v1038 = vrcp.pop %v1022
    %v1039 = vrcp.pop %v1023
    %v1040 = vrcp.pop %v1024
    %v1041 = vrcp.pop %v1025
    %v1042 = vrcp.pop %v1026
    %v1043 = vrcp.pop %v1027
    %v1044 = vrcp.pop %v1028
    %v1045 = vrcp.pop %v1029
    %v1046 = vrcp.pop %v1030
    %v1047 = vrcp.pop %v1031
    %v1048 = vrcp.pop %v1032
    %v1049 = vld [vmem:[#allocation4] sm:$0xff]
    %v1050 = vld [vmem:[#allocation4 + $0x8] sm:$0xff]
    %v1051 = vld [vmem:[#allocation4 + $0x10] sm:$0xff]
    %v1052 = vld [vmem:[#allocation4 + $0x18] sm:$0xff]
    %v1053 = vld [vmem:[#allocation4 + $0x20] sm:$0xff]
    %v1054 = vld [vmem:[#allocation4 + $0x28] sm:$0xff]
    %v1055 = vld [vmem:[#allocation4 + $0x30] sm:$0xff]
    %v1056 = vld [vmem:[#allocation4 + $0x38] sm:$0xff]
    %v1057 = vld [vmem:[#allocation4 + $0x40] sm:$0xff]
    %v1058 = vld [vmem:[#allocation4 + $0x48] sm:$0xff]
    %v1059 = vld [vmem:[#allocation4 + $0x50] sm:$0xff]
    %v1060 = vld [vmem:[#allocation4 + $0x58] sm:$0xff]
    %v1061 = vld [vmem:[#allocation4 + $0x60] sm:$0xff]
    %v1062 = vld [vmem:[#allocation4 + $0x68] sm:$0xff]
    %v1063 = vld [vmem:[#allocation4 + $0x70] sm:$0xff]
    %v1064 = vld [vmem:[#allocation4 + $0x78] sm:$0xff]
    %1066 = vset.pattern.permute.xlu0 0
    %1067 = vperm.xlu0 %1066, %v1033
    %v1068 = vpop.permute.xlu0 %1067
    %1071 = vset.pattern.permute.xlu0 0
    %1072 = vperm.xlu0 %1071, %v1034
    %v1073 = vpop.permute.xlu0 %1072
    %1076 = vset.pattern.permute.xlu0 0
    %1077 = vperm.xlu0 %1076, %v1035
    %v1078 = vpop.permute.xlu0 %1077
    %1081 = vset.pattern.permute.xlu0 0
    %1082 = vperm.xlu0 %1081, %v1036
    %v1083 = vpop.permute.xlu0 %1082
    %1086 = vset.pattern.permute.xlu0 0
    %1087 = vperm.xlu0 %1086, %v1037
    %v1088 = vpop.permute.xlu0 %1087
    %1091 = vset.pattern.permute.xlu0 0
    %1092 = vperm.xlu0 %1091, %v1038
    %v1093 = vpop.permute.xlu0 %1092
    %1096 = vset.pattern.permute.xlu0 0
    %1097 = vperm.xlu0 %1096, %v1039
    %v1098 = vpop.permute.xlu0 %1097
    %1101 = vset.pattern.permute.xlu0 0
    %1102 = vperm.xlu0 %1101, %v1040
    %v1103 = vpop.permute.xlu0 %1102
    %1106 = vset.pattern.permute.xlu0 0
    %1107 = vperm.xlu0 %1106, %v1041
    %v1108 = vpop.permute.xlu0 %1107
    %1111 = vset.pattern.permute.xlu0 0
    %1112 = vperm.xlu0 %1111, %v1042
    %v1113 = vpop.permute.xlu0 %1112
    %1116 = vset.pattern.permute.xlu0 0
    %1117 = vperm.xlu0 %1116, %v1043
    %v1118 = vpop.permute.xlu0 %1117
    %1121 = vset.pattern.permute.xlu0 0
    %1122 = vperm.xlu0 %1121, %v1044
    %v1123 = vpop.permute.xlu0 %1122
    %1126 = vset.pattern.permute.xlu0 0
    %1127 = vperm.xlu0 %1126, %v1045
    %v1128 = vpop.permute.xlu0 %1127
    %1131 = vset.pattern.permute.xlu0 0
    %1132 = vperm.xlu0 %1131, %v1046
    %v1133 = vpop.permute.xlu0 %1132
    %1136 = vset.pattern.permute.xlu0 0
    %1137 = vperm.xlu0 %1136, %v1047
    %v1138 = vpop.permute.xlu0 %1137
    %1141 = vset.pattern.permute.xlu0 0
    %1142 = vperm.xlu0 %1141, %v1048
    %v1143 = vpop.permute.xlu0 %1142
    %v1145 = vmul.f32 %v1049, %v1068
    %v1146 = vmul.f32 %v1050, %v1073
    %v1147 = vmul.f32 %v1051, %v1078
    %v1148 = vmul.f32 %v1052, %v1083
    %v1149 = vmul.f32 %v1053, %v1088
    %v1150 = vmul.f32 %v1054, %v1093
    %v1151 = vmul.f32 %v1055, %v1098
    %v1152 = vmul.f32 %v1056, %v1103
    %v1153 = vmul.f32 %v1057, %v1108
    %v1154 = vmul.f32 %v1058, %v1113
    %v1155 = vmul.f32 %v1059, %v1118
    %v1156 = vmul.f32 %v1060, %v1123
    %v1157 = vmul.f32 %v1061, %v1128
    %v1158 = vmul.f32 %v1062, %v1133
    %v1159 = vmul.f32 %v1063, %v1138
    %v1160 = vmul.f32 %v1064, %v1143
    %v1161 = vld [vmem:[%s6] sm:$0x1]
    %v1163 = vlaneseq
    %v1164 = vshrl.u32 %v1163, 7
    %v1165 = vsub.s32 0, %v1164
    %v1166 = vrot.slane %v1161, %v1165
    %v1168 = vadd.f32 %v1145, %v1166
    %v1169 = vadd.f32 %v1146, %v1166
    %v1170 = vadd.f32 %v1147, %v1166
    %v1171 = vadd.f32 %v1148, %v1166
    %v1172 = vadd.f32 %v1149, %v1166
    %v1173 = vadd.f32 %v1150, %v1166
    %v1174 = vadd.f32 %v1151, %v1166
    %v1175 = vadd.f32 %v1152, %v1166
    %v1176 = vadd.f32 %v1153, %v1166
    %v1177 = vadd.f32 %v1154, %v1166
    %v1178 = vadd.f32 %v1155, %v1166
    %v1179 = vadd.f32 %v1156, %v1166
    %v1180 = vadd.f32 %v1157, %v1166
    %v1181 = vadd.f32 %v1158, %v1166
    %v1182 = vadd.f32 %v1159, %v1166
    %v1183 = vadd.f32 %v1160, %v1166
    %1184 = vst [vmem:[%s7] sm:$0xff] %v1168
    %1185 = vst [vmem:[%s7 + $0x8] sm:$0xff] %v1169
    %1186 = vst [vmem:[%s7 + $0x10] sm:$0xff] %v1170
    %1187 = vst [vmem:[%s7 + $0x18] sm:$0xff] %v1171
    %1188 = vst [vmem:[%s7 + $0x20] sm:$0xff] %v1172
    %1189 = vst [vmem:[%s7 + $0x28] sm:$0xff] %v1173
    %1190 = vst [vmem:[%s7 + $0x30] sm:$0xff] %v1174
    %1191 = vst [vmem:[%s7 + $0x38] sm:$0xff] %v1175
    %1192 = vst [vmem:[%s7 + $0x40] sm:$0xff] %v1176
    %1193 = vst [vmem:[%s7 + $0x48] sm:$0xff] %v1177
    %1194 = vst [vmem:[%s7 + $0x50] sm:$0xff] %v1178
    %1195 = vst [vmem:[%s7 + $0x58] sm:$0xff] %v1179
    %1196 = vst [vmem:[%s7 + $0x60] sm:$0xff] %v1180
    %1197 = vst [vmem:[%s7 + $0x68] sm:$0xff] %v1181
    %1198 = vst [vmem:[%s7 + $0x70] sm:$0xff] %v1182
    %1199 = vst [vmem:[%s7 + $0x78] sm:$0xff] %v1183
  $region33: #{gat_forward.7} parent=0 // pred_fallthru
    _
  // Predicated region
  $region34: #{gat_forward.7} parent=0 // pred_check
    _
  $region35: #{gat_forward.7} parent=0 // pred_check_branch
    %1201 = sbr.rel (0) target = $region37
  $region36: #{gat_forward.7} parent=0 // pred_region
    _
  $region37: #{gat_forward.7} parent=0 // pred_fallthru
    _
  // Predicated region
  $region38: #{gat_forward.7} parent=0 // pred_check
    _
  $region39: #{gat_forward.7} parent=0 // pred_check_branch
    %1203 = sbr.rel (0) target = $region41
  $region40: #{gat_forward.7} parent=0 // pred_region
    _
  $region41: #{gat_forward.7} parent=0 // pred_fallthru
    _

</llo_original>
